<compile_context>
chip_gen: v6e
topology: v6e:2x2x1
jax: 0.10.0
libtpu: 0.0.40
codegen_flags: <defaults>
</compile_context>

<pallas_src>
import functools
import math

import jax
import jax.numpy as jnp
from jax.experimental import pallas as pl
from jax.experimental.pallas import tpu as pltpu


def _layernorm(x, gamma, beta, eps=1e-5):
    mean = jnp.mean(x, axis=-1, keepdims=True)
    var = jnp.mean(jnp.square(x - mean), axis=-1, keepdims=True)
    return (x - mean) * jax.lax.rsqrt(var + eps) * gamma + beta


def _mha(q, k, v, num_heads, compute_dtype):
    """Batched multi-head attention on 2-D (rows, E) operands. f32 in, f32 out."""
    Sq, E = q.shape
    Skv = k.shape[0]
    D = E // num_heads
    scale = 1.0 / math.sqrt(D)
    qh = q.reshape(Sq, num_heads, D).transpose(1, 0, 2).astype(compute_dtype)    # (H, Sq, D)
    kh = k.reshape(Skv, num_heads, D).transpose(1, 0, 2).astype(compute_dtype)   # (H, Skv, D)
    vh = v.reshape(Skv, num_heads, D).transpose(1, 0, 2).astype(compute_dtype)   # (H, Skv, D)
    s = jnp.einsum("hqd,hkd->hqk", qh, kh,
                   preferred_element_type=jnp.float32) * scale                   # (H, Sq, Skv)
    s = s - jnp.max(s, axis=-1, keepdims=True)
    p = jnp.exp(s)
    p = p * pl.reciprocal(jnp.sum(p, axis=-1, keepdims=True), approx=True)       # softmax
    ctx = jnp.einsum("hqk,hkd->hqd", p.astype(compute_dtype), vh,
                     preferred_element_type=jnp.float32)                         # (H, Sq, D)
    return ctx.transpose(1, 0, 2).reshape(Sq, E)                                 # (Sq, E)


def decoder_layer_kernel(tgt_ref, mem_ref,
                         wqkv_s_ref, bqkv_s_ref, wo_s_ref, bo_s_ref,
                         wq_x_ref, bq_x_ref, wkv_x_ref, bkv_x_ref, wo_x_ref, bo_x_ref,
                         w1_ref, b1_ref, w2_ref, b2_ref,
                         g1_ref, bt1_ref, g2_ref, bt2_ref, g3_ref, bt3_ref,
                         o_ref, *, num_heads, tq):
    cdt = wqkv_s_ref.dtype                       # bf16 compute dtype for MXU inputs

    x_full = tgt_ref[...]                        # (S, E) f32, full tgt sequence (self-attn K/V)
    mem = mem_ref[...]                           # (T, E) f32
    S, E = x_full.shape
    xf_c = x_full.astype(cdt)

    # ---- self-attention (packed QKV weight) --------------------------------
    if tq == S:
        # Single query tile: one fused (S,E)@(E,3E) matmul for Q, K and V.
        x_q = x_full
        qkv = jnp.dot(xf_c, wqkv_s_ref[...],
                      preferred_element_type=jnp.float32) + bqkv_s_ref[...]      # (S, 3E)
        q_s, k_s, v_s = qkv[:, :E], qkv[:, E:2 * E], qkv[:, 2 * E:]
    else:
        # Tiled queries: Q only for this tile's rows, fused K/V for all rows.
        start = pl.multiple_of(pl.program_id(1) * tq, tq)
        x_q = tgt_ref[pl.ds(start, tq), :]                                       # (TQ, E)
        q_s = jnp.dot(x_q.astype(cdt), wqkv_s_ref[:, :E],
                      preferred_element_type=jnp.float32) + bqkv_s_ref[:, :E]
        kv = jnp.dot(xf_c, wqkv_s_ref[:, E:],
                     preferred_element_type=jnp.float32) + bqkv_s_ref[:, E:]     # (S, 2E)
        k_s, v_s = kv[:, :E], kv[:, E:]

    # TODO(synk): tgt_mask (attn_mask) not plumbed through; PyTorch default is None.
    y = _mha(q_s, k_s, v_s, num_heads, cdt)
    y = jnp.dot(y.astype(cdt), wo_s_ref[...],
                preferred_element_type=jnp.float32) + bo_s_ref[...]
    t1 = _layernorm(x_q + y, g1_ref[...], bt1_ref[...])                          # norm1

    # ---- cross-attention over memory (packed KV weight) --------------------
    q_x = jnp.dot(t1.astype(cdt), wq_x_ref[...],
                  preferred_element_type=jnp.float32) + bq_x_ref[...]            # (TQ, E)
    kv_x = jnp.dot(mem.astype(cdt), wkv_x_ref[...],
                   preferred_element_type=jnp.float32) + bkv_x_ref[...]          # (T, 2E)
    y = _mha(q_x, kv_x[:, :E], kv_x[:, E:], num_heads, cdt)
    y = jnp.dot(y.astype(cdt), wo_x_ref[...],
                preferred_element_type=jnp.float32) + bo_x_ref[...]
    t2 = _layernorm(t1 + y, g2_ref[...], bt2_ref[...])                           # norm2

    # ---- feed-forward --------------------------------------------------------
    h = jnp.dot(t2.astype(cdt), w1_ref[...],
                preferred_element_type=jnp.float32) + b1_ref[...]
    h = jnp.maximum(h, 0.0)                                                      # ReLU
    # TODO(synk): attention/FFN dropouts omitted (identity / eval mode).
    h = jnp.dot(h.astype(cdt), w2_ref[...],
                preferred_element_type=jnp.float32) + b2_ref[...]
    o_ref[...] = _layernorm(t2 + h, g3_ref[...], bt3_ref[...]).astype(o_ref.dtype)  # norm3


def pack_params(raw, compute_dtype=jnp.bfloat16):
    """Pack per-matrix f32 params into fused, bf16 weights (biases/LN params stay f32)."""
    wd = compute_dtype
    return dict(
        w_qkv_s=jnp.concatenate([raw["wq_s"], raw["wk_s"], raw["wv_s"]], axis=1).astype(wd),
        b_qkv_s=jnp.concatenate([raw["bq_s"], raw["bk_s"], raw["bv_s"]], axis=1),
        w_o_s=raw["wo_s"].astype(wd), b_o_s=raw["bo_s"],
        w_q_x=raw["wq_x"].astype(wd), b_q_x=raw["bq_x"],
        w_kv_x=jnp.concatenate([raw["wk_x"], raw["wv_x"]], axis=1).astype(wd),
        b_kv_x=jnp.concatenate([raw["bk_x"], raw["bv_x"]], axis=1),
        w_o_x=raw["wo_x"].astype(wd), b_o_x=raw["bo_x"],
        w1=raw["w1"].astype(wd), b1=raw["b1"],
        w2=raw["w2"].astype(wd), b2=raw["b2"],
        g1=raw["g1"], bt1=raw["bt1"],
        g2=raw["g2"], bt2=raw["bt2"],
        g3=raw["g3"], bt3=raw["bt3"],
    )


def transformer_decoder_layer(tgt, memory, packed, num_heads, *, tq=None):
    N, S, E = tgt.shape
    _, T, _ = memory.shape
    Fd = packed["w1"].shape[1]

    if tq is None:
        tq = S if S <= 128 else 128
    assert S % tq == 0, "sequence length must be divisible by the query tile"
    n_q = S // tq

    def whole(shape):
        return pl.BlockSpec(shape, lambda n, qi: (0,) * len(shape))

    in_specs = [
        pl.BlockSpec((pl.Squeezed(), S, E), lambda n, qi: (n, 0, 0)),   # tgt (full seq / step)
        pl.BlockSpec((pl.Squeezed(), T, E), lambda n, qi: (n, 0, 0)),   # memory
        whole((E, 3 * E)), whole((1, 3 * E)),                           # self-attn packed QKV
        whole((E, E)), whole((1, E)),                                   # self-attn out-proj
        whole((E, E)), whole((1, E)),                                   # cross-attn Q
        whole((E, 2 * E)), whole((1, 2 * E)),                           # cross-attn packed KV
        whole((E, E)), whole((1, E)),                                   # cross-attn out-proj
        whole((E, Fd)), whole((1, Fd)),                                 # linear1
        whole((Fd, E)), whole((1, E)),                                  # linear2
        whole((1, E)), whole((1, E)),                                   # norm1 gamma/beta
        whole((1, E)), whole((1, E)),                                   # norm2 gamma/beta
        whole((1, E)), whole((1, E)),                                   # norm3 gamma/beta
    ]
    out_spec = pl.BlockSpec((pl.Squeezed(), tq, E), lambda n, qi: (n, qi, 0))

    # Advisory cost for XLA's scheduler.
    H = num_heads
    flops = int(N * (12 * S * E * E + 4 * T * E * E + 4 * S * E * (S + T) + 4 * S * E * Fd))
    transcendentals = int(N * H * S * (S + T))
    weight_bytes = int(sum(int(v.size) * v.dtype.itemsize for v in packed.values()))
    bytes_accessed = int(2 * tgt.nbytes + memory.nbytes + weight_bytes)
    cost = pl.CostEstimate(flops=flops, transcendentals=transcendentals,
                           bytes_accessed=bytes_accessed)

    # Weights are effectively resident; budget double-buffering + activation/intermediate tiles.
    vmem_need = 2 * weight_bytes + 4 * 4 * (S * E + T * E + 2 * tq * E + tq * Fd
                                            + H * tq * (S + T) + 3 * S * E)
    vmem_limit = int(min(max(2 * vmem_need, 32 * 2 ** 20), 64 * 2 ** 20))

    kernel = functools.partial(decoder_layer_kernel, num_heads=num_heads, tq=tq)

    return pl.pallas_call(
        kernel,
        out_shape=jax.ShapeDtypeStruct((N, S, E), jnp.float32),
        grid_spec=pltpu.PrefetchScalarGridSpec(
            num_scalar_prefetch=0,
            grid=(N, n_q),
            in_specs=in_specs,
            out_specs=out_spec,
        ),
        compiler_params=pltpu.CompilerParams(
            dimension_semantics=("parallel", "parallel"),
            vmem_limit_bytes=vmem_limit,
        ),
        cost_estimate=cost,
    )(tgt, memory,
      packed["w_qkv_s"], packed["b_qkv_s"], packed["w_o_s"], packed["b_o_s"],
      packed["w_q_x"], packed["b_q_x"], packed["w_kv_x"], packed["b_kv_x"],
      packed["w_o_x"], packed["b_o_x"],
      packed["w1"], packed["b1"], packed["w2"], packed["b2"],
      packed["g1"], packed["bt1"], packed["g2"], packed["bt2"],
      packed["g3"], packed["bt3"])


def reference(tgt, memory, raw, num_heads):
    """Pure-JAX (f32) mirror of the PyTorch TransformerDecoderLayer forward (eval mode)."""
    E = tgt.shape[-1]
    D = E // num_heads

    def lin(a, w, b):
        return a @ w + b[0]

    def mha(q_in, kv_in, wq, bq, wk, bk, wv, bv, wo, bo):
        N, S, _ = q_in.shape
        T = kv_in.shape[1]
        q = lin(q_in, wq, bq).reshape(N, S, num_heads, D).transpose(0, 2, 1, 3)
        k = lin(kv_in, wk, bk).reshape(N, T, num_heads, D).transpose(0, 2, 1, 3)
        v = lin(kv_in, wv, bv).reshape(N, T, num_heads, D).transpose(0, 2, 1, 3)
        s = jnp.einsum("nhsd,nhtd->nhst", q, k) / math.sqrt(D)
        p = jax.nn.softmax(s, axis=-1)
        y = jnp.einsum("nhst,nhtd->nhsd", p, v).transpose(0, 2, 1, 3).reshape(N, S, E)
        return lin(y, wo, bo)

    def ln(a, g, b, eps=1e-5):
        m = a.mean(-1, keepdims=True)
        v = ((a - m) ** 2).mean(-1, keepdims=True)
        return (a - m) / jnp.sqrt(v + eps) * g[0] + b[0]

    t = ln(tgt + mha(tgt, tgt, raw["wq_s"], raw["bq_s"], raw["wk_s"], raw["bk_s"],
                     raw["wv_s"], raw["bv_s"], raw["wo_s"], raw["bo_s"]),
           raw["g1"], raw["bt1"])
    t = ln(t + mha(t, memory, raw["wq_x"], raw["bq_x"], raw["wk_x"], raw["bk_x"],
                   raw["wv_x"], raw["bv_x"], raw["wo_x"], raw["bo_x"]),
           raw["g2"], raw["bt2"])
    h = jax.nn.relu(lin(t, raw["w1"], raw["b1"]))
    h = lin(h, raw["w2"], raw["b2"])
    return ln(t + h, raw["g3"], raw["bt3"])


if __name__ == "__main__":
    # batch, tgt seq, memory seq, embed_dim, num_heads, dim_feedforward
    N, S, T, E, H, Fd = 2, 8, 16, 32, 2, 64

    key = jax.random.PRNGKey(0)
    keys = jax.random.split(key, 32)

    def init(k, shape, fan_in):
        bound = 1.0 / math.sqrt(fan_in)
        return jax.random.uniform(k, shape, jnp.float32, -bound, bound)

    raw = dict(
        wq_s=init(keys[0], (E, E), E),   bq_s=init(keys[1], (1, E), E),
        wk_s=init(keys[2], (E, E), E),   bk_s=init(keys[3], (1, E), E),
        wv_s=init(keys[4], (E, E), E),   bv_s=init(keys[5], (1, E), E),
        wo_s=init(keys[6], (E, E), E),   bo_s=init(keys[7], (1, E), E),
        wq_x=init(keys[8], (E, E), E),   bq_x=init(keys[9], (1, E), E),
        wk_x=init(keys[10], (E, E), E),  bk_x=init(keys[11], (1, E), E),
        wv_x=init(keys[12], (E, E), E),  bv_x=init(keys[13], (1, E), E),
        wo_x=init(keys[14], (E, E), E),  bo_x=init(keys[15], (1, E), E),
        w1=init(keys[16], (E, Fd), E),   b1=init(keys[17], (1, Fd), E),
        w2=init(keys[18], (Fd, E), Fd),  b2=init(keys[19], (1, E), Fd),
        g1=jnp.ones((1, E), jnp.float32), bt1=jnp.zeros((1, E), jnp.float32),
        g2=jnp.ones((1, E), jnp.float32), bt2=jnp.zeros((1, E), jnp.float32),
        g3=jnp.ones((1, E), jnp.float32), bt3=jnp.zeros((1, E), jnp.float32),
    )

    tgt = jax.random.normal(keys[20], (N, S, E), jnp.float32)
    memory = jax.random.normal(keys[21], (N, T, E), jnp.float32)

    packed = pack_params(raw, compute_dtype=jnp.bfloat16)

    out = transformer_decoder_layer(tgt, memory, packed, H)
    out = jax.block_until_ready(out)

    ref = reference(tgt, memory, raw, H)
    assert out.shape == (N, S, E)
    # Tolerance accounts for bf16 weights / bf16 matmul inputs (f32 accumulation) in the kernel.
    max_err = float(jnp.max(jnp.abs(out - ref)))
    assert jnp.allclose(out, ref, atol=3e-2, rtol=3e-2), f"mismatch vs. JAX reference (max |err|={max_err})"

    print("KERNEL_OK")
</pallas_src>

<mosaic_0001>
module attributes {stable_mosaic.version = 11 : i64} {
  func.func @decoder_layer_kernel(%arg0: i32, %arg1: i32, %arg2: memref<1x8x32xf32, #tpu.memory_space<vmem>>, %arg3: memref<1x16x32xf32, #tpu.memory_space<vmem>>, %arg4: memref<32x96xbf16, #tpu.memory_space<vmem>>, %arg5: memref<1x96xf32, #tpu.memory_space<vmem>>, %arg6: memref<32x32xbf16, #tpu.memory_space<vmem>>, %arg7: memref<1x32xf32, #tpu.memory_space<vmem>>, %arg8: memref<32x32xbf16, #tpu.memory_space<vmem>>, %arg9: memref<1x32xf32, #tpu.memory_space<vmem>>, %arg10: memref<32x64xbf16, #tpu.memory_space<vmem>>, %arg11: memref<1x64xf32, #tpu.memory_space<vmem>>, %arg12: memref<32x32xbf16, #tpu.memory_space<vmem>>, %arg13: memref<1x32xf32, #tpu.memory_space<vmem>>, %arg14: memref<32x64xbf16, #tpu.memory_space<vmem>>, %arg15: memref<1x64xf32, #tpu.memory_space<vmem>>, %arg16: memref<64x32xbf16, #tpu.memory_space<vmem>>, %arg17: memref<1x32xf32, #tpu.memory_space<vmem>>, %arg18: memref<1x32xf32, #tpu.memory_space<vmem>>, %arg19: memref<1x32xf32, #tpu.memory_space<vmem>>, %arg20: memref<1x32xf32, #tpu.memory_space<vmem>>, %arg21: memref<1x32xf32, #tpu.memory_space<vmem>>, %arg22: memref<1x32xf32, #tpu.memory_space<vmem>>, %arg23: memref<1x32xf32, #tpu.memory_space<vmem>>, %arg24: memref<1x8x32xf32, #tpu.memory_space<vmem>>) attributes {dimension_semantics = [#tpu.dimension_semantics<parallel>, #tpu.dimension_semantics<parallel>], iteration_bounds = array<i64: 2, 1>, scalar_prefetch = 0 : i64, scratch_operands = 0 : i64, tpu.core_type = #tpu.core_type<tc>, window_params = [{transform_indices = @transform_0, window_bounds = array<i64: 1, 8, 32>}, {transform_indices = @transform_1, window_bounds = array<i64: 1, 16, 32>}, {pipeline_mode = #tpu.pipeline_mode<synchronous>, transform_indices = @transform_2, window_bounds = array<i64: 32, 96>}, {pipeline_mode = #tpu.pipeline_mode<synchronous>, transform_indices = @transform_3, window_bounds = array<i64: 1, 96>}, {pipeline_mode = #tpu.pipeline_mode<synchronous>, transform_indices = @transform_4, window_bounds = array<i64: 32, 32>}, {pipeline_mode = #tpu.pipeline_mode<synchronous>, transform_indices = @transform_5, window_bounds = array<i64: 1, 32>}, {pipeline_mode = #tpu.pipeline_mode<synchronous>, transform_indices = @transform_6, window_bounds = array<i64: 32, 32>}, {pipeline_mode = #tpu.pipeline_mode<synchronous>, transform_indices = @transform_7, window_bounds = array<i64: 1, 32>}, {pipeline_mode = #tpu.pipeline_mode<synchronous>, transform_indices = @transform_8, window_bounds = array<i64: 32, 64>}, {pipeline_mode = #tpu.pipeline_mode<synchronous>, transform_indices = @transform_9, window_bounds = array<i64: 1, 64>}, {pipeline_mode = #tpu.pipeline_mode<synchronous>, transform_indices = @transform_10, window_bounds = array<i64: 32, 32>}, {pipeline_mode = #tpu.pipeline_mode<synchronous>, transform_indices = @transform_11, window_bounds = array<i64: 1, 32>}, {pipeline_mode = #tpu.pipeline_mode<synchronous>, transform_indices = @transform_12, window_bounds = array<i64: 32, 64>}, {pipeline_mode = #tpu.pipeline_mode<synchronous>, transform_indices = @transform_13, window_bounds = array<i64: 1, 64>}, {pipeline_mode = #tpu.pipeline_mode<synchronous>, transform_indices = @transform_14, window_bounds = array<i64: 64, 32>}, {pipeline_mode = #tpu.pipeline_mode<synchronous>, transform_indices = @transform_15, window_bounds = array<i64: 1, 32>}, {pipeline_mode = #tpu.pipeline_mode<synchronous>, transform_indices = @transform_16, window_bounds = array<i64: 1, 32>}, {pipeline_mode = #tpu.pipeline_mode<synchronous>, transform_indices = @transform_17, window_bounds = array<i64: 1, 32>}, {pipeline_mode = #tpu.pipeline_mode<synchronous>, transform_indices = @transform_18, window_bounds = array<i64: 1, 32>}, {pipeline_mode = #tpu.pipeline_mode<synchronous>, transform_indices = @transform_19, window_bounds = array<i64: 1, 32>}, {pipeline_mode = #tpu.pipeline_mode<synchronous>, transform_indices = @transform_20, window_bounds = array<i64: 1, 32>}, {pipeline_mode = #tpu.pipeline_mode<synchronous>, transform_indices = @transform_21, window_bounds = array<i64: 1, 32>}, {transform_indices = @transform_22, window_bounds = array<i64: 1, 8, 32>}]} {
    %c0 = arith.constant 0 : index
    %c0_0 = arith.constant 0 : index
    %c0_1 = arith.constant 0 : index
    %0 = vector.load %arg2[%c0, %c0_0, %c0_1] : memref<1x8x32xf32, #tpu.memory_space<vmem>>, vector<1x8x32xf32>
    %1 = vector.shape_cast %0 : vector<1x8x32xf32> to vector<8x32xf32>
    %c0_2 = arith.constant 0 : index
    %c0_3 = arith.constant 0 : index
    %c0_4 = arith.constant 0 : index
    %2 = vector.load %arg3[%c0_2, %c0_3, %c0_4] : memref<1x16x32xf32, #tpu.memory_space<vmem>>, vector<1x16x32xf32>
    %3 = vector.shape_cast %2 : vector<1x16x32xf32> to vector<16x32xf32>
    %4 = arith.truncf %1 : vector<8x32xf32> to vector<8x32xbf16>
    %c0_5 = arith.constant 0 : index
    %c0_6 = arith.constant 0 : index
    %5 = vector.load %arg4[%c0_5, %c0_6] : memref<32x96xbf16, #tpu.memory_space<vmem>>, vector<32x96xbf16>
    %cst = arith.constant dense<0.000000e+00> : vector<8x96xf32>
    %6 = tpu.matmul %4, %5, %cst {dimension_numbers = #tpu.dot_dimension_numbers<[1], [0], [0], [1], [0, 0, 1, 1], [], []>} : vector<8x32xbf16>, vector<32x96xbf16>, vector<8x96xf32> -> vector<8x96xf32>
    %c0_7 = arith.constant 0 : index
    %c0_8 = arith.constant 0 : index
    %7 = vector.load %arg5[%c0_7, %c0_8] : memref<1x96xf32, #tpu.memory_space<vmem>>, vector<1x96xf32>
    %8 = vector.broadcast %7 : vector<1x96xf32> to vector<8x96xf32>
    %9 = arith.addf %6, %8 : vector<8x96xf32>
    %10 = vector.extract_strided_slice %9 {offsets = [0, 0], sizes = [8, 32], strides = [1, 1]} : vector<8x96xf32> to vector<8x32xf32>
    %11 = vector.extract_strided_slice %9 {offsets = [0, 32], sizes = [8, 32], strides = [1, 1]} : vector<8x96xf32> to vector<8x32xf32>
    %12 = vector.extract_strided_slice %9 {offsets = [0, 64], sizes = [8, 32], strides = [1, 1]} : vector<8x96xf32> to vector<8x32xf32>
    %13 = vector.shape_cast %10 : vector<8x32xf32> to vector<8x2x16xf32>
    %14 = tpu.transpose %13, [1, 0, 2] : vector<8x2x16xf32> -> vector<2x8x16xf32>
    %15 = arith.truncf %14 : vector<2x8x16xf32> to vector<2x8x16xbf16>
    %16 = vector.shape_cast %11 : vector<8x32xf32> to vector<8x2x16xf32>
    %17 = tpu.transpose %16, [1, 0, 2] : vector<8x2x16xf32> -> vector<2x8x16xf32>
    %18 = arith.truncf %17 : vector<2x8x16xf32> to vector<2x8x16xbf16>
    %19 = vector.shape_cast %12 : vector<8x32xf32> to vector<8x2x16xf32>
    %20 = tpu.transpose %19, [1, 0, 2] : vector<8x2x16xf32> -> vector<2x8x16xf32>
    %21 = arith.truncf %20 : vector<2x8x16xf32> to vector<2x8x16xbf16>
    "tpu.trace_start"() <{level = 10 : i32, message = "hqd,hkd->hqk"}> : () -> ()
    %cst_9 = arith.constant dense<0.000000e+00> : vector<2x8x8xf32>
    %22 = tpu.matmul %15, %18, %cst_9 {dimension_numbers = #tpu.dot_dimension_numbers<[2], [2], [1], [1], [0, 0, 0, 1, 1, 1], [0], [0]>} : vector<2x8x16xbf16>, vector<2x8x16xbf16>, vector<2x8x8xf32> -> vector<2x8x8xf32>
    "tpu.trace_stop"() : () -> ()
    %cst_10 = arith.constant 2.500000e-01 : f32
    %23 = vector.broadcast %cst_10 : f32 to vector<2x8x8xf32>
    %24 = arith.mulf %22, %23 : vector<2x8x8xf32>
    %cst_11 = arith.constant dense<0xFF800000> : vector<2x8xf32>
    %25 = vector.multi_reduction <maximumf>, %24, %cst_11 [2] : vector<2x8x8xf32> to vector<2x8xf32>
    %26 = vector.shape_cast %25 : vector<2x8xf32> to vector<2x8x1xf32>
    %27 = vector.broadcast %26 : vector<2x8x1xf32> to vector<2x8x8xf32>
    %28 = arith.subf %24, %27 : vector<2x8x8xf32>
    %29 = math.exp %28 : vector<2x8x8xf32>
    %cst_12 = arith.constant dense<0.000000e+00> : vector<2x8xf32>
    %30 = vector.multi_reduction <add>, %29, %cst_12 [2] : vector<2x8x8xf32> to vector<2x8xf32>
    %31 = vector.shape_cast %30 : vector<2x8xf32> to vector<2x8x1xf32>
    %32 = tpu.reciprocal %31 {approx = true} : vector<2x8x1xf32> -> vector<2x8x1xf32>
    %33 = vector.broadcast %32 : vector<2x8x1xf32> to vector<2x8x8xf32>
    %34 = arith.mulf %29, %33 : vector<2x8x8xf32>
    %35 = arith.truncf %34 : vector<2x8x8xf32> to vector<2x8x8xbf16>
    "tpu.trace_start"() <{level = 10 : i32, message = "hqk,hkd->hqd"}> : () -> ()
    %cst_13 = arith.constant dense<0.000000e+00> : vector<2x8x16xf32>
    %36 = tpu.matmul %35, %21, %cst_13 {dimension_numbers = #tpu.dot_dimension_numbers<[2], [1], [1], [2], [0, 0, 0, 1, 1, 2], [0], [0]>} : vector<2x8x8xbf16>, vector<2x8x16xbf16>, vector<2x8x16xf32> -> vector<2x8x16xf32>
    "tpu.trace_stop"() : () -> ()
    %37 = tpu.transpose %36, [1, 0, 2] : vector<2x8x16xf32> -> vector<8x2x16xf32>
    %38 = vector.shape_cast %37 : vector<8x2x16xf32> to vector<8x32xf32>
    %39 = arith.truncf %38 : vector<8x32xf32> to vector<8x32xbf16>
    %c0_14 = arith.constant 0 : index
    %c0_15 = arith.constant 0 : index
    %40 = vector.load %arg6[%c0_14, %c0_15] : memref<32x32xbf16, #tpu.memory_space<vmem>>, vector<32x32xbf16>
    %cst_16 = arith.constant dense<0.000000e+00> : vector<8x32xf32>
    %41 = tpu.matmul %39, %40, %cst_16 {dimension_numbers = #tpu.dot_dimension_numbers<[1], [0], [0], [1], [0, 0, 1, 1], [], []>} : vector<8x32xbf16>, vector<32x32xbf16>, vector<8x32xf32> -> vector<8x32xf32>
    %c0_17 = arith.constant 0 : index
    %c0_18 = arith.constant 0 : index
    %42 = vector.load %arg7[%c0_17, %c0_18] : memref<1x32xf32, #tpu.memory_space<vmem>>, vector<1x32xf32>
    %43 = vector.broadcast %42 : vector<1x32xf32> to vector<8x32xf32>
    %44 = arith.addf %41, %43 : vector<8x32xf32>
    %45 = arith.addf %1, %44 : vector<8x32xf32>
    %c0_19 = arith.constant 0 : index
    %c0_20 = arith.constant 0 : index
    %46 = vector.load %arg18[%c0_19, %c0_20] : memref<1x32xf32, #tpu.memory_space<vmem>>, vector<1x32xf32>
    %c0_21 = arith.constant 0 : index
    %c0_22 = arith.constant 0 : index
    %47 = vector.load %arg19[%c0_21, %c0_22] : memref<1x32xf32, #tpu.memory_space<vmem>>, vector<1x32xf32>
    %cst_23 = arith.constant dense<0.000000e+00> : vector<8xf32>
    %48 = vector.multi_reduction <add>, %45, %cst_23 [1] : vector<8x32xf32> to vector<8xf32>
    %49 = vector.shape_cast %48 : vector<8xf32> to vector<8x1xf32>
    %cst_24 = arith.constant 3.200000e+01 : f32
    %50 = vector.broadcast %cst_24 : f32 to vector<8x1xf32>
    %51 = arith.divf %49, %50 : vector<8x1xf32>
    %52 = vector.broadcast %51 : vector<8x1xf32> to vector<8x32xf32>
    %53 = arith.subf %45, %52 : vector<8x32xf32>
    %54 = arith.mulf %53, %53 : vector<8x32xf32>
    %cst_25 = arith.constant dense<0.000000e+00> : vector<8xf32>
    %55 = vector.multi_reduction <add>, %54, %cst_25 [1] : vector<8x32xf32> to vector<8xf32>
    %56 = vector.shape_cast %55 : vector<8xf32> to vector<8x1xf32>
    %cst_26 = arith.constant 3.200000e+01 : f32
    %57 = vector.broadcast %cst_26 : f32 to vector<8x1xf32>
    %58 = arith.divf %56, %57 : vector<8x1xf32>
    %59 = vector.broadcast %51 : vector<8x1xf32> to vector<8x32xf32>
    %60 = arith.subf %45, %59 : vector<8x32xf32>
    %cst_27 = arith.constant 9.99999974E-6 : f32
    %61 = vector.broadcast %cst_27 : f32 to vector<8x1xf32>
    %62 = arith.addf %58, %61 : vector<8x1xf32>
    %63 = math.rsqrt %62 : vector<8x1xf32>
    %64 = vector.broadcast %63 : vector<8x1xf32> to vector<8x32xf32>
    %65 = arith.mulf %60, %64 : vector<8x32xf32>
    %66 = vector.broadcast %46 : vector<1x32xf32> to vector<8x32xf32>
    %67 = arith.mulf %65, %66 : vector<8x32xf32>
    %68 = vector.broadcast %47 : vector<1x32xf32> to vector<8x32xf32>
    %69 = arith.addf %67, %68 : vector<8x32xf32>
    %70 = arith.truncf %69 : vector<8x32xf32> to vector<8x32xbf16>
    %c0_28 = arith.constant 0 : index
    %c0_29 = arith.constant 0 : index
    %71 = vector.load %arg8[%c0_28, %c0_29] : memref<32x32xbf16, #tpu.memory_space<vmem>>, vector<32x32xbf16>
    %cst_30 = arith.constant dense<0.000000e+00> : vector<8x32xf32>
    %72 = tpu.matmul %70, %71, %cst_30 {dimension_numbers = #tpu.dot_dimension_numbers<[1], [0], [0], [1], [0, 0, 1, 1], [], []>} : vector<8x32xbf16>, vector<32x32xbf16>, vector<8x32xf32> -> vector<8x32xf32>
    %c0_31 = arith.constant 0 : index
    %c0_32 = arith.constant 0 : index
    %73 = vector.load %arg9[%c0_31, %c0_32] : memref<1x32xf32, #tpu.memory_space<vmem>>, vector<1x32xf32>
    %74 = vector.broadcast %73 : vector<1x32xf32> to vector<8x32xf32>
    %75 = arith.addf %72, %74 : vector<8x32xf32>
    %76 = arith.truncf %3 : vector<16x32xf32> to vector<16x32xbf16>
    %c0_33 = arith.constant 0 : index
    %c0_34 = arith.constant 0 : index
    %77 = vector.load %arg10[%c0_33, %c0_34] : memref<32x64xbf16, #tpu.memory_space<vmem>>, vector<32x64xbf16>
    %cst_35 = arith.constant dense<0.000000e+00> : vector<16x64xf32>
    %78 = tpu.matmul %76, %77, %cst_35 {dimension_numbers = #tpu.dot_dimension_numbers<[1], [0], [0], [1], [0, 0, 1, 1], [], []>} : vector<16x32xbf16>, vector<32x64xbf16>, vector<16x64xf32> -> vector<16x64xf32>
    %c0_36 = arith.constant 0 : index
    %c0_37 = arith.constant 0 : index
    %79 = vector.load %arg11[%c0_36, %c0_37] : memref<1x64xf32, #tpu.memory_space<vmem>>, vector<1x64xf32>
    %80 = vector.broadcast %79 : vector<1x64xf32> to vector<16x64xf32>
    %81 = arith.addf %78, %80 : vector<16x64xf32>
    %82 = vector.extract_strided_slice %81 {offsets = [0, 0], sizes = [16, 32], strides = [1, 1]} : vector<16x64xf32> to vector<16x32xf32>
    %83 = vector.extract_strided_slice %81 {offsets = [0, 32], sizes = [16, 32], strides = [1, 1]} : vector<16x64xf32> to vector<16x32xf32>
    %84 = vector.shape_cast %75 : vector<8x32xf32> to vector<8x2x16xf32>
    %85 = tpu.transpose %84, [1, 0, 2] : vector<8x2x16xf32> -> vector<2x8x16xf32>
    %86 = arith.truncf %85 : vector<2x8x16xf32> to vector<2x8x16xbf16>
    %87 = vector.shape_cast %82 : vector<16x32xf32> to vector<16x2x16xf32>
    %88 = tpu.transpose %87, [1, 0, 2] : vector<16x2x16xf32> -> vector<2x16x16xf32>
    %89 = arith.truncf %88 : vector<2x16x16xf32> to vector<2x16x16xbf16>
    %90 = vector.shape_cast %83 : vector<16x32xf32> to vector<16x2x16xf32>
    %91 = tpu.transpose %90, [1, 0, 2] : vector<16x2x16xf32> -> vector<2x16x16xf32>
    %92 = arith.truncf %91 : vector<2x16x16xf32> to vector<2x16x16xbf16>
    "tpu.trace_start"() <{level = 10 : i32, message = "hqd,hkd->hqk"}> : () -> ()
    %cst_38 = arith.constant dense<0.000000e+00> : vector<2x8x16xf32>
    %93 = tpu.matmul %86, %89, %cst_38 {dimension_numbers = #tpu.dot_dimension_numbers<[2], [2], [1], [1], [0, 0, 0, 1, 1, 1], [0], [0]>} : vector<2x8x16xbf16>, vector<2x16x16xbf16>, vector<2x8x16xf32> -> vector<2x8x16xf32>
    "tpu.trace_stop"() : () -> ()
    %cst_39 = arith.constant 2.500000e-01 : f32
    %94 = vector.broadcast %cst_39 : f32 to vector<2x8x16xf32>
    %95 = arith.mulf %93, %94 : vector<2x8x16xf32>
    %cst_40 = arith.constant dense<0xFF800000> : vector<2x8xf32>
    %96 = vector.multi_reduction <maximumf>, %95, %cst_40 [2] : vector<2x8x16xf32> to vector<2x8xf32>
    %97 = vector.shape_cast %96 : vector<2x8xf32> to vector<2x8x1xf32>
    %98 = vector.broadcast %97 : vector<2x8x1xf32> to vector<2x8x16xf32>
    %99 = arith.subf %95, %98 : vector<2x8x16xf32>
    %100 = math.exp %99 : vector<2x8x16xf32>
    %cst_41 = arith.constant dense<0.000000e+00> : vector<2x8xf32>
    %101 = vector.multi_reduction <add>, %100, %cst_41 [2] : vector<2x8x16xf32> to vector<2x8xf32>
    %102 = vector.shape_cast %101 : vector<2x8xf32> to vector<2x8x1xf32>
    %103 = tpu.reciprocal %102 {approx = true} : vector<2x8x1xf32> -> vector<2x8x1xf32>
    %104 = vector.broadcast %103 : vector<2x8x1xf32> to vector<2x8x16xf32>
    %105 = arith.mulf %100, %104 : vector<2x8x16xf32>
    %106 = arith.truncf %105 : vector<2x8x16xf32> to vector<2x8x16xbf16>
    "tpu.trace_start"() <{level = 10 : i32, message = "hqk,hkd->hqd"}> : () -> ()
    %cst_42 = arith.constant dense<0.000000e+00> : vector<2x8x16xf32>
    %107 = tpu.matmul %106, %92, %cst_42 {dimension_numbers = #tpu.dot_dimension_numbers<[2], [1], [1], [2], [0, 0, 0, 1, 1, 2], [0], [0]>} : vector<2x8x16xbf16>, vector<2x16x16xbf16>, vector<2x8x16xf32> -> vector<2x8x16xf32>
    "tpu.trace_stop"() : () -> ()
    %108 = tpu.transpose %107, [1, 0, 2] : vector<2x8x16xf32> -> vector<8x2x16xf32>
    %109 = vector.shape_cast %108 : vector<8x2x16xf32> to vector<8x32xf32>
    %110 = arith.truncf %109 : vector<8x32xf32> to vector<8x32xbf16>
    %c0_43 = arith.constant 0 : index
    %c0_44 = arith.constant 0 : index
    %111 = vector.load %arg12[%c0_43, %c0_44] : memref<32x32xbf16, #tpu.memory_space<vmem>>, vector<32x32xbf16>
    %cst_45 = arith.constant dense<0.000000e+00> : vector<8x32xf32>
    %112 = tpu.matmul %110, %111, %cst_45 {dimension_numbers = #tpu.dot_dimension_numbers<[1], [0], [0], [1], [0, 0, 1, 1], [], []>} : vector<8x32xbf16>, vector<32x32xbf16>, vector<8x32xf32> -> vector<8x32xf32>
    %c0_46 = arith.constant 0 : index
    %c0_47 = arith.constant 0 : index
    %113 = vector.load %arg13[%c0_46, %c0_47] : memref<1x32xf32, #tpu.memory_space<vmem>>, vector<1x32xf32>
    %114 = vector.broadcast %113 : vector<1x32xf32> to vector<8x32xf32>
    %115 = arith.addf %112, %114 : vector<8x32xf32>
    %116 = arith.addf %69, %115 : vector<8x32xf32>
    %c0_48 = arith.constant 0 : index
    %c0_49 = arith.constant 0 : index
    %117 = vector.load %arg20[%c0_48, %c0_49] : memref<1x32xf32, #tpu.memory_space<vmem>>, vector<1x32xf32>
    %c0_50 = arith.constant 0 : index
    %c0_51 = arith.constant 0 : index
    %118 = vector.load %arg21[%c0_50, %c0_51] : memref<1x32xf32, #tpu.memory_space<vmem>>, vector<1x32xf32>
    %cst_52 = arith.constant dense<0.000000e+00> : vector<8xf32>
    %119 = vector.multi_reduction <add>, %116, %cst_52 [1] : vector<8x32xf32> to vector<8xf32>
    %120 = vector.shape_cast %119 : vector<8xf32> to vector<8x1xf32>
    %cst_53 = arith.constant 3.200000e+01 : f32
    %121 = vector.broadcast %cst_53 : f32 to vector<8x1xf32>
    %122 = arith.divf %120, %121 : vector<8x1xf32>
    %123 = vector.broadcast %122 : vector<8x1xf32> to vector<8x32xf32>
    %124 = arith.subf %116, %123 : vector<8x32xf32>
    %125 = arith.mulf %124, %124 : vector<8x32xf32>
    %cst_54 = arith.constant dense<0.000000e+00> : vector<8xf32>
    %126 = vector.multi_reduction <add>, %125, %cst_54 [1] : vector<8x32xf32> to vector<8xf32>
    %127 = vector.shape_cast %126 : vector<8xf32> to vector<8x1xf32>
    %cst_55 = arith.constant 3.200000e+01 : f32
    %128 = vector.broadcast %cst_55 : f32 to vector<8x1xf32>
    %129 = arith.divf %127, %128 : vector<8x1xf32>
    %130 = vector.broadcast %122 : vector<8x1xf32> to vector<8x32xf32>
    %131 = arith.subf %116, %130 : vector<8x32xf32>
    %cst_56 = arith.constant 9.99999974E-6 : f32
    %132 = vector.broadcast %cst_56 : f32 to vector<8x1xf32>
    %133 = arith.addf %129, %132 : vector<8x1xf32>
    %134 = math.rsqrt %133 : vector<8x1xf32>
    %135 = vector.broadcast %134 : vector<8x1xf32> to vector<8x32xf32>
    %136 = arith.mulf %131, %135 : vector<8x32xf32>
    %137 = vector.broadcast %117 : vector<1x32xf32> to vector<8x32xf32>
    %138 = arith.mulf %136, %137 : vector<8x32xf32>
    %139 = vector.broadcast %118 : vector<1x32xf32> to vector<8x32xf32>
    %140 = arith.addf %138, %139 : vector<8x32xf32>
    %141 = arith.truncf %140 : vector<8x32xf32> to vector<8x32xbf16>
    %c0_57 = arith.constant 0 : index
    %c0_58 = arith.constant 0 : index
    %142 = vector.load %arg14[%c0_57, %c0_58] : memref<32x64xbf16, #tpu.memory_space<vmem>>, vector<32x64xbf16>
    %cst_59 = arith.constant dense<0.000000e+00> : vector<8x64xf32>
    %143 = tpu.matmul %141, %142, %cst_59 {dimension_numbers = #tpu.dot_dimension_numbers<[1], [0], [0], [1], [0, 0, 1, 1], [], []>} : vector<8x32xbf16>, vector<32x64xbf16>, vector<8x64xf32> -> vector<8x64xf32>
    %c0_60 = arith.constant 0 : index
    %c0_61 = arith.constant 0 : index
    %144 = vector.load %arg15[%c0_60, %c0_61] : memref<1x64xf32, #tpu.memory_space<vmem>>, vector<1x64xf32>
    %145 = vector.broadcast %144 : vector<1x64xf32> to vector<8x64xf32>
    %146 = arith.addf %143, %145 : vector<8x64xf32>
    %cst_62 = arith.constant 0.000000e+00 : f32
    %147 = vector.broadcast %cst_62 : f32 to vector<8x64xf32>
    %148 = arith.maximumf %146, %147 : vector<8x64xf32>
    %149 = arith.truncf %148 : vector<8x64xf32> to vector<8x64xbf16>
    %c0_63 = arith.constant 0 : index
    %c0_64 = arith.constant 0 : index
    %150 = vector.load %arg16[%c0_63, %c0_64] : memref<64x32xbf16, #tpu.memory_space<vmem>>, vector<64x32xbf16>
    %cst_65 = arith.constant dense<0.000000e+00> : vector<8x32xf32>
    %151 = tpu.matmul %149, %150, %cst_65 {dimension_numbers = #tpu.dot_dimension_numbers<[1], [0], [0], [1], [0, 0, 1, 1], [], []>} : vector<8x64xbf16>, vector<64x32xbf16>, vector<8x32xf32> -> vector<8x32xf32>
    %c0_66 = arith.constant 0 : index
    %c0_67 = arith.constant 0 : index
    %152 = vector.load %arg17[%c0_66, %c0_67] : memref<1x32xf32, #tpu.memory_space<vmem>>, vector<1x32xf32>
    %153 = vector.broadcast %152 : vector<1x32xf32> to vector<8x32xf32>
    %154 = arith.addf %151, %153 : vector<8x32xf32>
    %155 = arith.addf %140, %154 : vector<8x32xf32>
    %c0_68 = arith.constant 0 : index
    %c0_69 = arith.constant 0 : index
    %156 = vector.load %arg22[%c0_68, %c0_69] : memref<1x32xf32, #tpu.memory_space<vmem>>, vector<1x32xf32>
    %c0_70 = arith.constant 0 : index
    %c0_71 = arith.constant 0 : index
    %157 = vector.load %arg23[%c0_70, %c0_71] : memref<1x32xf32, #tpu.memory_space<vmem>>, vector<1x32xf32>
    %cst_72 = arith.constant dense<0.000000e+00> : vector<8xf32>
    %158 = vector.multi_reduction <add>, %155, %cst_72 [1] : vector<8x32xf32> to vector<8xf32>
    %159 = vector.shape_cast %158 : vector<8xf32> to vector<8x1xf32>
    %cst_73 = arith.constant 3.200000e+01 : f32
    %160 = vector.broadcast %cst_73 : f32 to vector<8x1xf32>
    %161 = arith.divf %159, %160 : vector<8x1xf32>
    %162 = vector.broadcast %161 : vector<8x1xf32> to vector<8x32xf32>
    %163 = arith.subf %155, %162 : vector<8x32xf32>
    %164 = arith.mulf %163, %163 : vector<8x32xf32>
    %cst_74 = arith.constant dense<0.000000e+00> : vector<8xf32>
    %165 = vector.multi_reduction <add>, %164, %cst_74 [1] : vector<8x32xf32> to vector<8xf32>
    %166 = vector.shape_cast %165 : vector<8xf32> to vector<8x1xf32>
    %cst_75 = arith.constant 3.200000e+01 : f32
    %167 = vector.broadcast %cst_75 : f32 to vector<8x1xf32>
    %168 = arith.divf %166, %167 : vector<8x1xf32>
    %169 = vector.broadcast %161 : vector<8x1xf32> to vector<8x32xf32>
    %170 = arith.subf %155, %169 : vector<8x32xf32>
    %cst_76 = arith.constant 9.99999974E-6 : f32
    %171 = vector.broadcast %cst_76 : f32 to vector<8x1xf32>
    %172 = arith.addf %168, %171 : vector<8x1xf32>
    %173 = math.rsqrt %172 : vector<8x1xf32>
    %174 = vector.broadcast %173 : vector<8x1xf32> to vector<8x32xf32>
    %175 = arith.mulf %170, %174 : vector<8x32xf32>
    %176 = vector.broadcast %156 : vector<1x32xf32> to vector<8x32xf32>
    %177 = arith.mulf %175, %176 : vector<8x32xf32>
    %178 = vector.broadcast %157 : vector<1x32xf32> to vector<8x32xf32>
    %179 = arith.addf %177, %178 : vector<8x32xf32>
    %c0_77 = arith.constant 0 : index
    %c0_78 = arith.constant 0 : index
    %c0_79 = arith.constant 0 : index
    %180 = vector.load %arg24[%c0_77, %c0_78, %c0_79] : memref<1x8x32xf32, #tpu.memory_space<vmem>>, vector<1x8x32xf32>
    %181 = vector.shape_cast %180 : vector<1x8x32xf32> to vector<8x32xf32>
    %182 = vector.shape_cast %179 : vector<8x32xf32> to vector<1x8x32xf32>
    tpu.vector_store %arg24[%c0_77, %c0_78, %c0_79], %182 {strides = array<i32>} : memref<1x8x32xf32, #tpu.memory_space<vmem>>, vector<1x8x32xf32>,
    return
  }
  func.func @transform_0(%arg0: i32, %arg1: i32) -> (i32, i32, i32) {
    %c0_i32 = arith.constant 0 : i32
    %c0_i32_0 = arith.constant 0 : i32
    %c0_i32_1 = arith.constant 0 : i32
    return %arg0, %c0_i32, %c0_i32_0 : i32, i32, i32
  }
  func.func @transform_1(%arg0: i32, %arg1: i32) -> (i32, i32, i32) {
    %c0_i32 = arith.constant 0 : i32
    %c0_i32_0 = arith.constant 0 : i32
    %c0_i32_1 = arith.constant 0 : i32
    return %arg0, %c0_i32, %c0_i32_0 : i32, i32, i32
  }
  func.func @transform_2(%arg0: i32, %arg1: i32) -> (i32, i32) {
    %c0_i32 = arith.constant 0 : i32
    %c0_i32_0 = arith.constant 0 : i32
    %c0_i32_1 = arith.constant 0 : i32
    return %c0_i32, %c0_i32_0 : i32, i32
  }
  func.func @transform_3(%arg0: i32, %arg1: i32) -> (i32, i32) {
    %c0_i32 = arith.constant 0 : i32
    %c0_i32_0 = arith.constant 0 : i32
    %c0_i32_1 = arith.constant 0 : i32
    return %c0_i32, %c0_i32_0 : i32, i32
  }
  func.func @transform_4(%arg0: i32, %arg1: i32) -> (i32, i32) {
    %c0_i32 = arith.constant 0 : i32
    %c0_i32_0 = arith.constant 0 : i32
    %c0_i32_1 = arith.constant 0 : i32
    return %c0_i32, %c0_i32_0 : i32, i32
  }
  func.func @transform_5(%arg0: i32, %arg1: i32) -> (i32, i32) {
    %c0_i32 = arith.constant 0 : i32
    %c0_i32_0 = arith.constant 0 : i32
    %c0_i32_1 = arith.constant 0 : i32
    return %c0_i32, %c0_i32_0 : i32, i32
  }
  func.func @transform_6(%arg0: i32, %arg1: i32) -> (i32, i32) {
    %c0_i32 = arith.constant 0 : i32
    %c0_i32_0 = arith.constant 0 : i32
    %c0_i32_1 = arith.constant 0 : i32
    return %c0_i32, %c0_i32_0 : i32, i32
  }
  func.func @transform_7(%arg0: i32, %arg1: i32) -> (i32, i32) {
    %c0_i32 = arith.constant 0 : i32
    %c0_i32_0 = arith.constant 0 : i32
    %c0_i32_1 = arith.constant 0 : i32
    return %c0_i32, %c0_i32_0 : i32, i32
  }
  func.func @transform_8(%arg0: i32, %arg1: i32) -> (i32, i32) {
    %c0_i32 = arith.constant 0 : i32
    %c0_i32_0 = arith.constant 0 : i32
    %c0_i32_1 = arith.constant 0 : i32
    return %c0_i32, %c0_i32_0 : i32, i32
  }
  func.func @transform_9(%arg0: i32, %arg1: i32) -> (i32, i32) {
    %c0_i32 = arith.constant 0 : i32
    %c0_i32_0 = arith.constant 0 : i32
    %c0_i32_1 = arith.constant 0 : i32
    return %c0_i32, %c0_i32_0 : i32, i32
  }
  func.func @transform_10(%arg0: i32, %arg1: i32) -> (i32, i32) {
    %c0_i32 = arith.constant 0 : i32
    %c0_i32_0 = arith.constant 0 : i32
    %c0_i32_1 = arith.constant 0 : i32
    return %c0_i32, %c0_i32_0 : i32, i32
  }
  func.func @transform_11(%arg0: i32, %arg1: i32) -> (i32, i32) {
    %c0_i32 = arith.constant 0 : i32
    %c0_i32_0 = arith.constant 0 : i32
    %c0_i32_1 = arith.constant 0 : i32
    return %c0_i32, %c0_i32_0 : i32, i32
  }
  func.func @transform_12(%arg0: i32, %arg1: i32) -> (i32, i32) {
    %c0_i32 = arith.constant 0 : i32
    %c0_i32_0 = arith.constant 0 : i32
    %c0_i32_1 = arith.constant 0 : i32
    return %c0_i32, %c0_i32_0 : i32, i32
  }
  func.func @transform_13(%arg0: i32, %arg1: i32) -> (i32, i32) {
    %c0_i32 = arith.constant 0 : i32
    %c0_i32_0 = arith.constant 0 : i32
    %c0_i32_1 = arith.constant 0 : i32
    return %c0_i32, %c0_i32_0 : i32, i32
  }
  func.func @transform_14(%arg0: i32, %arg1: i32) -> (i32, i32) {
    %c0_i32 = arith.constant 0 : i32
    %c0_i32_0 = arith.constant 0 : i32
    %c0_i32_1 = arith.constant 0 : i32
    return %c0_i32, %c0_i32_0 : i32, i32
  }
  func.func @transform_15(%arg0: i32, %arg1: i32) -> (i32, i32) {
    %c0_i32 = arith.constant 0 : i32
    %c0_i32_0 = arith.constant 0 : i32
    %c0_i32_1 = arith.constant 0 : i32
    return %c0_i32, %c0_i32_0 : i32, i32
  }
  func.func @transform_16(%arg0: i32, %arg1: i32) -> (i32, i32) {
    %c0_i32 = arith.constant 0 : i32
    %c0_i32_0 = arith.constant 0 : i32
    %c0_i32_1 = arith.constant 0 : i32
    return %c0_i32, %c0_i32_0 : i32, i32
  }
  func.func @transform_17(%arg0: i32, %arg1: i32) -> (i32, i32) {
    %c0_i32 = arith.constant 0 : i32
    %c0_i32_0 = arith.constant 0 : i32
    %c0_i32_1 = arith.constant 0 : i32
    return %c0_i32, %c0_i32_0 : i32, i32
  }
  func.func @transform_18(%arg0: i32, %arg1: i32) -> (i32, i32) {
    %c0_i32 = arith.constant 0 : i32
    %c0_i32_0 = arith.constant 0 : i32
    %c0_i32_1 = arith.constant 0 : i32
    return %c0_i32, %c0_i32_0 : i32, i32
  }
  func.func @transform_19(%arg0: i32, %arg1: i32) -> (i32, i32) {
    %c0_i32 = arith.constant 0 : i32
    %c0_i32_0 = arith.constant 0 : i32
    %c0_i32_1 = arith.constant 0 : i32
    return %c0_i32, %c0_i32_0 : i32, i32
  }
  func.func @transform_20(%arg0: i32, %arg1: i32) -> (i32, i32) {
    %c0_i32 = arith.constant 0 : i32
    %c0_i32_0 = arith.constant 0 : i32
    %c0_i32_1 = arith.constant 0 : i32
    return %c0_i32, %c0_i32_0 : i32, i32
  }
  func.func @transform_21(%arg0: i32, %arg1: i32) -> (i32, i32) {
    %c0_i32 = arith.constant 0 : i32
    %c0_i32_0 = arith.constant 0 : i32
    %c0_i32_1 = arith.constant 0 : i32
    return %c0_i32, %c0_i32_0 : i32, i32
  }
  func.func @transform_22(%arg0: i32, %arg1: i32) -> (i32, i32, i32) {
    %c0_i32 = arith.constant 0 : i32
    %c0_i32_0 = arith.constant 0 : i32
    return %arg0, %arg1, %c0_i32 : i32, i32, i32
  }
}

</mosaic_0001>

<llo_original>
// kernel: tpu_custom_call.1
$region0: #{tpu_custom_call.1}
  #allocation0 [shape = 'u32[]', space=smem, size = 0x4, offset = 0x4, fixed_abs, tag = 'smem constant byte address 0x4 - core index']
  #allocation1 [shape = 'u32[144,128]{1,0:T(1,128)}', space=vmem, size = 0x12000, scoped, tag = 'internal scratch']
  %s0 = inlined_call_operand.vmem [shape: f32[2,8,32], index: 0, kind: input, shape index: {}]
  %s1 = inlined_call_operand.vmem [shape: f32[2,16,32], index: 1, kind: input, shape index: {}]
  %s2 = inlined_call_operand.hbm [shape: bf16[32,96], index: 2, kind: input, shape index: {}]
  %s3 = inlined_call_operand.vmem [shape: f32[1,96], index: 3, kind: input, shape index: {}]
  %s4 = inlined_call_operand.hbm [shape: bf16[32,32], index: 4, kind: input, shape index: {}]
  %s5 = inlined_call_operand.vmem [shape: f32[1,32], index: 5, kind: input, shape index: {}]
  %s6 = inlined_call_operand.hbm [shape: bf16[32,32], index: 6, kind: input, shape index: {}]
  %s7 = inlined_call_operand.vmem [shape: f32[1,32], index: 7, kind: input, shape index: {}]
  %s8 = inlined_call_operand.hbm [shape: bf16[32,64], index: 8, kind: input, shape index: {}]
  %s9 = inlined_call_operand.vmem [shape: f32[1,64], index: 9, kind: input, shape index: {}]
  %s10 = inlined_call_operand.hbm [shape: bf16[32,32], index: 10, kind: input, shape index: {}]
  %s11 = inlined_call_operand.vmem [shape: f32[1,32], index: 11, kind: input, shape index: {}]
  %s12 = inlined_call_operand.hbm [shape: bf16[32,64], index: 12, kind: input, shape index: {}]
  %s13 = inlined_call_operand.vmem [shape: f32[1,64], index: 13, kind: input, shape index: {}]
  %s14 = inlined_call_operand.vmem [shape: bf16[64,32], index: 14, kind: input, shape index: {}]
  %s15 = inlined_call_operand.vmem [shape: f32[1,32], index: 15, kind: input, shape index: {}]
  %s16 = inlined_call_operand.vmem [shape: f32[1,32], index: 16, kind: input, shape index: {}]
  %s17 = inlined_call_operand.vmem [shape: f32[1,32], index: 17, kind: input, shape index: {}]
  %s18 = inlined_call_operand.vmem [shape: f32[1,32], index: 18, kind: input, shape index: {}]
  %s19 = inlined_call_operand.vmem [shape: f32[1,32], index: 19, kind: input, shape index: {}]
  %s20 = inlined_call_operand.vmem [shape: f32[1,32], index: 20, kind: input, shape index: {}]
  %s21 = inlined_call_operand.vmem [shape: f32[1,32], index: 21, kind: input, shape index: {}]
  %s22 = inlined_call_operand.hbm [shape: f32[2,8,32], index: 22, kind: output, shape index: {}]
  %s23 = sld [smem:[#allocation0]]
  $region145: #{tpu_custom_call.1} parent=0
    _
  %s25 = ssub.s32 1, %s23
  %s26 = scalar_select 0, %s25, %s23
  $region1: #{tpu_custom_call.1} parent=0
    #allocation2 [shape = 'u8[8192]{0}', space=vmem, size = 0x2000, scoped, tag = 'input window, operand 2, single buffered']
    #allocation3 [shape = 's32[2]{0}', space=sflag, size = 0x8, scoped, tag = 'scoped memory for tpu_custom_call.1']
    #allocation4 [shape = 's32[2]{0}', space=sflag, size = 0x8, scoped, tag = 'scoped memory for tpu_custom_call.1']
    #allocation5 [shape = 'u8[8192]{0}', space=vmem, size = 0x2000, scoped, tag = 'input window, operand 4, single buffered']
    #allocation6 [shape = 's32[1]{0}', space=sflag, size = 0x4, scoped, tag = 'scoped memory for tpu_custom_call.1']
    #allocation7 [shape = 'u8[8192]{0}', space=vmem, size = 0x2000, scoped, tag = 'input window, operand 6, single buffered']
    #allocation8 [shape = 'u8[8192]{0}', space=vmem, size = 0x2000, scoped, tag = 'input window, operand 8, single buffered']
    #allocation9 [shape = 's32[1]{0}', space=sflag, size = 0x4, scoped, tag = 'scoped memory for tpu_custom_call.1']
    #allocation10 [shape = 'u8[8192]{0}', space=vmem, size = 0x2000, scoped, tag = 'input window, operand 10, single buffered']
    #allocation11 [shape = 'u8[8192]{0}', space=vmem, size = 0x2000, scoped, tag = 'input window, operand 12, single buffered']
    #allocation12 [shape = 's32[1]{0}', space=sflag, size = 0x4, scoped, tag = 'scoped memory for tpu_custom_call.1']
    #allocation13 [shape = 'u8[8192]{0}', space=vmem, size = 0x2000, scoped, tag = 'output window, operand 0']
    %27 = vsyncpa [#allocation3], 0
    %28 = vsyncpa [#allocation6], 0
    %29 = vsyncpa [#allocation9], 0
    %30 = vsyncpa [#allocation12], 0
    %31 = vsyncpa [#allocation4], 0
    %s32 = scalar_lea.sflag [#allocation4], 1
    %33 = vsyncpa %s32, 0
    loop: start=0, step=1, limit=4
    $region2: #{tpu_custom_call.1} parent=1 // loop_pre_header
      _
    $region3: #{tpu_custom_call.1} parent=1 // loop_header
      %s35 = sphi 0, %s39
      %p36 = scmp.ge.s32.totalorder %s35, 4
      %s42 = sphi 0, %s54
      %s43 = sphi 0, %s50
      %s44 = sphi 0, %s42
      %s45 = sphi 0, %s43
      %s46 = sphi 0, %s44
      %s47 = sphi 0, %s45
      %s57 = sphi 0, %s59
      %s60 = sphi 0, %s57
      %s61 = sphi 0, %s60
      %s77 = sphi 0, %s61
      %s83 = sphi 0, %s85
      %s86 = sphi 0, %s83
      %s87 = sphi 0, %s86
      %s103 = sphi 0, %s87
      %s107 = sphi 0, %s107
      %s109 = sphi 0, %s107
      %s110 = sphi 0, %s109
      %s124 = sphi 0, %s110
      %s128 = sphi 0, %s128
      %s130 = sphi 0, %s128
      %s131 = sphi 0, %s130
      %s145 = sphi 0, %s131
      %s149 = sphi 0, %s149
      %s151 = sphi 0, %s149
      %s152 = sphi 0, %s151
      %s166 = sphi 0, %s152
      %s170 = sphi 0, %s170
      %s172 = sphi 0, %s170
      %s173 = sphi 0, %s172
      %s187 = sphi 0, %s173
      %s191 = sphi 0, %s191
      %s193 = sphi 0, %s191
      %s194 = sphi 0, %s193
      %s208 = sphi 0, %s194
      %s212 = sphi 0, %s212
      %s214 = sphi 0, %s212
      %s215 = sphi 0, %s214
      %s229 = sphi 0, %s215
      %s233 = sphi 0, %s233
      %s235 = sphi 0, %s233
      %s236 = sphi 0, %s235
      %s250 = sphi 0, %s236
      %s254 = sphi 0, %s254
      %s256 = sphi 0, %s254
      %s257 = sphi 0, %s256
      %s271 = sphi 0, %s257
      %s275 = sphi 0, %s275
      %s277 = sphi 0, %s275
      %s278 = sphi 0, %s277
      %s292 = sphi 0, %s278
      %s296 = sphi 0, %s296
      %s298 = sphi 0, %s296
      %s299 = sphi 0, %s298
      %s313 = sphi 0, %s299
      %s317 = sphi 0, %s317
      %s319 = sphi 0, %s317
      %s320 = sphi 0, %s319
      %s334 = sphi 0, %s320
      %s338 = sphi 0, %s338
      %s340 = sphi 0, %s338
      %s341 = sphi 0, %s340
      %s355 = sphi 0, %s341
      %s359 = sphi 0, %s359
      %s361 = sphi 0, %s359
      %s362 = sphi 0, %s361
      %s376 = sphi 0, %s362
      %s380 = sphi 0, %s380
      %s382 = sphi 0, %s380
      %s383 = sphi 0, %s382
      %s397 = sphi 0, %s383
      %s401 = sphi 0, %s401
      %s403 = sphi 0, %s401
      %s404 = sphi 0, %s403
      %s418 = sphi 0, %s404
      %s422 = sphi 0, %s422
      %s424 = sphi 0, %s422
      %s425 = sphi 0, %s424
      %s439 = sphi 0, %s425
      %s443 = sphi 0, %s443
      %s445 = sphi 0, %s443
      %s446 = sphi 0, %s445
      %s460 = sphi 0, %s446
      %s464 = sphi 0, %s464
      %s466 = sphi 0, %s464
      %s467 = sphi 0, %s466
      %s481 = sphi 0, %s467
      %s485 = sphi 0, %s485
      %s487 = sphi 0, %s485
      %s488 = sphi 0, %s487
      %s502 = sphi 0, %s488
      %s506 = sphi 0, %s506
      %s508 = sphi 0, %s506
      %s509 = sphi 0, %s508
      %s523 = sphi 0, %s509
      %s531 = sphi 0, %s533
      %s534 = sphi 0, %s531
      %s535 = sphi 0, %s534
      %s551 = sphi 0, %s535
    $region4: #{tpu_custom_call.1} parent=1 // loop_header_branch
      %38 = sbr.rel (%p36) target = $region8
    $region5: #{tpu_custom_call.1} parent=1 // loop_body
      %s40 = ssub.s32 %s35, 1
      %s41 = ssub.s32 %s35, 2
      %s48 = sadd.s32 1, %s43
      %p49 = scmp.ge.s32.totalorder %s48, 1
      %s50 = scalar_select %p49, 0, %s48
      %s51 = sadd.s32 1, %s42
      %s52 = scalar_select %p49, %s51, %s42
      %p53 = scmp.ge.s32.totalorder %s52, 2
      %s54 = scalar_select %p53, 0, %s52
      %s55 = ssub.s32 %s42, %s54
      %p56 = scmp.eq.s32.totalorder %s55, 0
      %s58 = sadd.s32 %s57, 1
      %s59 = scalar_select %p56, %s57, %s58
      %p62 = pneg %p56
      %p63 = scmp.eq.s32.totalorder %s35, 1
      %p64 = por %p62, %p63
      %p65 = scmp.ne.s32.totalorder %s57, %s60
      %p66 = scmp.eq.s32.totalorder %s35, 0
      %p67 = por %p65, %p66
      %p68 = scmp.ne.s32.totalorder %s57, %s60
      %p69 = scmp.eq.s32.totalorder %s40, 1
      %p70 = por %p68, %p69
      %p71 = scmp.ne.s32.totalorder %s60, %s61
      %p72 = scmp.eq.s32.totalorder %s40, 0
      %p73 = por %p71, %p72
      %p74 = scmp.ne.s32.totalorder %s60, %s61
      %p75 = scmp.eq.s32.totalorder %s41, 1
      %p76 = por %p74, %p75
      %p78 = scmp.ne.s32.totalorder %s61, %s77
      %p79 = scmp.eq.s32.totalorder %s41, 0
      %p80 = por %p78, %p79
      %s81 = ssub.s32 %s42, %s54
      %p82 = scmp.eq.s32.totalorder %s81, 0
      %s84 = sadd.s32 %s83, 1
      %s85 = scalar_select %p82, %s83, %s84
      %p88 = pneg %p82
      %p89 = scmp.eq.s32.totalorder %s35, 1
      %p90 = por %p88, %p89
      %p91 = scmp.ne.s32.totalorder %s83, %s86
      %p92 = scmp.eq.s32.totalorder %s35, 0
      %p93 = por %p91, %p92
      %p94 = scmp.ne.s32.totalorder %s83, %s86
      %p95 = scmp.eq.s32.totalorder %s40, 1
      %p96 = por %p94, %p95
      %p97 = scmp.ne.s32.totalorder %s86, %s87
      %p98 = scmp.eq.s32.totalorder %s40, 0
      %p99 = por %p97, %p98
      %p100 = scmp.ne.s32.totalorder %s86, %s87
      %p101 = scmp.eq.s32.totalorder %s41, 1
      %p102 = por %p100, %p101
      %p104 = scmp.ne.s32.totalorder %s87, %s103
      %p105 = scmp.eq.s32.totalorder %s41, 0
      %p106 = por %p104, %p105
      %s108 = sadd.s32 %s107, 1
      %p111 = scmp.eq.s32.totalorder %s35, 1
      %p112 = scmp.ne.s32.totalorder %s107, %s109
      %p113 = scmp.eq.s32.totalorder %s35, 0
      %p114 = por %p112, %p113
      %p115 = scmp.ne.s32.totalorder %s107, %s109
      %p116 = scmp.eq.s32.totalorder %s40, 1
      %p117 = por %p115, %p116
      %p118 = scmp.ne.s32.totalorder %s109, %s110
      %p119 = scmp.eq.s32.totalorder %s40, 0
      %p120 = por %p118, %p119
      %p121 = scmp.ne.s32.totalorder %s109, %s110
      %p122 = scmp.eq.s32.totalorder %s41, 1
      %p123 = por %p121, %p122
      %p125 = scmp.ne.s32.totalorder %s110, %s124
      %p126 = scmp.eq.s32.totalorder %s41, 0
      %p127 = por %p125, %p126
      %s129 = sadd.s32 %s128, 1
      %p132 = scmp.eq.s32.totalorder %s35, 1
      %p133 = scmp.ne.s32.totalorder %s128, %s130
      %p134 = scmp.eq.s32.totalorder %s35, 0
      %p135 = por %p133, %p134
      %p136 = scmp.ne.s32.totalorder %s128, %s130
      %p137 = scmp.eq.s32.totalorder %s40, 1
      %p138 = por %p136, %p137
      %p139 = scmp.ne.s32.totalorder %s130, %s131
      %p140 = scmp.eq.s32.totalorder %s40, 0
      %p141 = por %p139, %p140
      %p142 = scmp.ne.s32.totalorder %s130, %s131
      %p143 = scmp.eq.s32.totalorder %s41, 1
      %p144 = por %p142, %p143
      %p146 = scmp.ne.s32.totalorder %s131, %s145
      %p147 = scmp.eq.s32.totalorder %s41, 0
      %p148 = por %p146, %p147
      %s150 = sadd.s32 %s149, 1
      %p153 = scmp.eq.s32.totalorder %s35, 1
      %p154 = scmp.ne.s32.totalorder %s149, %s151
      %p155 = scmp.eq.s32.totalorder %s35, 0
      %p156 = por %p154, %p155
      %p157 = scmp.ne.s32.totalorder %s149, %s151
      %p158 = scmp.eq.s32.totalorder %s40, 1
      %p159 = por %p157, %p158
      %p160 = scmp.ne.s32.totalorder %s151, %s152
      %p161 = scmp.eq.s32.totalorder %s40, 0
      %p162 = por %p160, %p161
      %p163 = scmp.ne.s32.totalorder %s151, %s152
      %p164 = scmp.eq.s32.totalorder %s41, 1
      %p165 = por %p163, %p164
      %p167 = scmp.ne.s32.totalorder %s152, %s166
      %p168 = scmp.eq.s32.totalorder %s41, 0
      %p169 = por %p167, %p168
      %s171 = sadd.s32 %s170, 1
      %p174 = scmp.eq.s32.totalorder %s35, 1
      %p175 = scmp.ne.s32.totalorder %s170, %s172
      %p176 = scmp.eq.s32.totalorder %s35, 0
      %p177 = por %p175, %p176
      %p178 = scmp.ne.s32.totalorder %s170, %s172
      %p179 = scmp.eq.s32.totalorder %s40, 1
      %p180 = por %p178, %p179
      %p181 = scmp.ne.s32.totalorder %s172, %s173
      %p182 = scmp.eq.s32.totalorder %s40, 0
      %p183 = por %p181, %p182
      %p184 = scmp.ne.s32.totalorder %s172, %s173
      %p185 = scmp.eq.s32.totalorder %s41, 1
      %p186 = por %p184, %p185
      %p188 = scmp.ne.s32.totalorder %s173, %s187
      %p189 = scmp.eq.s32.totalorder %s41, 0
      %p190 = por %p188, %p189
      %s192 = sadd.s32 %s191, 1
      %p195 = scmp.eq.s32.totalorder %s35, 1
      %p196 = scmp.ne.s32.totalorder %s191, %s193
      %p197 = scmp.eq.s32.totalorder %s35, 0
      %p198 = por %p196, %p197
      %p199 = scmp.ne.s32.totalorder %s191, %s193
      %p200 = scmp.eq.s32.totalorder %s40, 1
      %p201 = por %p199, %p200
      %p202 = scmp.ne.s32.totalorder %s193, %s194
      %p203 = scmp.eq.s32.totalorder %s40, 0
      %p204 = por %p202, %p203
      %p205 = scmp.ne.s32.totalorder %s193, %s194
      %p206 = scmp.eq.s32.totalorder %s41, 1
      %p207 = por %p205, %p206
      %p209 = scmp.ne.s32.totalorder %s194, %s208
      %p210 = scmp.eq.s32.totalorder %s41, 0
      %p211 = por %p209, %p210
      %s213 = sadd.s32 %s212, 1
      %p216 = scmp.eq.s32.totalorder %s35, 1
      %p217 = scmp.ne.s32.totalorder %s212, %s214
      %p218 = scmp.eq.s32.totalorder %s35, 0
      %p219 = por %p217, %p218
      %p220 = scmp.ne.s32.totalorder %s212, %s214
      %p221 = scmp.eq.s32.totalorder %s40, 1
      %p222 = por %p220, %p221
      %p223 = scmp.ne.s32.totalorder %s214, %s215
      %p224 = scmp.eq.s32.totalorder %s40, 0
      %p225 = por %p223, %p224
      %p226 = scmp.ne.s32.totalorder %s214, %s215
      %p227 = scmp.eq.s32.totalorder %s41, 1
      %p228 = por %p226, %p227
      %p230 = scmp.ne.s32.totalorder %s215, %s229
      %p231 = scmp.eq.s32.totalorder %s41, 0
      %p232 = por %p230, %p231
      %s234 = sadd.s32 %s233, 1
      %p237 = scmp.eq.s32.totalorder %s35, 1
      %p238 = scmp.ne.s32.totalorder %s233, %s235
      %p239 = scmp.eq.s32.totalorder %s35, 0
      %p240 = por %p238, %p239
      %p241 = scmp.ne.s32.totalorder %s233, %s235
      %p242 = scmp.eq.s32.totalorder %s40, 1
      %p243 = por %p241, %p242
      %p244 = scmp.ne.s32.totalorder %s235, %s236
      %p245 = scmp.eq.s32.totalorder %s40, 0
      %p246 = por %p244, %p245
      %p247 = scmp.ne.s32.totalorder %s235, %s236
      %p248 = scmp.eq.s32.totalorder %s41, 1
      %p249 = por %p247, %p248
      %p251 = scmp.ne.s32.totalorder %s236, %s250
      %p252 = scmp.eq.s32.totalorder %s41, 0
      %p253 = por %p251, %p252
      %s255 = sadd.s32 %s254, 1
      %p258 = scmp.eq.s32.totalorder %s35, 1
      %p259 = scmp.ne.s32.totalorder %s254, %s256
      %p260 = scmp.eq.s32.totalorder %s35, 0
      %p261 = por %p259, %p260
      %p262 = scmp.ne.s32.totalorder %s254, %s256
      %p263 = scmp.eq.s32.totalorder %s40, 1
      %p264 = por %p262, %p263
      %p265 = scmp.ne.s32.totalorder %s256, %s257
      %p266 = scmp.eq.s32.totalorder %s40, 0
      %p267 = por %p265, %p266
      %p268 = scmp.ne.s32.totalorder %s256, %s257
      %p269 = scmp.eq.s32.totalorder %s41, 1
      %p270 = por %p268, %p269
      %p272 = scmp.ne.s32.totalorder %s257, %s271
      %p273 = scmp.eq.s32.totalorder %s41, 0
      %p274 = por %p272, %p273
      %s276 = sadd.s32 %s275, 1
      %p279 = scmp.eq.s32.totalorder %s35, 1
      %p280 = scmp.ne.s32.totalorder %s275, %s277
      %p281 = scmp.eq.s32.totalorder %s35, 0
      %p282 = por %p280, %p281
      %p283 = scmp.ne.s32.totalorder %s275, %s277
      %p284 = scmp.eq.s32.totalorder %s40, 1
      %p285 = por %p283, %p284
      %p286 = scmp.ne.s32.totalorder %s277, %s278
      %p287 = scmp.eq.s32.totalorder %s40, 0
      %p288 = por %p286, %p287
      %p289 = scmp.ne.s32.totalorder %s277, %s278
      %p290 = scmp.eq.s32.totalorder %s41, 1
      %p291 = por %p289, %p290
      %p293 = scmp.ne.s32.totalorder %s278, %s292
      %p294 = scmp.eq.s32.totalorder %s41, 0
      %p295 = por %p293, %p294
      %s297 = sadd.s32 %s296, 1
      %p300 = scmp.eq.s32.totalorder %s35, 1
      %p301 = scmp.ne.s32.totalorder %s296, %s298
      %p302 = scmp.eq.s32.totalorder %s35, 0
      %p303 = por %p301, %p302
      %p304 = scmp.ne.s32.totalorder %s296, %s298
      %p305 = scmp.eq.s32.totalorder %s40, 1
      %p306 = por %p304, %p305
      %p307 = scmp.ne.s32.totalorder %s298, %s299
      %p308 = scmp.eq.s32.totalorder %s40, 0
      %p309 = por %p307, %p308
      %p310 = scmp.ne.s32.totalorder %s298, %s299
      %p311 = scmp.eq.s32.totalorder %s41, 1
      %p312 = por %p310, %p311
      %p314 = scmp.ne.s32.totalorder %s299, %s313
      %p315 = scmp.eq.s32.totalorder %s41, 0
      %p316 = por %p314, %p315
      %s318 = sadd.s32 %s317, 1
      %p321 = scmp.eq.s32.totalorder %s35, 1
      %p322 = scmp.ne.s32.totalorder %s317, %s319
      %p323 = scmp.eq.s32.totalorder %s35, 0
      %p324 = por %p322, %p323
      %p325 = scmp.ne.s32.totalorder %s317, %s319
      %p326 = scmp.eq.s32.totalorder %s40, 1
      %p327 = por %p325, %p326
      %p328 = scmp.ne.s32.totalorder %s319, %s320
      %p329 = scmp.eq.s32.totalorder %s40, 0
      %p330 = por %p328, %p329
      %p331 = scmp.ne.s32.totalorder %s319, %s320
      %p332 = scmp.eq.s32.totalorder %s41, 1
      %p333 = por %p331, %p332
      %p335 = scmp.ne.s32.totalorder %s320, %s334
      %p336 = scmp.eq.s32.totalorder %s41, 0
      %p337 = por %p335, %p336
      %s339 = sadd.s32 %s338, 1
      %p342 = scmp.eq.s32.totalorder %s35, 1
      %p343 = scmp.ne.s32.totalorder %s338, %s340
      %p344 = scmp.eq.s32.totalorder %s35, 0
      %p345 = por %p343, %p344
      %p346 = scmp.ne.s32.totalorder %s338, %s340
      %p347 = scmp.eq.s32.totalorder %s40, 1
      %p348 = por %p346, %p347
      %p349 = scmp.ne.s32.totalorder %s340, %s341
      %p350 = scmp.eq.s32.totalorder %s40, 0
      %p351 = por %p349, %p350
      %p352 = scmp.ne.s32.totalorder %s340, %s341
      %p353 = scmp.eq.s32.totalorder %s41, 1
      %p354 = por %p352, %p353
      %p356 = scmp.ne.s32.totalorder %s341, %s355
      %p357 = scmp.eq.s32.totalorder %s41, 0
      %p358 = por %p356, %p357
      %s360 = sadd.s32 %s359, 1
      %p363 = scmp.eq.s32.totalorder %s35, 1
      %p364 = scmp.ne.s32.totalorder %s359, %s361
      %p365 = scmp.eq.s32.totalorder %s35, 0
      %p366 = por %p364, %p365
      %p367 = scmp.ne.s32.totalorder %s359, %s361
      %p368 = scmp.eq.s32.totalorder %s40, 1
      %p369 = por %p367, %p368
      %p370 = scmp.ne.s32.totalorder %s361, %s362
      %p371 = scmp.eq.s32.totalorder %s40, 0
      %p372 = por %p370, %p371
      %p373 = scmp.ne.s32.totalorder %s361, %s362
      %p374 = scmp.eq.s32.totalorder %s41, 1
      %p375 = por %p373, %p374
      %p377 = scmp.ne.s32.totalorder %s362, %s376
      %p378 = scmp.eq.s32.totalorder %s41, 0
      %p379 = por %p377, %p378
      %s381 = sadd.s32 %s380, 1
      %p384 = scmp.eq.s32.totalorder %s35, 1
      %p385 = scmp.ne.s32.totalorder %s380, %s382
      %p386 = scmp.eq.s32.totalorder %s35, 0
      %p387 = por %p385, %p386
      %p388 = scmp.ne.s32.totalorder %s380, %s382
      %p389 = scmp.eq.s32.totalorder %s40, 1
      %p390 = por %p388, %p389
      %p391 = scmp.ne.s32.totalorder %s382, %s383
      %p392 = scmp.eq.s32.totalorder %s40, 0
      %p393 = por %p391, %p392
      %p394 = scmp.ne.s32.totalorder %s382, %s383
      %p395 = scmp.eq.s32.totalorder %s41, 1
      %p396 = por %p394, %p395
      %p398 = scmp.ne.s32.totalorder %s383, %s397
      %p399 = scmp.eq.s32.totalorder %s41, 0
      %p400 = por %p398, %p399
      %s402 = sadd.s32 %s401, 1
      %p405 = scmp.eq.s32.totalorder %s35, 1
      %p406 = scmp.ne.s32.totalorder %s401, %s403
      %p407 = scmp.eq.s32.totalorder %s35, 0
      %p408 = por %p406, %p407
      %p409 = scmp.ne.s32.totalorder %s401, %s403
      %p410 = scmp.eq.s32.totalorder %s40, 1
      %p411 = por %p409, %p410
      %p412 = scmp.ne.s32.totalorder %s403, %s404
      %p413 = scmp.eq.s32.totalorder %s40, 0
      %p414 = por %p412, %p413
      %p415 = scmp.ne.s32.totalorder %s403, %s404
      %p416 = scmp.eq.s32.totalorder %s41, 1
      %p417 = por %p415, %p416
      %p419 = scmp.ne.s32.totalorder %s404, %s418
      %p420 = scmp.eq.s32.totalorder %s41, 0
      %p421 = por %p419, %p420
      %s423 = sadd.s32 %s422, 1
      %p426 = scmp.eq.s32.totalorder %s35, 1
      %p427 = scmp.ne.s32.totalorder %s422, %s424
      %p428 = scmp.eq.s32.totalorder %s35, 0
      %p429 = por %p427, %p428
      %p430 = scmp.ne.s32.totalorder %s422, %s424
      %p431 = scmp.eq.s32.totalorder %s40, 1
      %p432 = por %p430, %p431
      %p433 = scmp.ne.s32.totalorder %s424, %s425
      %p434 = scmp.eq.s32.totalorder %s40, 0
      %p435 = por %p433, %p434
      %p436 = scmp.ne.s32.totalorder %s424, %s425
      %p437 = scmp.eq.s32.totalorder %s41, 1
      %p438 = por %p436, %p437
      %p440 = scmp.ne.s32.totalorder %s425, %s439
      %p441 = scmp.eq.s32.totalorder %s41, 0
      %p442 = por %p440, %p441
      %s444 = sadd.s32 %s443, 1
      %p447 = scmp.eq.s32.totalorder %s35, 1
      %p448 = scmp.ne.s32.totalorder %s443, %s445
      %p449 = scmp.eq.s32.totalorder %s35, 0
      %p450 = por %p448, %p449
      %p451 = scmp.ne.s32.totalorder %s443, %s445
      %p452 = scmp.eq.s32.totalorder %s40, 1
      %p453 = por %p451, %p452
      %p454 = scmp.ne.s32.totalorder %s445, %s446
      %p455 = scmp.eq.s32.totalorder %s40, 0
      %p456 = por %p454, %p455
      %p457 = scmp.ne.s32.totalorder %s445, %s446
      %p458 = scmp.eq.s32.totalorder %s41, 1
      %p459 = por %p457, %p458
      %p461 = scmp.ne.s32.totalorder %s446, %s460
      %p462 = scmp.eq.s32.totalorder %s41, 0
      %p463 = por %p461, %p462
      %s465 = sadd.s32 %s464, 1
      %p468 = scmp.eq.s32.totalorder %s35, 1
      %p469 = scmp.ne.s32.totalorder %s464, %s466
      %p470 = scmp.eq.s32.totalorder %s35, 0
      %p471 = por %p469, %p470
      %p472 = scmp.ne.s32.totalorder %s464, %s466
      %p473 = scmp.eq.s32.totalorder %s40, 1
      %p474 = por %p472, %p473
      %p475 = scmp.ne.s32.totalorder %s466, %s467
      %p476 = scmp.eq.s32.totalorder %s40, 0
      %p477 = por %p475, %p476
      %p478 = scmp.ne.s32.totalorder %s466, %s467
      %p479 = scmp.eq.s32.totalorder %s41, 1
      %p480 = por %p478, %p479
      %p482 = scmp.ne.s32.totalorder %s467, %s481
      %p483 = scmp.eq.s32.totalorder %s41, 0
      %p484 = por %p482, %p483
      %s486 = sadd.s32 %s485, 1
      %p489 = scmp.eq.s32.totalorder %s35, 1
      %p490 = scmp.ne.s32.totalorder %s485, %s487
      %p491 = scmp.eq.s32.totalorder %s35, 0
      %p492 = por %p490, %p491
      %p493 = scmp.ne.s32.totalorder %s485, %s487
      %p494 = scmp.eq.s32.totalorder %s40, 1
      %p495 = por %p493, %p494
      %p496 = scmp.ne.s32.totalorder %s487, %s488
      %p497 = scmp.eq.s32.totalorder %s40, 0
      %p498 = por %p496, %p497
      %p499 = scmp.ne.s32.totalorder %s487, %s488
      %p500 = scmp.eq.s32.totalorder %s41, 1
      %p501 = por %p499, %p500
      %p503 = scmp.ne.s32.totalorder %s488, %s502
      %p504 = scmp.eq.s32.totalorder %s41, 0
      %p505 = por %p503, %p504
      %s507 = sadd.s32 %s506, 1
      %p510 = scmp.eq.s32.totalorder %s35, 1
      %p511 = scmp.ne.s32.totalorder %s506, %s508
      %p512 = scmp.eq.s32.totalorder %s35, 0
      %p513 = por %p511, %p512
      %p514 = scmp.ne.s32.totalorder %s506, %s508
      %p515 = scmp.eq.s32.totalorder %s40, 1
      %p516 = por %p514, %p515
      %p517 = scmp.ne.s32.totalorder %s508, %s509
      %p518 = scmp.eq.s32.totalorder %s40, 0
      %p519 = por %p517, %p518
      %p520 = scmp.ne.s32.totalorder %s508, %s509
      %p521 = scmp.eq.s32.totalorder %s41, 1
      %p522 = por %p520, %p521
      %p524 = scmp.ne.s32.totalorder %s509, %s523
      %p525 = scmp.eq.s32.totalorder %s41, 0
      %p526 = por %p524, %p525
      %s527 = ssub.s32 %s42, %s54
      %s528 = ssub.s32 %s43, %s50
      %s529 = sor.u32 %s527, %s528
      %p530 = scmp.eq.s32.totalorder %s529, 0
      %s532 = sadd.s32 %s531, 1
      %s533 = scalar_select %p530, %s531, %s532
      %p536 = pneg %p530
      %p537 = scmp.eq.s32.totalorder %s35, 1
      %p538 = por %p536, %p537
      %p539 = scmp.ne.s32.totalorder %s531, %s534
      %p540 = scmp.eq.s32.totalorder %s35, 0
      %p541 = por %p539, %p540
      %p542 = scmp.ne.s32.totalorder %s531, %s534
      %p543 = scmp.eq.s32.totalorder %s40, 1
      %p544 = por %p542, %p543
      %p545 = scmp.ne.s32.totalorder %s534, %s535
      %p546 = scmp.eq.s32.totalorder %s40, 0
      %p547 = por %p545, %p546
      %p548 = scmp.ne.s32.totalorder %s534, %s535
      %p549 = scmp.eq.s32.totalorder %s41, 1
      %p550 = por %p548, %p549
      %p552 = scmp.ne.s32.totalorder %s535, %s551
      %p553 = scmp.eq.s32.totalorder %s41, 0
      %p554 = por %p552, %p553
      %p555 = scmp.le.s32.totalorder 1, %s35
      %p556 = scmp.lt.s32.totalorder %s35, 3
      %p557 = pnand %p555, %p556
      %p558 = pneg %p557
      // Predicated region
      $region9: #{tpu_custom_call.1} parent=5 // pred_check
        _
      $region10: #{tpu_custom_call.1} parent=5 // pred_check_branch
        %560 = sbr.rel (%p557) target = $region12
      $region11: #{tpu_custom_call.1} parent=5 // pred_region
        %s561 = ssub.s32 %s35, 1
        // Predicated region
        $region13: #{tpu_custom_call.1} parent=11 // pred_check
          %p562 = pneg %p120
        $region14: #{tpu_custom_call.1} parent=11 // pred_check_branch
          %564 = sbr.rel (%p562) target = $region16
        $region15: #{tpu_custom_call.1} parent=11 // pred_region
          %s566 = ssub.s32 256, 256
          %567 = vsyncadd [#allocation3], %s566
          %s568 = sshll.u32 [#allocation2], 4
          %s569 = int_to_ptr.vmem [resolvable:$true] %s568
          %574 = dma.hbm_to_vmem [thread:$0]  %s2, 256, %s569, [#allocation3], 64, 64, 4
        $region16: #{tpu_custom_call.1} parent=11 // pred_fallthru
          _
        // Predicated region
        $region17: #{tpu_custom_call.1} parent=11 // pred_check
          %p575 = pneg %p141
        $region18: #{tpu_custom_call.1} parent=11 // pred_check_branch
          %577 = sbr.rel (%p575) target = $region20
        $region19: #{tpu_custom_call.1} parent=11 // pred_region
          _
        $region20: #{tpu_custom_call.1} parent=11 // pred_fallthru
          _
        // Predicated region
        $region21: #{tpu_custom_call.1} parent=11 // pred_check
          %p578 = pneg %p162
        $region22: #{tpu_custom_call.1} parent=11 // pred_check_branch
          %580 = sbr.rel (%p578) target = $region24
        $region23: #{tpu_custom_call.1} parent=11 // pred_region
          %s582 = ssub.s32 256, 256
          %583 = vsyncadd [#allocation6], %s582
          %s584 = sshll.u32 [#allocation5], 4
          %s585 = int_to_ptr.vmem [resolvable:$true] %s584
          %590 = dma.hbm_to_vmem [thread:$0]  %s4, 256, %s585, [#allocation6], 64, 64, 4
        $region24: #{tpu_custom_call.1} parent=11 // pred_fallthru
          _
        // Predicated region
        $region25: #{tpu_custom_call.1} parent=11 // pred_check
          %p591 = pneg %p183
        $region26: #{tpu_custom_call.1} parent=11 // pred_check_branch
          %593 = sbr.rel (%p591) target = $region28
        $region27: #{tpu_custom_call.1} parent=11 // pred_region
          _
        $region28: #{tpu_custom_call.1} parent=11 // pred_fallthru
          _
        // Predicated region
        $region29: #{tpu_custom_call.1} parent=11 // pred_check
          %p594 = pneg %p204
        $region30: #{tpu_custom_call.1} parent=11 // pred_check_branch
          %596 = sbr.rel (%p594) target = $region32
        $region31: #{tpu_custom_call.1} parent=11 // pred_region
          %s598 = ssub.s32 256, 256
          %599 = vsyncadd [#allocation6], %s598
          %s600 = sshll.u32 [#allocation7], 4
          %s601 = int_to_ptr.vmem [resolvable:$true] %s600
          %606 = dma.hbm_to_vmem [thread:$0]  %s6, 256, %s601, [#allocation6], 64, 64, 4
        $region32: #{tpu_custom_call.1} parent=11 // pred_fallthru
          _
        // Predicated region
        $region33: #{tpu_custom_call.1} parent=11 // pred_check
          %p607 = pneg %p225
        $region34: #{tpu_custom_call.1} parent=11 // pred_check_branch
          %609 = sbr.rel (%p607) target = $region36
        $region35: #{tpu_custom_call.1} parent=11 // pred_region
          _
        $region36: #{tpu_custom_call.1} parent=11 // pred_fallthru
          _
        // Predicated region
        $region37: #{tpu_custom_call.1} parent=11 // pred_check
          %p610 = pneg %p246
        $region38: #{tpu_custom_call.1} parent=11 // pred_check_branch
          %612 = sbr.rel (%p610) target = $region40
        $region39: #{tpu_custom_call.1} parent=11 // pred_region
          %s614 = ssub.s32 256, 256
          %615 = vsyncadd [#allocation9], %s614
          %s616 = sshll.u32 [#allocation8], 4
          %s617 = int_to_ptr.vmem [resolvable:$true] %s616
          %622 = dma.hbm_to_vmem [thread:$0]  %s8, 256, %s617, [#allocation9], 64, 64, 4
        $region40: #{tpu_custom_call.1} parent=11 // pred_fallthru
          _
        // Predicated region
        $region41: #{tpu_custom_call.1} parent=11 // pred_check
          %p623 = pneg %p267
        $region42: #{tpu_custom_call.1} parent=11 // pred_check_branch
          %625 = sbr.rel (%p623) target = $region44
        $region43: #{tpu_custom_call.1} parent=11 // pred_region
          _
        $region44: #{tpu_custom_call.1} parent=11 // pred_fallthru
          _
        // Predicated region
        $region45: #{tpu_custom_call.1} parent=11 // pred_check
          %p626 = pneg %p288
        $region46: #{tpu_custom_call.1} parent=11 // pred_check_branch
          %628 = sbr.rel (%p626) target = $region48
        $region47: #{tpu_custom_call.1} parent=11 // pred_region
          %s630 = ssub.s32 256, 256
          %631 = vsyncadd [#allocation9], %s630
          %s632 = sshll.u32 [#allocation10], 4
          %s633 = int_to_ptr.vmem [resolvable:$true] %s632
          %638 = dma.hbm_to_vmem [thread:$0]  %s10, 256, %s633, [#allocation9], 64, 64, 4
        $region48: #{tpu_custom_call.1} parent=11 // pred_fallthru
          _
        // Predicated region
        $region49: #{tpu_custom_call.1} parent=11 // pred_check
          %p639 = pneg %p309
        $region50: #{tpu_custom_call.1} parent=11 // pred_check_branch
          %641 = sbr.rel (%p639) target = $region52
        $region51: #{tpu_custom_call.1} parent=11 // pred_region
          _
        $region52: #{tpu_custom_call.1} parent=11 // pred_fallthru
          _
        // Predicated region
        $region53: #{tpu_custom_call.1} parent=11 // pred_check
          %p642 = pneg %p330
        $region54: #{tpu_custom_call.1} parent=11 // pred_check_branch
          %644 = sbr.rel (%p642) target = $region56
        $region55: #{tpu_custom_call.1} parent=11 // pred_region
          %s646 = ssub.s32 256, 256
          %647 = vsyncadd [#allocation12], %s646
          %s648 = sshll.u32 [#allocation11], 4
          %s649 = int_to_ptr.vmem [resolvable:$true] %s648
          %654 = dma.hbm_to_vmem [thread:$0]  %s12, 256, %s649, [#allocation12], 64, 64, 4
        $region56: #{tpu_custom_call.1} parent=11 // pred_fallthru
          _
        // Predicated region
        $region57: #{tpu_custom_call.1} parent=11 // pred_check
          %p655 = pneg %p351
        $region58: #{tpu_custom_call.1} parent=11 // pred_check_branch
          %657 = sbr.rel (%p655) target = $region60
        $region59: #{tpu_custom_call.1} parent=11 // pred_region
          _
        $region60: #{tpu_custom_call.1} parent=11 // pred_fallthru
          _
        // Predicated region
        $region61: #{tpu_custom_call.1} parent=11 // pred_check
          %p658 = pneg %p372
        $region62: #{tpu_custom_call.1} parent=11 // pred_check_branch
          %660 = sbr.rel (%p658) target = $region64
        $region63: #{tpu_custom_call.1} parent=11 // pred_region
          _
        $region64: #{tpu_custom_call.1} parent=11 // pred_fallthru
          _
        // Predicated region
        $region65: #{tpu_custom_call.1} parent=11 // pred_check
          %p661 = pneg %p393
        $region66: #{tpu_custom_call.1} parent=11 // pred_check_branch
          %663 = sbr.rel (%p661) target = $region68
        $region67: #{tpu_custom_call.1} parent=11 // pred_region
          _
        $region68: #{tpu_custom_call.1} parent=11 // pred_fallthru
          _
        // Predicated region
        $region69: #{tpu_custom_call.1} parent=11 // pred_check
          %p664 = pneg %p414
        $region70: #{tpu_custom_call.1} parent=11 // pred_check_branch
          %666 = sbr.rel (%p664) target = $region72
        $region71: #{tpu_custom_call.1} parent=11 // pred_region
          _
        $region72: #{tpu_custom_call.1} parent=11 // pred_fallthru
          _
        // Predicated region
        $region73: #{tpu_custom_call.1} parent=11 // pred_check
          %p667 = pneg %p435
        $region74: #{tpu_custom_call.1} parent=11 // pred_check_branch
          %669 = sbr.rel (%p667) target = $region76
        $region75: #{tpu_custom_call.1} parent=11 // pred_region
          _
        $region76: #{tpu_custom_call.1} parent=11 // pred_fallthru
          _
        // Predicated region
        $region77: #{tpu_custom_call.1} parent=11 // pred_check
          %p670 = pneg %p456
        $region78: #{tpu_custom_call.1} parent=11 // pred_check_branch
          %672 = sbr.rel (%p670) target = $region80
        $region79: #{tpu_custom_call.1} parent=11 // pred_region
          _
        $region80: #{tpu_custom_call.1} parent=11 // pred_fallthru
          _
        // Predicated region
        $region81: #{tpu_custom_call.1} parent=11 // pred_check
          %p673 = pneg %p477
        $region82: #{tpu_custom_call.1} parent=11 // pred_check_branch
          %675 = sbr.rel (%p673) target = $region84
        $region83: #{tpu_custom_call.1} parent=11 // pred_region
          _
        $region84: #{tpu_custom_call.1} parent=11 // pred_fallthru
          _
        // Predicated region
        $region85: #{tpu_custom_call.1} parent=11 // pred_check
          %p676 = pneg %p498
        $region86: #{tpu_custom_call.1} parent=11 // pred_check_branch
          %678 = sbr.rel (%p676) target = $region88
        $region87: #{tpu_custom_call.1} parent=11 // pred_region
          _
        $region88: #{tpu_custom_call.1} parent=11 // pred_fallthru
          _
        // Predicated region
        $region89: #{tpu_custom_call.1} parent=11 // pred_check
          %p679 = pneg %p519
        $region90: #{tpu_custom_call.1} parent=11 // pred_check_branch
          %681 = sbr.rel (%p679) target = $region92
        $region91: #{tpu_custom_call.1} parent=11 // pred_region
          _
        $region92: #{tpu_custom_call.1} parent=11 // pred_fallthru
          _
      $region12: #{tpu_custom_call.1} parent=5 // pred_fallthru
        _
      %p682 = scmp.lt.s32.totalorder %s35, 2
      // Predicated region
      $region93: #{tpu_custom_call.1} parent=5 // pred_check
        %p683 = pneg %p682
      $region94: #{tpu_custom_call.1} parent=5 // pred_check_branch
        %685 = sbr.rel (%p683) target = $region96
      $region95: #{tpu_custom_call.1} parent=5 // pred_region
        // Predicated region
        $region97: #{tpu_custom_call.1} parent=95 // pred_check
          %p686 = pneg %p67
        $region98: #{tpu_custom_call.1} parent=95 // pred_check_branch
          %688 = sbr.rel (%p686) target = $region100
        $region99: #{tpu_custom_call.1} parent=95 // pred_region
          %p689 = scmp.lt.s32.totalorder %s42, 1
          %s690 = scalar_select %p689, %s42, 1
          %s691 = smul.addr %s690, 8
          %s692 = scalar_lea.vmem %s0, %s691
        $region100: #{tpu_custom_call.1} parent=95 // pred_fallthru
          _
        // Predicated region
        $region101: #{tpu_custom_call.1} parent=95 // pred_check
          %p693 = pneg %p93
        $region102: #{tpu_custom_call.1} parent=95 // pred_check_branch
          %695 = sbr.rel (%p693) target = $region104
        $region103: #{tpu_custom_call.1} parent=95 // pred_region
          %p696 = scmp.lt.s32.totalorder %s42, 1
          %s697 = scalar_select %p696, %s42, 1
          %s698 = smul.addr %s697, 2
          %s699 = smul.addr %s698, 8
          %s700 = scalar_lea.vmem %s1, %s699
        $region104: #{tpu_custom_call.1} parent=95 // pred_fallthru
          _
      $region96: #{tpu_custom_call.1} parent=5 // pred_fallthru
        _
      %p701 = scmp.le.s32.totalorder 1, %s35
      %p702 = scmp.lt.s32.totalorder %s35, 3
      %p703 = pnand %p701, %p702
      %p704 = pneg %p703
      // Predicated region
      $region105: #{tpu_custom_call.1} parent=5 // pred_check
        _
      $region106: #{tpu_custom_call.1} parent=5 // pred_check_branch
        %706 = sbr.rel (%p703) target = $region108
      $region107: #{tpu_custom_call.1} parent=5 // pred_region
        %s707 = ssub.s32 %s35, 1
        // Predicated region
        $region109: #{tpu_custom_call.1} parent=107 // pred_check
          %p708 = pneg %p120
        $region110: #{tpu_custom_call.1} parent=107 // pred_check_branch
          %710 = sbr.rel (%p708) target = $region112
        $region111: #{tpu_custom_call.1} parent=107 // pred_region
          %711 = dma.done [#allocation3], 256
        $region112: #{tpu_custom_call.1} parent=107 // pred_fallthru
          _
        // Predicated region
        $region113: #{tpu_custom_call.1} parent=107 // pred_check
          %p712 = pneg %p162
        $region114: #{tpu_custom_call.1} parent=107 // pred_check_branch
          %714 = sbr.rel (%p712) target = $region116
        $region115: #{tpu_custom_call.1} parent=107 // pred_region
          %715 = dma.done [#allocation6], 256
        $region116: #{tpu_custom_call.1} parent=107 // pred_fallthru
          _
        // Predicated region
        $region117: #{tpu_custom_call.1} parent=107 // pred_check
          %p716 = pneg %p204
        $region118: #{tpu_custom_call.1} parent=107 // pred_check_branch
          %718 = sbr.rel (%p716) target = $region120
        $region119: #{tpu_custom_call.1} parent=107 // pred_region
          %719 = dma.done [#allocation6], 256
        $region120: #{tpu_custom_call.1} parent=107 // pred_fallthru
          _
        // Predicated region
        $region121: #{tpu_custom_call.1} parent=107 // pred_check
          %p720 = pneg %p246
        $region122: #{tpu_custom_call.1} parent=107 // pred_check_branch
          %722 = sbr.rel (%p720) target = $region124
        $region123: #{tpu_custom_call.1} parent=107 // pred_region
          %723 = dma.done [#allocation9], 256
        $region124: #{tpu_custom_call.1} parent=107 // pred_fallthru
          _
        // Predicated region
        $region125: #{tpu_custom_call.1} parent=107 // pred_check
          %p724 = pneg %p288
        $region126: #{tpu_custom_call.1} parent=107 // pred_check_branch
          %726 = sbr.rel (%p724) target = $region128
        $region127: #{tpu_custom_call.1} parent=107 // pred_region
          %727 = dma.done [#allocation9], 256
        $region128: #{tpu_custom_call.1} parent=107 // pred_fallthru
          _
        // Predicated region
        $region129: #{tpu_custom_call.1} parent=107 // pred_check
          %p728 = pneg %p330
        $region130: #{tpu_custom_call.1} parent=107 // pred_check_branch
          %730 = sbr.rel (%p728) target = $region132
        $region131: #{tpu_custom_call.1} parent=107 // pred_region
          %731 = dma.done [#allocation12], 256
        $region132: #{tpu_custom_call.1} parent=107 // pred_fallthru
          _
        %p732 = scmp.lt.s32.totalorder %s44, 1
        %s733 = scalar_select %p732, %s44, 1
        %s734 = smul.addr %s733, 8
        %s735 = scalar_lea.vmem %s0, %s734
        %p736 = pneg %p73
        %p737 = pneg %p70
        %p738 = scmp.lt.s32.totalorder %s44, 1
        %s739 = scalar_select %p738, %s44, 1
        %s740 = smul.addr %s739, 2
        %s741 = smul.addr %s740, 8
        %s742 = scalar_lea.vmem %s1, %s741
        %p743 = pneg %p99
        %p744 = pneg %p96
        %p745 = pneg %p120
        %p746 = pneg %p117
        %p747 = pneg %p141
        %p748 = pneg %p138
        %p749 = pneg %p162
        %p750 = pneg %p159
        %p751 = pneg %p183
        %p752 = pneg %p180
        %p753 = pneg %p204
        %p754 = pneg %p201
        %p755 = pneg %p225
        %p756 = pneg %p222
        %p757 = pneg %p246
        %p758 = pneg %p243
        %p759 = pneg %p267
        %p760 = pneg %p264
        %p761 = pneg %p288
        %p762 = pneg %p285
        %p763 = pneg %p309
        %p764 = pneg %p306
        %p765 = pneg %p330
        %p766 = pneg %p327
        %p767 = pneg %p351
        %p768 = pneg %p348
        %p769 = pneg %p372
        %p770 = pneg %p369
        %p771 = pneg %p393
        %p772 = pneg %p390
        %p773 = pneg %p414
        %p774 = pneg %p411
        %p775 = pneg %p435
        %p776 = pneg %p432
        %p777 = pneg %p456
        %p778 = pneg %p453
        %p779 = pneg %p477
        %p780 = pneg %p474
        %p781 = pneg %p498
        %p782 = pneg %p495
        %p783 = pneg %p519
        %p784 = pneg %p516
        %p785 = pneg %p547
        %p786 = pneg %p544
        %s787 = sand.u32 %s534, 1
        %s788 = scalar_lea.sflag [#allocation4], %s787
        %s789 = sand.u32 %s534, 1
        %s790 = smul.addr %s789, 8
        %s791 = scalar_lea.vmem [#allocation13], %s790
        %p792 = scmp.lt.s32.totalorder %s44, 1
        %s793 = scalar_select %p792, %s44, 1
        %s794 = smul.addr %s793, 8
        %s795 = scalar_lea.vmem %s0, %s794
        %p796 = scmp.lt.s32.totalorder %s44, 1
        %s797 = scalar_select %p796, %s44, 1
        %s798 = smul.addr %s797, 2
        %s799 = smul.addr %s798, 8
        %s800 = scalar_lea.vmem %s1, %s799
        %v802 = vld [vmem:[%s795] sm:$0xff]
        %v803 = vld [vmem:[%s800] sm:$0xff]
        %v804 = vld [vmem:[%s800 + $0x8] sm:$0xff]
        %v805 = vpack.c.bf16 %v802, %v802
        %v806 = vld [vmem:[#allocation2] sm:$0xf]
        %v807 = vld [vmem:[#allocation2 + $0x4] sm:$0xf]
        %v808 = vld [vmem:[#allocation2 + $0x8] sm:$0xf]
        %v809 = vld [vmem:[#allocation2 + $0xc] sm:$0xf]
        %v810 = vld [vmem:[%s3] sm:$0x1]
        %v812 = vlaneseq
        %v813 = vshrl.u32 %v812, 7
        %v814 = vsub.s32 0, %v813
        %v815 = vrot.slane %v810, %v814
        %v821 = vunpack.c.l.b16 %v806
        %v822 = vunpack.c.l.b16 %v807
        %v823 = vunpack.c.l.b16 %v808
        %v824 = vunpack.c.l.b16 %v809
        %v825 = vpack.c.b16 %v822, %v821
        %v826 = vpack.c.b16 %v824, %v823
        %vm829 = vcmask 261120
        %v831 = vsel %vm829, %v805, 0
        %833 = vmatprep.subr.bf16.mxu0 0
        %834 = vmatpush1.bf16.msra.mxu0 0
        %835 = vmatprep.subr.bf16.mxu0 0
        %836 = vmatpush1.bf16.msra.mxu0 0
        %837 = vmatprep.subr.bf16.mxu0 0
        %838 = vmatpush1.bf16.msra.mxu0 0
        %839 = vmatprep.subr.bf16.mxu0 0
        %840 = vmatpush1.bf16.msra.mxu0 0
        %841 = vmatprep.subr.bf16.mxu0 0
        %842 = vmatpush1.bf16.msra.mxu0 0
        %843 = vmatprep.subr.bf16.mxu0 0
        %844 = vmatpush1.bf16.msra.mxu0 0
        %845 = vmatprep.subr.bf16.mxu0 0
        %846 = vmatpush1.bf16.msra.mxu0 %v826
        %847 = vmatprep.subr.bf16.mxu0 0
        %848 = vmatpush1.bf16.msra.mxu0 %v825
        %849 = vmatprep.subr.bf16.mxu0 0
        %850 = vmatpush2.bf16.msra.mxu0 0
        %851 = vmatprep.subr.bf16.mxu0 0
        %852 = vmatpush2.bf16.msra.mxu0 0
        %853 = vmatprep.subr.bf16.mxu0 0
        %854 = vmatpush2.bf16.msra.mxu0 0
        %855 = vmatprep.subr.bf16.mxu0 0
        %856 = vmatpush2.bf16.msra.mxu0 0
        %857 = vmatprep.subr.bf16.mxu0 0
        %858 = vmatpush2.bf16.msra.mxu0 0
        %859 = vmatprep.subr.bf16.mxu0 0
        %860 = vmatpush2.bf16.msra.mxu0 0
        %861 = vmatprep.subr.bf16.mxu0 0
        %862 = vmatpush2.bf16.msra.mxu0 0
        %863 = vmatprep.subr.bf16.mxu0 0
        %864 = vmatpush2.bf16.msra.mxu0 0
        %865 = vmatprep.mubr.bf16.mxu0 0
        %866 = vmatmul.mubr.bf16.gmra.mxu0 %v831
        %v867 = vpop.f32.mrf.mxu0
        %v868 = vadd.f32 %v815, %v867
        %v869 = vpop.f32.mrf.mxu0
        %v870 = vpop.f32.mrf.mxu0
        %v871 = vpop.f32.mrf.mxu0
        %872 = vdwg.mxu0
        %874 = vrot.lane.b32.xlu0 %v868, 112
        %v875 = vpop.permute.xlu0 %874
        %v877 = vcombine.high %v868, 0.0
        %v879 = vunpack.c.l.s4 1983009808
        %v880 = vunpack.c.0.s8 %v879
        %v881 = vlaneseq
        %v882 = vshrl.u32 %v881, 7
        %v883 = vsub.s32 %v880, %v882
        %v884 = vrot.slane %v868, %v883
        %v886 = vunpack.c.l.s4 1983009808
        %v887 = vunpack.c.0.s8 %v886
        %v888 = vlaneseq
        %v889 = vshrl.u32 %v888, 7
        %v890 = vsub.s32 %v887, %v889
        %v891 = vrot.slane %v877, %v890
        %v892 = vcombine.high %v875, 0.0
        %v894 = vunpack.c.l.s4 1983009808
        %v895 = vunpack.c.0.s8 %v894
        %v896 = vlaneseq
        %v897 = vshrl.u32 %v896, 7
        %v898 = vsub.s32 %v895, %v897
        %v899 = vrot.slane %v875, %v898
        %v901 = vunpack.c.l.s4 1983009808
        %v902 = vunpack.c.0.s8 %v901
        %v903 = vlaneseq
        %v904 = vshrl.u32 %v903, 7
        %v905 = vsub.s32 %v902, %v904
        %v906 = vrot.slane %v892, %v905
        %v907 = vcombine.low %v884, %v899
        %v908 = vcombine.high %v884, %v899
        %v910 = vunpack.c.l.s4 1934713408
        %v911 = vunpack.c.0.s8 %v910
        %v912 = vlaneseq
        %v913 = vshrl.u32 %v912, 7
        %v914 = vsub.s32 %v911, %v913
        %v915 = vrot.slane %v907, %v914
        %v917 = vunpack.c.l.s4 1934713408
        %v918 = vunpack.c.0.s8 %v917
        %v919 = vlaneseq
        %v920 = vshrl.u32 %v919, 7
        %v921 = vsub.s32 %v918, %v920
        %v922 = vrot.slane %v908, %v921
        %v923 = vcombine.low %v891, %v906
        %v924 = vcombine.high %v891, %v906
        %v926 = vunpack.c.l.s4 1934713408
        %v927 = vunpack.c.0.s8 %v926
        %v928 = vlaneseq
        %v929 = vshrl.u32 %v928, 7
        %v930 = vsub.s32 %v927, %v929
        %v931 = vrot.slane %v923, %v930
        %v933 = vunpack.c.l.s4 1934713408
        %v934 = vunpack.c.0.s8 %v933
        %v935 = vlaneseq
        %v936 = vshrl.u32 %v935, 7
        %v937 = vsub.s32 %v934, %v936
        %v938 = vrot.slane %v924, %v937
        %v939 = vcombine.high %v915, 0.0
        %v940 = vcombine.high %v922, 0.0
        %v941 = vcombine.high %v931, 0.0
        %v942 = vcombine.high %v938, 0.0
        %v943 = vcombine.low %v915, %v922
        %v945 = vunpack.c.l.s4 1983009808
        %v946 = vunpack.c.0.s8 %v945
        %v947 = vlaneseq
        %v948 = vshrl.u32 %v947, 7
        %v949 = vsub.s32 %v946, %v948
        %v950 = vrot.slane %v943, %v949
        %v951 = vcombine.low %v939, %v940
        %v953 = vunpack.c.l.s4 1983009808
        %v954 = vunpack.c.0.s8 %v953
        %v955 = vlaneseq
        %v956 = vshrl.u32 %v955, 7
        %v957 = vsub.s32 %v954, %v956
        %v958 = vrot.slane %v951, %v957
        %v959 = vcombine.low %v931, %v938
        %v961 = vunpack.c.l.s4 1983009808
        %v962 = vunpack.c.0.s8 %v961
        %v963 = vlaneseq
        %v964 = vshrl.u32 %v963, 7
        %v965 = vsub.s32 %v962, %v964
        %v966 = vrot.slane %v959, %v965
        %v967 = vcombine.low %v941, %v942
        %v969 = vunpack.c.l.s4 1983009808
        %v970 = vunpack.c.0.s8 %v969
        %v971 = vlaneseq
        %v972 = vshrl.u32 %v971, 7
        %v973 = vsub.s32 %v970, %v972
        %v974 = vrot.slane %v967, %v973
        %v975 = vcombine.low %v950, %v958
        %v977 = vunpack.c.l.s4 1934713408
        %v978 = vunpack.c.0.s8 %v977
        %v979 = vlaneseq
        %v980 = vshrl.u32 %v979, 7
        %v981 = vsub.s32 %v978, %v980
        %v982 = vrot.slane %v975, %v981
        %v983 = vcombine.low %v966, %v974
        %v985 = vunpack.c.l.s4 1934713408
        %v986 = vunpack.c.0.s8 %v985
        %v987 = vlaneseq
        %v988 = vshrl.u32 %v987, 7
        %v989 = vsub.s32 %v986, %v988
        %v990 = vrot.slane %v983, %v989
        %v991 = vcombine.low %v982, %v990
        %v992 = vcombine.high %v982, %v990
        %v993 = vpack.c.bf16 %v991, %v991
        %v994 = vpack.c.bf16 %v992, %v992
        %995 = vrot.lane.b32.xlu0 %v868, 96
        %v996 = vpop.permute.xlu0 %995
        %997 = vrot.lane.b32.xlu0 %v875, 96
        %v998 = vpop.permute.xlu0 %997
        %v1001 = vcombine.high %v996, 0.0
        %v1003 = vunpack.c.l.s4 1983009808
        %v1004 = vunpack.c.0.s8 %v1003
        %v1005 = vlaneseq
        %v1006 = vshrl.u32 %v1005, 7
        %v1007 = vsub.s32 %v1004, %v1006
        %v1008 = vrot.slane %v996, %v1007
        %v1010 = vunpack.c.l.s4 1983009808
        %v1011 = vunpack.c.0.s8 %v1010
        %v1012 = vlaneseq
        %v1013 = vshrl.u32 %v1012, 7
        %v1014 = vsub.s32 %v1011, %v1013
        %v1015 = vrot.slane %v1001, %v1014
        %v1016 = vcombine.high %v998, 0.0
        %v1018 = vunpack.c.l.s4 1983009808
        %v1019 = vunpack.c.0.s8 %v1018
        %v1020 = vlaneseq
        %v1021 = vshrl.u32 %v1020, 7
        %v1022 = vsub.s32 %v1019, %v1021
        %v1023 = vrot.slane %v998, %v1022
        %v1025 = vunpack.c.l.s4 1983009808
        %v1026 = vunpack.c.0.s8 %v1025
        %v1027 = vlaneseq
        %v1028 = vshrl.u32 %v1027, 7
        %v1029 = vsub.s32 %v1026, %v1028
        %v1030 = vrot.slane %v1016, %v1029
        %v1031 = vcombine.low %v1008, %v1023
        %v1032 = vcombine.high %v1008, %v1023
        %v1034 = vunpack.c.l.s4 1934713408
        %v1035 = vunpack.c.0.s8 %v1034
        %v1036 = vlaneseq
        %v1037 = vshrl.u32 %v1036, 7
        %v1038 = vsub.s32 %v1035, %v1037
        %v1039 = vrot.slane %v1031, %v1038
        %v1041 = vunpack.c.l.s4 1934713408
        %v1042 = vunpack.c.0.s8 %v1041
        %v1043 = vlaneseq
        %v1044 = vshrl.u32 %v1043, 7
        %v1045 = vsub.s32 %v1042, %v1044
        %v1046 = vrot.slane %v1032, %v1045
        %v1047 = vcombine.low %v1015, %v1030
        %v1048 = vcombine.high %v1015, %v1030
        %v1050 = vunpack.c.l.s4 1934713408
        %v1051 = vunpack.c.0.s8 %v1050
        %v1052 = vlaneseq
        %v1053 = vshrl.u32 %v1052, 7
        %v1054 = vsub.s32 %v1051, %v1053
        %v1055 = vrot.slane %v1047, %v1054
        %v1057 = vunpack.c.l.s4 1934713408
        %v1058 = vunpack.c.0.s8 %v1057
        %v1059 = vlaneseq
        %v1060 = vshrl.u32 %v1059, 7
        %v1061 = vsub.s32 %v1058, %v1060
        %v1062 = vrot.slane %v1048, %v1061
        %v1063 = vcombine.high %v1039, 0.0
        %v1064 = vcombine.high %v1046, 0.0
        %v1065 = vcombine.high %v1055, 0.0
        %v1066 = vcombine.high %v1062, 0.0
        %v1067 = vcombine.low %v1039, %v1046
        %v1069 = vunpack.c.l.s4 1983009808
        %v1070 = vunpack.c.0.s8 %v1069
        %v1071 = vlaneseq
        %v1072 = vshrl.u32 %v1071, 7
        %v1073 = vsub.s32 %v1070, %v1072
        %v1074 = vrot.slane %v1067, %v1073
        %v1075 = vcombine.low %v1063, %v1064
        %v1077 = vunpack.c.l.s4 1983009808
        %v1078 = vunpack.c.0.s8 %v1077
        %v1079 = vlaneseq
        %v1080 = vshrl.u32 %v1079, 7
        %v1081 = vsub.s32 %v1078, %v1080
        %v1082 = vrot.slane %v1075, %v1081
        %v1083 = vcombine.low %v1055, %v1062
        %v1085 = vunpack.c.l.s4 1983009808
        %v1086 = vunpack.c.0.s8 %v1085
        %v1087 = vlaneseq
        %v1088 = vshrl.u32 %v1087, 7
        %v1089 = vsub.s32 %v1086, %v1088
        %v1090 = vrot.slane %v1083, %v1089
        %v1091 = vcombine.low %v1065, %v1066
        %v1093 = vunpack.c.l.s4 1983009808
        %v1094 = vunpack.c.0.s8 %v1093
        %v1095 = vlaneseq
        %v1096 = vshrl.u32 %v1095, 7
        %v1097 = vsub.s32 %v1094, %v1096
        %v1098 = vrot.slane %v1091, %v1097
        %v1099 = vcombine.low %v1074, %v1082
        %v1101 = vunpack.c.l.s4 1934713408
        %v1102 = vunpack.c.0.s8 %v1101
        %v1103 = vlaneseq
        %v1104 = vshrl.u32 %v1103, 7
        %v1105 = vsub.s32 %v1102, %v1104
        %v1106 = vrot.slane %v1099, %v1105
        %v1107 = vcombine.low %v1090, %v1098
        %v1109 = vunpack.c.l.s4 1934713408
        %v1110 = vunpack.c.0.s8 %v1109
        %v1111 = vlaneseq
        %v1112 = vshrl.u32 %v1111, 7
        %v1113 = vsub.s32 %v1110, %v1112
        %v1114 = vrot.slane %v1107, %v1113
        %v1115 = vcombine.low %v1106, %v1114
        %v1116 = vcombine.high %v1106, %v1114
        %v1117 = vpack.c.bf16 %v1115, %v1115
        %v1118 = vpack.c.bf16 %v1116, %v1116
        %1119 = vrot.lane.b32.xlu0 %v868, 64
        %v1120 = vpop.permute.xlu0 %1119
        %1121 = vrot.lane.b32.xlu0 %v875, 64
        %v1122 = vpop.permute.xlu0 %1121
        %v1125 = vcombine.high %v1120, 0.0
        %v1127 = vunpack.c.l.s4 1983009808
        %v1128 = vunpack.c.0.s8 %v1127
        %v1129 = vlaneseq
        %v1130 = vshrl.u32 %v1129, 7
        %v1131 = vsub.s32 %v1128, %v1130
        %v1132 = vrot.slane %v1120, %v1131
        %v1134 = vunpack.c.l.s4 1983009808
        %v1135 = vunpack.c.0.s8 %v1134
        %v1136 = vlaneseq
        %v1137 = vshrl.u32 %v1136, 7
        %v1138 = vsub.s32 %v1135, %v1137
        %v1139 = vrot.slane %v1125, %v1138
        %v1140 = vcombine.high %v1122, 0.0
        %v1142 = vunpack.c.l.s4 1983009808
        %v1143 = vunpack.c.0.s8 %v1142
        %v1144 = vlaneseq
        %v1145 = vshrl.u32 %v1144, 7
        %v1146 = vsub.s32 %v1143, %v1145
        %v1147 = vrot.slane %v1122, %v1146
        %v1149 = vunpack.c.l.s4 1983009808
        %v1150 = vunpack.c.0.s8 %v1149
        %v1151 = vlaneseq
        %v1152 = vshrl.u32 %v1151, 7
        %v1153 = vsub.s32 %v1150, %v1152
        %v1154 = vrot.slane %v1140, %v1153
        %v1155 = vcombine.low %v1132, %v1147
        %v1156 = vcombine.high %v1132, %v1147
        %v1158 = vunpack.c.l.s4 1934713408
        %v1159 = vunpack.c.0.s8 %v1158
        %v1160 = vlaneseq
        %v1161 = vshrl.u32 %v1160, 7
        %v1162 = vsub.s32 %v1159, %v1161
        %v1163 = vrot.slane %v1155, %v1162
        %v1165 = vunpack.c.l.s4 1934713408
        %v1166 = vunpack.c.0.s8 %v1165
        %v1167 = vlaneseq
        %v1168 = vshrl.u32 %v1167, 7
        %v1169 = vsub.s32 %v1166, %v1168
        %v1170 = vrot.slane %v1156, %v1169
        %v1171 = vcombine.low %v1139, %v1154
        %v1172 = vcombine.high %v1139, %v1154
        %v1174 = vunpack.c.l.s4 1934713408
        %v1175 = vunpack.c.0.s8 %v1174
        %v1176 = vlaneseq
        %v1177 = vshrl.u32 %v1176, 7
        %v1178 = vsub.s32 %v1175, %v1177
        %v1179 = vrot.slane %v1171, %v1178
        %v1181 = vunpack.c.l.s4 1934713408
        %v1182 = vunpack.c.0.s8 %v1181
        %v1183 = vlaneseq
        %v1184 = vshrl.u32 %v1183, 7
        %v1185 = vsub.s32 %v1182, %v1184
        %v1186 = vrot.slane %v1172, %v1185
        %v1187 = vcombine.high %v1163, 0.0
        %v1188 = vcombine.high %v1170, 0.0
        %v1189 = vcombine.high %v1179, 0.0
        %v1190 = vcombine.high %v1186, 0.0
        %v1191 = vcombine.low %v1163, %v1170
        %v1193 = vunpack.c.l.s4 1983009808
        %v1194 = vunpack.c.0.s8 %v1193
        %v1195 = vlaneseq
        %v1196 = vshrl.u32 %v1195, 7
        %v1197 = vsub.s32 %v1194, %v1196
        %v1198 = vrot.slane %v1191, %v1197
        %v1199 = vcombine.low %v1187, %v1188
        %v1201 = vunpack.c.l.s4 1983009808
        %v1202 = vunpack.c.0.s8 %v1201
        %v1203 = vlaneseq
        %v1204 = vshrl.u32 %v1203, 7
        %v1205 = vsub.s32 %v1202, %v1204
        %v1206 = vrot.slane %v1199, %v1205
        %v1207 = vcombine.low %v1179, %v1186
        %v1209 = vunpack.c.l.s4 1983009808
        %v1210 = vunpack.c.0.s8 %v1209
        %v1211 = vlaneseq
        %v1212 = vshrl.u32 %v1211, 7
        %v1213 = vsub.s32 %v1210, %v1212
        %v1214 = vrot.slane %v1207, %v1213
        %v1215 = vcombine.low %v1189, %v1190
        %v1217 = vunpack.c.l.s4 1983009808
        %v1218 = vunpack.c.0.s8 %v1217
        %v1219 = vlaneseq
        %v1220 = vshrl.u32 %v1219, 7
        %v1221 = vsub.s32 %v1218, %v1220
        %v1222 = vrot.slane %v1215, %v1221
        %v1223 = vcombine.low %v1198, %v1206
        %v1225 = vunpack.c.l.s4 1934713408
        %v1226 = vunpack.c.0.s8 %v1225
        %v1227 = vlaneseq
        %v1228 = vshrl.u32 %v1227, 7
        %v1229 = vsub.s32 %v1226, %v1228
        %v1230 = vrot.slane %v1223, %v1229
        %v1231 = vcombine.low %v1214, %v1222
        %v1233 = vunpack.c.l.s4 1934713408
        %v1234 = vunpack.c.0.s8 %v1233
        %v1235 = vlaneseq
        %v1236 = vshrl.u32 %v1235, 7
        %v1237 = vsub.s32 %v1234, %v1236
        %v1238 = vrot.slane %v1231, %v1237
        %v1239 = vcombine.low %v1230, %v1238
        %v1240 = vcombine.high %v1230, %v1238
        %v1241 = vpack.c.bf16 %v1239, %v1239
        %v1242 = vpack.c.bf16 %v1240, %v1240
        %vm1243 = vcmask 130048
        %v1245 = vsel %vm1243, %v993, 0
        %v1248 = vsel %vm1243, %v1117, 0
        %1250 = vmatprep.subr.bf16.mxu0 0
        %1251 = vmatpush1.bf16.xpose.msra.mxu0 0
        %1252 = vmatprep.subr.bf16.mxu0 0
        %1253 = vmatpush1.bf16.xpose.msra.mxu0 0
        %1254 = vmatprep.subr.bf16.mxu0 0
        %1255 = vmatpush1.bf16.xpose.msra.mxu0 0
        %1256 = vmatprep.subr.bf16.mxu0 0
        %1257 = vmatpush1.bf16.xpose.msra.mxu0 0
        %1258 = vmatprep.subr.bf16.mxu0 0
        %1259 = vmatpush1.bf16.xpose.msra.mxu0 0
        %1260 = vmatprep.subr.bf16.mxu0 0
        %1261 = vmatpush1.bf16.xpose.msra.mxu0 0
        %1262 = vmatprep.subr.bf16.mxu0 0
        %1263 = vmatpush1.bf16.xpose.msra.mxu0 0
        %1264 = vmatprep.subr.bf16.mxu0 0
        %1265 = vmatpush1.bf16.xpose.msra.mxu0 %v1248
        %1266 = vmatprep.subr.bf16.mxu0 0
        %1267 = vmatpush2.bf16.xpose.msra.mxu0 0
        %1268 = vmatprep.subr.bf16.mxu0 0
        %1269 = vmatpush2.bf16.xpose.msra.mxu0 0
        %1270 = vmatprep.subr.bf16.mxu0 0
        %1271 = vmatpush2.bf16.xpose.msra.mxu0 0
        %1272 = vmatprep.subr.bf16.mxu0 0
        %1273 = vmatpush2.bf16.xpose.msra.mxu0 0
        %1274 = vmatprep.subr.bf16.mxu0 0
        %1275 = vmatpush2.bf16.xpose.msra.mxu0 0
        %1276 = vmatprep.subr.bf16.mxu0 0
        %1277 = vmatpush2.bf16.xpose.msra.mxu0 0
        %1278 = vmatprep.subr.bf16.mxu0 0
        %1279 = vmatpush2.bf16.xpose.msra.mxu0 0
        %1280 = vmatprep.subr.bf16.mxu0 0
        %1281 = vmatpush2.bf16.xpose.msra.mxu0 0
        %1282 = vmatprep.mubr.bf16.mxu0 0
        %1283 = vmatmul.mubr.bf16.gmra.mxu0 %v1245
        %v1284 = vpop.f32.mrf.mxu0
        %v1285 = vadd.f32 0.0, %v1284
        %v1286 = vpop.f32.mrf.mxu0
        %v1287 = vpop.f32.mrf.mxu0
        %v1288 = vpop.f32.mrf.mxu0
        %1289 = vdwg.mxu0
        %v1291 = vsel %vm1243, %v994, 0
        %v1294 = vsel %vm1243, %v1118, 0
        %1296 = vmatprep.subr.bf16.mxu0 0
        %1297 = vmatpush1.bf16.xpose.msra.mxu0 0
        %1298 = vmatprep.subr.bf16.mxu0 0
        %1299 = vmatpush1.bf16.xpose.msra.mxu0 0
        %1300 = vmatprep.subr.bf16.mxu0 0
        %1301 = vmatpush1.bf16.xpose.msra.mxu0 0
        %1302 = vmatprep.subr.bf16.mxu0 0
        %1303 = vmatpush1.bf16.xpose.msra.mxu0 0
        %1304 = vmatprep.subr.bf16.mxu0 0
        %1305 = vmatpush1.bf16.xpose.msra.mxu0 0
        %1306 = vmatprep.subr.bf16.mxu0 0
        %1307 = vmatpush1.bf16.xpose.msra.mxu0 0
        %1308 = vmatprep.subr.bf16.mxu0 0
        %1309 = vmatpush1.bf16.xpose.msra.mxu0 0
        %1310 = vmatprep.subr.bf16.mxu0 0
        %1311 = vmatpush1.bf16.xpose.msra.mxu0 %v1294
        %1312 = vmatprep.subr.bf16.mxu0 0
        %1313 = vmatpush2.bf16.xpose.msra.mxu0 0
        %1314 = vmatprep.subr.bf16.mxu0 0
        %1315 = vmatpush2.bf16.xpose.msra.mxu0 0
        %1316 = vmatprep.subr.bf16.mxu0 0
        %1317 = vmatpush2.bf16.xpose.msra.mxu0 0
        %1318 = vmatprep.subr.bf16.mxu0 0
        %1319 = vmatpush2.bf16.xpose.msra.mxu0 0
        %1320 = vmatprep.subr.bf16.mxu0 0
        %1321 = vmatpush2.bf16.xpose.msra.mxu0 0
        %1322 = vmatprep.subr.bf16.mxu0 0
        %1323 = vmatpush2.bf16.xpose.msra.mxu0 0
        %1324 = vmatprep.subr.bf16.mxu0 0
        %1325 = vmatpush2.bf16.xpose.msra.mxu0 0
        %1326 = vmatprep.subr.bf16.mxu0 0
        %1327 = vmatpush2.bf16.xpose.msra.mxu0 0
        %1328 = vmatprep.mubr.bf16.mxu0 0
        %1329 = vmatmul.mubr.bf16.gmra.mxu0 %v1291
        %v1330 = vpop.f32.mrf.mxu0
        %v1331 = vadd.f32 0.0, %v1330
        %v1332 = vpop.f32.mrf.mxu0
        %v1333 = vpop.f32.mrf.mxu0
        %v1334 = vpop.f32.mrf.mxu0
        %1335 = vdwg.mxu0
        %v1336 = vmul.f32 %v1285, 0.25
        %v1337 = vmul.f32 %v1331, 0.25
        %vm1338 = vcmask 64512
        %v1339 = vsel %vm1338, %v1336, -inf
        %1340 = vmax.xlane.f32.xlu0 %v1339
        %v1341 = vpop.xlane.xlu0 %1340
        %v1342 = vsel %vm1338, %v1337, -inf
        %1343 = vmax.xlane.f32.xlu0 %v1342
        %v1344 = vpop.xlane.xlu0 %1343
        %v1345 = vsub.f32 %v1336, %v1341
        %v1346 = vsub.f32 %v1337, %v1344
        %v1347 = vmul.f32 %v1345, 1.442695
        %v1348 = vpow.pop %v1347
        %v1349 = vmul.f32 %v1346, 1.442695
        %v1350 = vpow.pop %v1349
        %v1351 = vsel %vm1338, %v1348, 0.0
        %1352 = vadd.xlane.f32.xlu0 %v1351
        %v1353 = vpop.xlane.xlu0 %1352
        %v1354 = vsel %vm1338, %v1350, 0.0
        %1355 = vadd.xlane.f32.xlu0 %v1354
        %v1356 = vpop.xlane.xlu0 %1355
        %v1357 = vrcp.pop %v1353
        %v1358 = vrcp.pop %v1356
        %v1359 = vmul.f32 %v1348, %v1357
        %v1360 = vmul.f32 %v1350, %v1358
        %v1361 = vpack.c.bf16 %v1359, %v1359
        %v1362 = vpack.c.bf16 %v1360, %v1360
        %v1364 = vsel %vm1338, %v1361, 0
        %vm1366 = vcmask 1043456
        %v1368 = vsel %vm1366, %v1241, 0
        %1370 = vmatprep.subr.bf16.mxu0 0
        %1371 = vmatpush1.bf16.msra.mxu0 0
        %1372 = vmatprep.subr.bf16.mxu0 0
        %1373 = vmatpush1.bf16.msra.mxu0 0
        %1374 = vmatprep.subr.bf16.mxu0 0
        %1375 = vmatpush1.bf16.msra.mxu0 0
        %1376 = vmatprep.subr.bf16.mxu0 0
        %1377 = vmatpush1.bf16.msra.mxu0 0
        %1378 = vmatprep.subr.bf16.mxu0 0
        %1379 = vmatpush1.bf16.msra.mxu0 0
        %1380 = vmatprep.subr.bf16.mxu0 0
        %1381 = vmatpush1.bf16.msra.mxu0 0
        %1382 = vmatprep.subr.bf16.mxu0 0
        %1383 = vmatpush1.bf16.msra.mxu0 0
        %1384 = vmatprep.subr.bf16.mxu0 0
        %1385 = vmatpush1.bf16.msra.mxu0 %v1368
        %1386 = vmatprep.subr.bf16.mxu0 0
        %1387 = vmatpush2.bf16.msra.mxu0 0
        %1388 = vmatprep.subr.bf16.mxu0 0
        %1389 = vmatpush2.bf16.msra.mxu0 0
        %1390 = vmatprep.subr.bf16.mxu0 0
        %1391 = vmatpush2.bf16.msra.mxu0 0
        %1392 = vmatprep.subr.bf16.mxu0 0
        %1393 = vmatpush2.bf16.msra.mxu0 0
        %1394 = vmatprep.subr.bf16.mxu0 0
        %1395 = vmatpush2.bf16.msra.mxu0 0
        %1396 = vmatprep.subr.bf16.mxu0 0
        %1397 = vmatpush2.bf16.msra.mxu0 0
        %1398 = vmatprep.subr.bf16.mxu0 0
        %1399 = vmatpush2.bf16.msra.mxu0 0
        %1400 = vmatprep.subr.bf16.mxu0 0
        %1401 = vmatpush2.bf16.msra.mxu0 0
        %1402 = vmatprep.mubr.bf16.mxu0 0
        %1403 = vmatmul.mubr.bf16.gmra.mxu0 %v1364
        %v1404 = vpop.f32.mrf.mxu0
        %v1405 = vadd.f32 0.0, %v1404
        %v1406 = vpop.f32.mrf.mxu0
        %v1407 = vpop.f32.mrf.mxu0
        %v1408 = vpop.f32.mrf.mxu0
        %1409 = vdwg.mxu0
        %v1411 = vsel %vm1338, %v1362, 0
        %v1414 = vsel %vm1366, %v1242, 0
        %1416 = vmatprep.subr.bf16.mxu0 0
        %1417 = vmatpush1.bf16.msra.mxu0 0
        %1418 = vmatprep.subr.bf16.mxu0 0
        %1419 = vmatpush1.bf16.msra.mxu0 0
        %1420 = vmatprep.subr.bf16.mxu0 0
        %1421 = vmatpush1.bf16.msra.mxu0 0
        %1422 = vmatprep.subr.bf16.mxu0 0
        %1423 = vmatpush1.bf16.msra.mxu0 0
        %1424 = vmatprep.subr.bf16.mxu0 0
        %1425 = vmatpush1.bf16.msra.mxu0 0
        %1426 = vmatprep.subr.bf16.mxu0 0
        %1427 = vmatpush1.bf16.msra.mxu0 0
        %1428 = vmatprep.subr.bf16.mxu0 0
        %1429 = vmatpush1.bf16.msra.mxu0 0
        %1430 = vmatprep.subr.bf16.mxu0 0
        %1431 = vmatpush1.bf16.msra.mxu0 %v1414
        %1432 = vmatprep.subr.bf16.mxu0 0
        %1433 = vmatpush2.bf16.msra.mxu0 0
        %1434 = vmatprep.subr.bf16.mxu0 0
        %1435 = vmatpush2.bf16.msra.mxu0 0
        %1436 = vmatprep.subr.bf16.mxu0 0
        %1437 = vmatpush2.bf16.msra.mxu0 0
        %1438 = vmatprep.subr.bf16.mxu0 0
        %1439 = vmatpush2.bf16.msra.mxu0 0
        %1440 = vmatprep.subr.bf16.mxu0 0
        %1441 = vmatpush2.bf16.msra.mxu0 0
        %1442 = vmatprep.subr.bf16.mxu0 0
        %1443 = vmatpush2.bf16.msra.mxu0 0
        %1444 = vmatprep.subr.bf16.mxu0 0
        %1445 = vmatpush2.bf16.msra.mxu0 0
        %1446 = vmatprep.subr.bf16.mxu0 0
        %1447 = vmatpush2.bf16.msra.mxu0 0
        %1448 = vmatprep.mubr.bf16.mxu0 0
        %1449 = vmatmul.mubr.bf16.gmra.mxu0 %v1411
        %v1450 = vpop.f32.mrf.mxu0
        %v1451 = vadd.f32 0.0, %v1450
        %v1452 = vpop.f32.mrf.mxu0
        %v1453 = vpop.f32.mrf.mxu0
        %v1454 = vpop.f32.mrf.mxu0
        %1455 = vdwg.mxu0
        %v1456 = vcombine.high %v1405, 0.0
        %v1458 = vunpack.c.l.s4 1983009808
        %v1459 = vunpack.c.0.s8 %v1458
        %v1460 = vlaneseq
        %v1461 = vshrl.u32 %v1460, 7
        %v1462 = vsub.s32 %v1459, %v1461
        %v1463 = vrot.slane %v1405, %v1462
        %v1465 = vunpack.c.l.s4 1983009808
        %v1466 = vunpack.c.0.s8 %v1465
        %v1467 = vlaneseq
        %v1468 = vshrl.u32 %v1467, 7
        %v1469 = vsub.s32 %v1466, %v1468
        %v1470 = vrot.slane %v1456, %v1469
        %v1471 = vcombine.high %v1451, 0.0
        %v1473 = vunpack.c.l.s4 1983009808
        %v1474 = vunpack.c.0.s8 %v1473
        %v1475 = vlaneseq
        %v1476 = vshrl.u32 %v1475, 7
        %v1477 = vsub.s32 %v1474, %v1476
        %v1478 = vrot.slane %v1451, %v1477
        %v1480 = vunpack.c.l.s4 1983009808
        %v1481 = vunpack.c.0.s8 %v1480
        %v1482 = vlaneseq
        %v1483 = vshrl.u32 %v1482, 7
        %v1484 = vsub.s32 %v1481, %v1483
        %v1485 = vrot.slane %v1471, %v1484
        %v1486 = vcombine.low %v1463, %v1478
        %v1487 = vcombine.high %v1463, %v1478
        %v1489 = vunpack.c.l.s4 1934713408
        %v1490 = vunpack.c.0.s8 %v1489
        %v1491 = vlaneseq
        %v1492 = vshrl.u32 %v1491, 7
        %v1493 = vsub.s32 %v1490, %v1492
        %v1494 = vrot.slane %v1486, %v1493
        %v1496 = vunpack.c.l.s4 1934713408
        %v1497 = vunpack.c.0.s8 %v1496
        %v1498 = vlaneseq
        %v1499 = vshrl.u32 %v1498, 7
        %v1500 = vsub.s32 %v1497, %v1499
        %v1501 = vrot.slane %v1487, %v1500
        %v1502 = vcombine.low %v1470, %v1485
        %v1503 = vcombine.high %v1470, %v1485
        %v1505 = vunpack.c.l.s4 1934713408
        %v1506 = vunpack.c.0.s8 %v1505
        %v1507 = vlaneseq
        %v1508 = vshrl.u32 %v1507, 7
        %v1509 = vsub.s32 %v1506, %v1508
        %v1510 = vrot.slane %v1502, %v1509
        %v1512 = vunpack.c.l.s4 1934713408
        %v1513 = vunpack.c.0.s8 %v1512
        %v1514 = vlaneseq
        %v1515 = vshrl.u32 %v1514, 7
        %v1516 = vsub.s32 %v1513, %v1515
        %v1517 = vrot.slane %v1503, %v1516
        %v1518 = vcombine.high %v1494, 0.0
        %v1519 = vcombine.high %v1501, 0.0
        %v1520 = vcombine.high %v1510, 0.0
        %v1521 = vcombine.high %v1517, 0.0
        %v1522 = vcombine.low %v1494, %v1501
        %v1524 = vunpack.c.l.s4 1983009808
        %v1525 = vunpack.c.0.s8 %v1524
        %v1526 = vlaneseq
        %v1527 = vshrl.u32 %v1526, 7
        %v1528 = vsub.s32 %v1525, %v1527
        %v1529 = vrot.slane %v1522, %v1528
        %v1530 = vcombine.low %v1518, %v1519
        %v1532 = vunpack.c.l.s4 1983009808
        %v1533 = vunpack.c.0.s8 %v1532
        %v1534 = vlaneseq
        %v1535 = vshrl.u32 %v1534, 7
        %v1536 = vsub.s32 %v1533, %v1535
        %v1537 = vrot.slane %v1530, %v1536
        %v1538 = vcombine.low %v1510, %v1517
        %v1540 = vunpack.c.l.s4 1983009808
        %v1541 = vunpack.c.0.s8 %v1540
        %v1542 = vlaneseq
        %v1543 = vshrl.u32 %v1542, 7
        %v1544 = vsub.s32 %v1541, %v1543
        %v1545 = vrot.slane %v1538, %v1544
        %v1546 = vcombine.low %v1520, %v1521
        %v1548 = vunpack.c.l.s4 1983009808
        %v1549 = vunpack.c.0.s8 %v1548
        %v1550 = vlaneseq
        %v1551 = vshrl.u32 %v1550, 7
        %v1552 = vsub.s32 %v1549, %v1551
        %v1553 = vrot.slane %v1546, %v1552
        %v1554 = vcombine.low %v1529, %v1537
        %v1556 = vunpack.c.l.s4 1934713408
        %v1557 = vunpack.c.0.s8 %v1556
        %v1558 = vlaneseq
        %v1559 = vshrl.u32 %v1558, 7
        %v1560 = vsub.s32 %v1557, %v1559
        %v1561 = vrot.slane %v1554, %v1560
        %v1562 = vcombine.low %v1545, %v1553
        %v1564 = vunpack.c.l.s4 1934713408
        %v1565 = vunpack.c.0.s8 %v1564
        %v1566 = vlaneseq
        %v1567 = vshrl.u32 %v1566, 7
        %v1568 = vsub.s32 %v1565, %v1567
        %v1569 = vrot.slane %v1562, %v1568
        %v1570 = vcombine.low %v1561, %v1569
        %v1571 = vcombine.high %v1561, %v1569
        %1573 = vrot.lane.b32.xlu0 %v1571, 16
        %v1574 = vpop.permute.xlu0 %1573
        %v1576 = vsel %vm1243, %v1570, %v1574
        %v1577 = vpack.c.bf16 %v1576, %v1576
        %v1578 = vld [vmem:[#allocation5] sm:$0xf]
        %v1579 = vld [vmem:[#allocation5 + $0x4] sm:$0xf]
        %v1580 = vld [vmem:[#allocation5 + $0x8] sm:$0xf]
        %v1581 = vld [vmem:[#allocation5 + $0xc] sm:$0xf]
        %v1582 = vld [vmem:[%s5] sm:$0x1]
        %v1584 = vlaneseq
        %v1585 = vshrl.u32 %v1584, 7
        %v1586 = vsub.s32 0, %v1585
        %v1587 = vrot.slane %v1582, %v1586
        %v1593 = vunpack.c.l.b16 %v1578
        %v1594 = vunpack.c.l.b16 %v1579
        %v1595 = vunpack.c.l.b16 %v1580
        %v1596 = vunpack.c.l.b16 %v1581
        %v1597 = vpack.c.b16 %v1594, %v1593
        %v1598 = vpack.c.b16 %v1596, %v1595
        %v1602 = vsel %vm829, %v1577, 0
        %1604 = vmatprep.subr.bf16.mxu0 0
        %1605 = vmatpush1.bf16.msra.mxu0 0
        %1606 = vmatprep.subr.bf16.mxu0 0
        %1607 = vmatpush1.bf16.msra.mxu0 0
        %1608 = vmatprep.subr.bf16.mxu0 0
        %1609 = vmatpush1.bf16.msra.mxu0 0
        %1610 = vmatprep.subr.bf16.mxu0 0
        %1611 = vmatpush1.bf16.msra.mxu0 0
        %1612 = vmatprep.subr.bf16.mxu0 0
        %1613 = vmatpush1.bf16.msra.mxu0 0
        %1614 = vmatprep.subr.bf16.mxu0 0
        %1615 = vmatpush1.bf16.msra.mxu0 0
        %1616 = vmatprep.subr.bf16.mxu0 0
        %1617 = vmatpush1.bf16.msra.mxu0 %v1598
        %1618 = vmatprep.subr.bf16.mxu0 0
        %1619 = vmatpush1.bf16.msra.mxu0 %v1597
        %1620 = vmatprep.subr.bf16.mxu0 0
        %1621 = vmatpush2.bf16.msra.mxu0 0
        %1622 = vmatprep.subr.bf16.mxu0 0
        %1623 = vmatpush2.bf16.msra.mxu0 0
        %1624 = vmatprep.subr.bf16.mxu0 0
        %1625 = vmatpush2.bf16.msra.mxu0 0
        %1626 = vmatprep.subr.bf16.mxu0 0
        %1627 = vmatpush2.bf16.msra.mxu0 0
        %1628 = vmatprep.subr.bf16.mxu0 0
        %1629 = vmatpush2.bf16.msra.mxu0 0
        %1630 = vmatprep.subr.bf16.mxu0 0
        %1631 = vmatpush2.bf16.msra.mxu0 0
        %1632 = vmatprep.subr.bf16.mxu0 0
        %1633 = vmatpush2.bf16.msra.mxu0 0
        %1634 = vmatprep.subr.bf16.mxu0 0
        %1635 = vmatpush2.bf16.msra.mxu0 0
        %1636 = vmatprep.mubr.bf16.mxu0 0
        %1637 = vmatmul.mubr.bf16.gmra.mxu0 %v1602
        %v1638 = vpop.f32.mrf.mxu0
        %v1639 = vadd.f32 %v1587, %v1638
        %v1640 = vpop.f32.mrf.mxu0
        %v1641 = vpop.f32.mrf.mxu0
        %v1642 = vpop.f32.mrf.mxu0
        %1643 = vdwg.mxu0
        %v1644 = vadd.f32 %v802, %v1639
        %v1645 = vld [vmem:[%s16] sm:$0x1]
        %v1646 = vld [vmem:[%s17] sm:$0x1]
        %v1647 = vsel %vm829, %v1644, 0.0
        %1648 = vadd.xlane.f32.xlu0 %v1647
        %v1649 = vpop.xlane.xlu0 %1648
        %v1650 = vrcp.pop 32.0
        %v1651 = vmul.f32 %v1649, %v1650
        %v1652 = vsub.f32 %v1644, %v1651
        %v1653 = vmul.f32 %v1652, %v1652
        %v1654 = vsel %vm829, %v1653, 0.0
        %1655 = vadd.xlane.f32.xlu0 %v1654
        %v1656 = vpop.xlane.xlu0 %1655
        %v1657 = vmul.f32 %v1656, %v1650
        %v1658 = vadd.f32 %v1657, 1e-05
        %v1659 = vrsqrt.pop %v1658
        %v1660 = vmul.f32 %v1652, %v1659
        %v1662 = vlaneseq
        %v1663 = vshrl.u32 %v1662, 7
        %v1664 = vsub.s32 0, %v1663
        %v1665 = vrot.slane %v1645, %v1664
        %v1667 = vmul.f32 %v1660, %v1665
        %v1669 = vlaneseq
        %v1670 = vshrl.u32 %v1669, 7
        %v1671 = vsub.s32 0, %v1670
        %v1672 = vrot.slane %v1646, %v1671
        %v1674 = vadd.f32 %v1667, %v1672
        %v1675 = vpack.c.bf16 %v1674, %v1674
        %v1676 = vld [vmem:[#allocation7] sm:$0xf]
        %v1677 = vld [vmem:[#allocation7 + $0x4] sm:$0xf]
        %v1678 = vld [vmem:[#allocation7 + $0x8] sm:$0xf]
        %v1679 = vld [vmem:[#allocation7 + $0xc] sm:$0xf]
        %v1680 = vld [vmem:[%s7] sm:$0x1]
        %v1682 = vlaneseq
        %v1683 = vshrl.u32 %v1682, 7
        %v1684 = vsub.s32 0, %v1683
        %v1685 = vrot.slane %v1680, %v1684
        %v1691 = vunpack.c.l.b16 %v1676
        %v1692 = vunpack.c.l.b16 %v1677
        %v1693 = vunpack.c.l.b16 %v1678
        %v1694 = vunpack.c.l.b16 %v1679
        %v1695 = vpack.c.b16 %v1692, %v1691
        %v1696 = vpack.c.b16 %v1694, %v1693
        %v1700 = vsel %vm829, %v1675, 0
        %1702 = vmatprep.subr.bf16.mxu0 0
        %1703 = vmatpush1.bf16.msra.mxu0 0
        %1704 = vmatprep.subr.bf16.mxu0 0
        %1705 = vmatpush1.bf16.msra.mxu0 0
        %1706 = vmatprep.subr.bf16.mxu0 0
        %1707 = vmatpush1.bf16.msra.mxu0 0
        %1708 = vmatprep.subr.bf16.mxu0 0
        %1709 = vmatpush1.bf16.msra.mxu0 0
        %1710 = vmatprep.subr.bf16.mxu0 0
        %1711 = vmatpush1.bf16.msra.mxu0 0
        %1712 = vmatprep.subr.bf16.mxu0 0
        %1713 = vmatpush1.bf16.msra.mxu0 0
        %1714 = vmatprep.subr.bf16.mxu0 0
        %1715 = vmatpush1.bf16.msra.mxu0 %v1696
        %1716 = vmatprep.subr.bf16.mxu0 0
        %1717 = vmatpush1.bf16.msra.mxu0 %v1695
        %1718 = vmatprep.subr.bf16.mxu0 0
        %1719 = vmatpush2.bf16.msra.mxu0 0
        %1720 = vmatprep.subr.bf16.mxu0 0
        %1721 = vmatpush2.bf16.msra.mxu0 0
        %1722 = vmatprep.subr.bf16.mxu0 0
        %1723 = vmatpush2.bf16.msra.mxu0 0
        %1724 = vmatprep.subr.bf16.mxu0 0
        %1725 = vmatpush2.bf16.msra.mxu0 0
        %1726 = vmatprep.subr.bf16.mxu0 0
        %1727 = vmatpush2.bf16.msra.mxu0 0
        %1728 = vmatprep.subr.bf16.mxu0 0
        %1729 = vmatpush2.bf16.msra.mxu0 0
        %1730 = vmatprep.subr.bf16.mxu0 0
        %1731 = vmatpush2.bf16.msra.mxu0 0
        %1732 = vmatprep.subr.bf16.mxu0 0
        %1733 = vmatpush2.bf16.msra.mxu0 0
        %1734 = vmatprep.mubr.bf16.mxu0 0
        %1735 = vmatmul.mubr.bf16.gmra.mxu0 %v1700
        %v1736 = vpop.f32.mrf.mxu0
        %v1737 = vadd.f32 %v1685, %v1736
        %v1738 = vpop.f32.mrf.mxu0
        %v1739 = vpop.f32.mrf.mxu0
        %v1740 = vpop.f32.mrf.mxu0
        %1741 = vdwg.mxu0
        %v1742 = vpack.c.bf16 %v804, %v803
        %v1743 = vld [vmem:[#allocation8] sm:$0xf]
        %v1744 = vld [vmem:[#allocation8 + $0x4] sm:$0xf]
        %v1745 = vld [vmem:[#allocation8 + $0x8] sm:$0xf]
        %v1746 = vld [vmem:[#allocation8 + $0xc] sm:$0xf]
        %v1747 = vld [vmem:[%s9] sm:$0x1]
        %v1749 = vlaneseq
        %v1750 = vshrl.u32 %v1749, 7
        %v1751 = vsub.s32 0, %v1750
        %v1752 = vrot.slane %v1747, %v1751
        %v1758 = vunpack.c.l.b16 %v1743
        %v1759 = vunpack.c.l.b16 %v1744
        %v1760 = vunpack.c.l.b16 %v1745
        %v1761 = vunpack.c.l.b16 %v1746
        %v1762 = vpack.c.b16 %v1759, %v1758
        %v1763 = vpack.c.b16 %v1761, %v1760
        %v1767 = vsel %vm829, %v1742, 0
        %1769 = vmatprep.subr.bf16.mxu0 0
        %1770 = vmatpush1.bf16.msra.mxu0 0
        %1771 = vmatprep.subr.bf16.mxu0 0
        %1772 = vmatpush1.bf16.msra.mxu0 0
        %1773 = vmatprep.subr.bf16.mxu0 0
        %1774 = vmatpush1.bf16.msra.mxu0 0
        %1775 = vmatprep.subr.bf16.mxu0 0
        %1776 = vmatpush1.bf16.msra.mxu0 0
        %1777 = vmatprep.subr.bf16.mxu0 0
        %1778 = vmatpush1.bf16.msra.mxu0 0
        %1779 = vmatprep.subr.bf16.mxu0 0
        %1780 = vmatpush1.bf16.msra.mxu0 0
        %1781 = vmatprep.subr.bf16.mxu0 0
        %1782 = vmatpush1.bf16.msra.mxu0 %v1763
        %1783 = vmatprep.subr.bf16.mxu0 0
        %1784 = vmatpush1.bf16.msra.mxu0 %v1762
        %1785 = vmatprep.subr.bf16.mxu0 0
        %1786 = vmatpush2.bf16.msra.mxu0 0
        %1787 = vmatprep.subr.bf16.mxu0 0
        %1788 = vmatpush2.bf16.msra.mxu0 0
        %1789 = vmatprep.subr.bf16.mxu0 0
        %1790 = vmatpush2.bf16.msra.mxu0 0
        %1791 = vmatprep.subr.bf16.mxu0 0
        %1792 = vmatpush2.bf16.msra.mxu0 0
        %1793 = vmatprep.subr.bf16.mxu0 0
        %1794 = vmatpush2.bf16.msra.mxu0 0
        %1795 = vmatprep.subr.bf16.mxu0 0
        %1796 = vmatpush2.bf16.msra.mxu0 0
        %1797 = vmatprep.subr.bf16.mxu0 0
        %1798 = vmatpush2.bf16.msra.mxu0 0
        %1799 = vmatprep.subr.bf16.mxu0 0
        %1800 = vmatpush2.bf16.msra.mxu0 0
        %1801 = vmatprep.mubr.bf16.mxu0 0
        %1802 = vmatmul.mubr.bf16.gmra.mxu0 %v1767
        %v1803 = vpop.f32.mrf.mxu0
        %v1804 = vadd.f32 %v1752, %v1803
        %v1805 = vpop.f32.mrf.mxu0
        %v1806 = vpop.f32.mrf.mxu0
        %v1807 = vadd.f32 %v1752, %v1806
        %v1808 = vpop.f32.mrf.mxu0
        %1809 = vdwg.mxu0
        %1811 = vrot.lane.b32.xlu0 %v1737, 112
        %v1812 = vpop.permute.xlu0 %1811
        %v1814 = vcombine.high %v1737, 0.0
        %v1816 = vunpack.c.l.s4 1983009808
        %v1817 = vunpack.c.0.s8 %v1816
        %v1818 = vlaneseq
        %v1819 = vshrl.u32 %v1818, 7
        %v1820 = vsub.s32 %v1817, %v1819
        %v1821 = vrot.slane %v1737, %v1820
        %v1823 = vunpack.c.l.s4 1983009808
        %v1824 = vunpack.c.0.s8 %v1823
        %v1825 = vlaneseq
        %v1826 = vshrl.u32 %v1825, 7
        %v1827 = vsub.s32 %v1824, %v1826
        %v1828 = vrot.slane %v1814, %v1827
        %v1829 = vcombine.high %v1812, 0.0
        %v1831 = vunpack.c.l.s4 1983009808
        %v1832 = vunpack.c.0.s8 %v1831
        %v1833 = vlaneseq
        %v1834 = vshrl.u32 %v1833, 7
        %v1835 = vsub.s32 %v1832, %v1834
        %v1836 = vrot.slane %v1812, %v1835
        %v1838 = vunpack.c.l.s4 1983009808
        %v1839 = vunpack.c.0.s8 %v1838
        %v1840 = vlaneseq
        %v1841 = vshrl.u32 %v1840, 7
        %v1842 = vsub.s32 %v1839, %v1841
        %v1843 = vrot.slane %v1829, %v1842
        %v1844 = vcombine.low %v1821, %v1836
        %v1845 = vcombine.high %v1821, %v1836
        %v1847 = vunpack.c.l.s4 1934713408
        %v1848 = vunpack.c.0.s8 %v1847
        %v1849 = vlaneseq
        %v1850 = vshrl.u32 %v1849, 7
        %v1851 = vsub.s32 %v1848, %v1850
        %v1852 = vrot.slane %v1844, %v1851
        %v1854 = vunpack.c.l.s4 1934713408
        %v1855 = vunpack.c.0.s8 %v1854
        %v1856 = vlaneseq
        %v1857 = vshrl.u32 %v1856, 7
        %v1858 = vsub.s32 %v1855, %v1857
        %v1859 = vrot.slane %v1845, %v1858
        %v1860 = vcombine.low %v1828, %v1843
        %v1861 = vcombine.high %v1828, %v1843
        %v1863 = vunpack.c.l.s4 1934713408
        %v1864 = vunpack.c.0.s8 %v1863
        %v1865 = vlaneseq
        %v1866 = vshrl.u32 %v1865, 7
        %v1867 = vsub.s32 %v1864, %v1866
        %v1868 = vrot.slane %v1860, %v1867
        %v1870 = vunpack.c.l.s4 1934713408
        %v1871 = vunpack.c.0.s8 %v1870
        %v1872 = vlaneseq
        %v1873 = vshrl.u32 %v1872, 7
        %v1874 = vsub.s32 %v1871, %v1873
        %v1875 = vrot.slane %v1861, %v1874
        %v1876 = vcombine.high %v1852, 0.0
        %v1877 = vcombine.high %v1859, 0.0
        %v1878 = vcombine.high %v1868, 0.0
        %v1879 = vcombine.high %v1875, 0.0
        %v1880 = vcombine.low %v1852, %v1859
        %v1882 = vunpack.c.l.s4 1983009808
        %v1883 = vunpack.c.0.s8 %v1882
        %v1884 = vlaneseq
        %v1885 = vshrl.u32 %v1884, 7
        %v1886 = vsub.s32 %v1883, %v1885
        %v1887 = vrot.slane %v1880, %v1886
        %v1888 = vcombine.low %v1876, %v1877
        %v1890 = vunpack.c.l.s4 1983009808
        %v1891 = vunpack.c.0.s8 %v1890
        %v1892 = vlaneseq
        %v1893 = vshrl.u32 %v1892, 7
        %v1894 = vsub.s32 %v1891, %v1893
        %v1895 = vrot.slane %v1888, %v1894
        %v1896 = vcombine.low %v1868, %v1875
        %v1898 = vunpack.c.l.s4 1983009808
        %v1899 = vunpack.c.0.s8 %v1898
        %v1900 = vlaneseq
        %v1901 = vshrl.u32 %v1900, 7
        %v1902 = vsub.s32 %v1899, %v1901
        %v1903 = vrot.slane %v1896, %v1902
        %v1904 = vcombine.low %v1878, %v1879
        %v1906 = vunpack.c.l.s4 1983009808
        %v1907 = vunpack.c.0.s8 %v1906
        %v1908 = vlaneseq
        %v1909 = vshrl.u32 %v1908, 7
        %v1910 = vsub.s32 %v1907, %v1909
        %v1911 = vrot.slane %v1904, %v1910
        %v1912 = vcombine.low %v1887, %v1895
        %v1914 = vunpack.c.l.s4 1934713408
        %v1915 = vunpack.c.0.s8 %v1914
        %v1916 = vlaneseq
        %v1917 = vshrl.u32 %v1916, 7
        %v1918 = vsub.s32 %v1915, %v1917
        %v1919 = vrot.slane %v1912, %v1918
        %v1920 = vcombine.low %v1903, %v1911
        %v1922 = vunpack.c.l.s4 1934713408
        %v1923 = vunpack.c.0.s8 %v1922
        %v1924 = vlaneseq
        %v1925 = vshrl.u32 %v1924, 7
        %v1926 = vsub.s32 %v1923, %v1925
        %v1927 = vrot.slane %v1920, %v1926
        %v1928 = vcombine.low %v1919, %v1927
        %v1929 = vcombine.high %v1919, %v1927
        %v1930 = vpack.c.bf16 %v1928, %v1928
        %v1931 = vpack.c.bf16 %v1929, %v1929
        %1934 = vrot.lane.b32.xlu0 %v1804, 112
        %v1935 = vpop.permute.xlu0 %1934
        %1936 = vrot.lane.b32.xlu0 %v1807, 112
        %v1937 = vpop.permute.xlu0 %1936
        %v1940 = vcombine.high %v1804, 0.0
        %v1942 = vunpack.c.l.s4 1983009808
        %v1943 = vunpack.c.0.s8 %v1942
        %v1944 = vlaneseq
        %v1945 = vshrl.u32 %v1944, 7
        %v1946 = vsub.s32 %v1943, %v1945
        %v1947 = vrot.slane %v1804, %v1946
        %v1949 = vunpack.c.l.s4 1983009808
        %v1950 = vunpack.c.0.s8 %v1949
        %v1951 = vlaneseq
        %v1952 = vshrl.u32 %v1951, 7
        %v1953 = vsub.s32 %v1950, %v1952
        %v1954 = vrot.slane %v1940, %v1953
        %v1955 = vcombine.high %v1935, 0.0
        %v1957 = vunpack.c.l.s4 1983009808
        %v1958 = vunpack.c.0.s8 %v1957
        %v1959 = vlaneseq
        %v1960 = vshrl.u32 %v1959, 7
        %v1961 = vsub.s32 %v1958, %v1960
        %v1962 = vrot.slane %v1935, %v1961
        %v1964 = vunpack.c.l.s4 1983009808
        %v1965 = vunpack.c.0.s8 %v1964
        %v1966 = vlaneseq
        %v1967 = vshrl.u32 %v1966, 7
        %v1968 = vsub.s32 %v1965, %v1967
        %v1969 = vrot.slane %v1955, %v1968
        %v1970 = vcombine.low %v1947, %v1962
        %v1971 = vcombine.high %v1947, %v1962
        %v1973 = vunpack.c.l.s4 1934713408
        %v1974 = vunpack.c.0.s8 %v1973
        %v1975 = vlaneseq
        %v1976 = vshrl.u32 %v1975, 7
        %v1977 = vsub.s32 %v1974, %v1976
        %v1978 = vrot.slane %v1970, %v1977
        %v1980 = vunpack.c.l.s4 1934713408
        %v1981 = vunpack.c.0.s8 %v1980
        %v1982 = vlaneseq
        %v1983 = vshrl.u32 %v1982, 7
        %v1984 = vsub.s32 %v1981, %v1983
        %v1985 = vrot.slane %v1971, %v1984
        %v1986 = vcombine.low %v1954, %v1969
        %v1987 = vcombine.high %v1954, %v1969
        %v1989 = vunpack.c.l.s4 1934713408
        %v1990 = vunpack.c.0.s8 %v1989
        %v1991 = vlaneseq
        %v1992 = vshrl.u32 %v1991, 7
        %v1993 = vsub.s32 %v1990, %v1992
        %v1994 = vrot.slane %v1986, %v1993
        %v1996 = vunpack.c.l.s4 1934713408
        %v1997 = vunpack.c.0.s8 %v1996
        %v1998 = vlaneseq
        %v1999 = vshrl.u32 %v1998, 7
        %v2000 = vsub.s32 %v1997, %v1999
        %v2001 = vrot.slane %v1987, %v2000
        %v2002 = vcombine.high %v1978, 0.0
        %v2003 = vcombine.high %v1985, 0.0
        %v2004 = vcombine.high %v1994, 0.0
        %v2005 = vcombine.high %v2001, 0.0
        %v2006 = vcombine.high %v1807, 0.0
        %v2008 = vunpack.c.l.s4 1983009808
        %v2009 = vunpack.c.0.s8 %v2008
        %v2010 = vlaneseq
        %v2011 = vshrl.u32 %v2010, 7
        %v2012 = vsub.s32 %v2009, %v2011
        %v2013 = vrot.slane %v1807, %v2012
        %v2015 = vunpack.c.l.s4 1983009808
        %v2016 = vunpack.c.0.s8 %v2015
        %v2017 = vlaneseq
        %v2018 = vshrl.u32 %v2017, 7
        %v2019 = vsub.s32 %v2016, %v2018
        %v2020 = vrot.slane %v2006, %v2019
        %v2021 = vcombine.high %v1937, 0.0
        %v2023 = vunpack.c.l.s4 1983009808
        %v2024 = vunpack.c.0.s8 %v2023
        %v2025 = vlaneseq
        %v2026 = vshrl.u32 %v2025, 7
        %v2027 = vsub.s32 %v2024, %v2026
        %v2028 = vrot.slane %v1937, %v2027
        %v2030 = vunpack.c.l.s4 1983009808
        %v2031 = vunpack.c.0.s8 %v2030
        %v2032 = vlaneseq
        %v2033 = vshrl.u32 %v2032, 7
        %v2034 = vsub.s32 %v2031, %v2033
        %v2035 = vrot.slane %v2021, %v2034
        %v2036 = vcombine.low %v2013, %v2028
        %v2037 = vcombine.high %v2013, %v2028
        %v2039 = vunpack.c.l.s4 1934713408
        %v2040 = vunpack.c.0.s8 %v2039
        %v2041 = vlaneseq
        %v2042 = vshrl.u32 %v2041, 7
        %v2043 = vsub.s32 %v2040, %v2042
        %v2044 = vrot.slane %v2036, %v2043
        %v2046 = vunpack.c.l.s4 1934713408
        %v2047 = vunpack.c.0.s8 %v2046
        %v2048 = vlaneseq
        %v2049 = vshrl.u32 %v2048, 7
        %v2050 = vsub.s32 %v2047, %v2049
        %v2051 = vrot.slane %v2037, %v2050
        %v2052 = vcombine.low %v2020, %v2035
        %v2053 = vcombine.high %v2020, %v2035
        %v2055 = vunpack.c.l.s4 1934713408
        %v2056 = vunpack.c.0.s8 %v2055
        %v2057 = vlaneseq
        %v2058 = vshrl.u32 %v2057, 7
        %v2059 = vsub.s32 %v2056, %v2058
        %v2060 = vrot.slane %v2052, %v2059
        %v2062 = vunpack.c.l.s4 1934713408
        %v2063 = vunpack.c.0.s8 %v2062
        %v2064 = vlaneseq
        %v2065 = vshrl.u32 %v2064, 7
        %v2066 = vsub.s32 %v2063, %v2065
        %v2067 = vrot.slane %v2053, %v2066
        %v2068 = vcombine.high %v2044, 0.0
        %v2069 = vcombine.high %v2051, 0.0
        %v2070 = vcombine.high %v2060, 0.0
        %v2071 = vcombine.high %v2067, 0.0
        %v2072 = vcombine.low %v1978, %v1985
        %v2074 = vunpack.c.l.s4 1983009808
        %v2075 = vunpack.c.0.s8 %v2074
        %v2076 = vlaneseq
        %v2077 = vshrl.u32 %v2076, 7
        %v2078 = vsub.s32 %v2075, %v2077
        %v2079 = vrot.slane %v2072, %v2078
        %v2080 = vcombine.low %v2002, %v2003
        %v2082 = vunpack.c.l.s4 1983009808
        %v2083 = vunpack.c.0.s8 %v2082
        %v2084 = vlaneseq
        %v2085 = vshrl.u32 %v2084, 7
        %v2086 = vsub.s32 %v2083, %v2085
        %v2087 = vrot.slane %v2080, %v2086
        %v2088 = vcombine.low %v1994, %v2001
        %v2090 = vunpack.c.l.s4 1983009808
        %v2091 = vunpack.c.0.s8 %v2090
        %v2092 = vlaneseq
        %v2093 = vshrl.u32 %v2092, 7
        %v2094 = vsub.s32 %v2091, %v2093
        %v2095 = vrot.slane %v2088, %v2094
        %v2096 = vcombine.low %v2004, %v2005
        %v2098 = vunpack.c.l.s4 1983009808
        %v2099 = vunpack.c.0.s8 %v2098
        %v2100 = vlaneseq
        %v2101 = vshrl.u32 %v2100, 7
        %v2102 = vsub.s32 %v2099, %v2101
        %v2103 = vrot.slane %v2096, %v2102
        %v2104 = vcombine.low %v2079, %v2087
        %v2106 = vunpack.c.l.s4 1934713408
        %v2107 = vunpack.c.0.s8 %v2106
        %v2108 = vlaneseq
        %v2109 = vshrl.u32 %v2108, 7
        %v2110 = vsub.s32 %v2107, %v2109
        %v2111 = vrot.slane %v2104, %v2110
        %v2112 = vcombine.low %v2095, %v2103
        %v2114 = vunpack.c.l.s4 1934713408
        %v2115 = vunpack.c.0.s8 %v2114
        %v2116 = vlaneseq
        %v2117 = vshrl.u32 %v2116, 7
        %v2118 = vsub.s32 %v2115, %v2117
        %v2119 = vrot.slane %v2112, %v2118
        %v2120 = vcombine.low %v2111, %v2119
        %v2121 = vcombine.high %v2111, %v2119
        %v2122 = vcombine.low %v2044, %v2051
        %v2124 = vunpack.c.l.s4 1983009808
        %v2125 = vunpack.c.0.s8 %v2124
        %v2126 = vlaneseq
        %v2127 = vshrl.u32 %v2126, 7
        %v2128 = vsub.s32 %v2125, %v2127
        %v2129 = vrot.slane %v2122, %v2128
        %v2130 = vcombine.low %v2068, %v2069
        %v2132 = vunpack.c.l.s4 1983009808
        %v2133 = vunpack.c.0.s8 %v2132
        %v2134 = vlaneseq
        %v2135 = vshrl.u32 %v2134, 7
        %v2136 = vsub.s32 %v2133, %v2135
        %v2137 = vrot.slane %v2130, %v2136
        %v2138 = vcombine.low %v2060, %v2067
        %v2140 = vunpack.c.l.s4 1983009808
        %v2141 = vunpack.c.0.s8 %v2140
        %v2142 = vlaneseq
        %v2143 = vshrl.u32 %v2142, 7
        %v2144 = vsub.s32 %v2141, %v2143
        %v2145 = vrot.slane %v2138, %v2144
        %v2146 = vcombine.low %v2070, %v2071
        %v2148 = vunpack.c.l.s4 1983009808
        %v2149 = vunpack.c.0.s8 %v2148
        %v2150 = vlaneseq
        %v2151 = vshrl.u32 %v2150, 7
        %v2152 = vsub.s32 %v2149, %v2151
        %v2153 = vrot.slane %v2146, %v2152
        %v2154 = vcombine.low %v2129, %v2137
        %v2156 = vunpack.c.l.s4 1934713408
        %v2157 = vunpack.c.0.s8 %v2156
        %v2158 = vlaneseq
        %v2159 = vshrl.u32 %v2158, 7
        %v2160 = vsub.s32 %v2157, %v2159
        %v2161 = vrot.slane %v2154, %v2160
        %v2162 = vcombine.low %v2145, %v2153
        %v2164 = vunpack.c.l.s4 1934713408
        %v2165 = vunpack.c.0.s8 %v2164
        %v2166 = vlaneseq
        %v2167 = vshrl.u32 %v2166, 7
        %v2168 = vsub.s32 %v2165, %v2167
        %v2169 = vrot.slane %v2162, %v2168
        %v2170 = vcombine.low %v2161, %v2169
        %v2171 = vcombine.high %v2161, %v2169
        %v2172 = vpack.c.bf16 %v2170, %v2120
        %v2173 = vpack.c.bf16 %v2171, %v2121
        %2174 = vrot.lane.b32.xlu0 %v1804, 96
        %v2175 = vpop.permute.xlu0 %2174
        %2176 = vrot.lane.b32.xlu0 %v1807, 96
        %v2177 = vpop.permute.xlu0 %2176
        %2178 = vrot.lane.b32.xlu0 %v1935, 96
        %v2179 = vpop.permute.xlu0 %2178
        %2180 = vrot.lane.b32.xlu0 %v1937, 96
        %v2181 = vpop.permute.xlu0 %2180
        %v2186 = vcombine.high %v2175, 0.0
        %v2188 = vunpack.c.l.s4 1983009808
        %v2189 = vunpack.c.0.s8 %v2188
        %v2190 = vlaneseq
        %v2191 = vshrl.u32 %v2190, 7
        %v2192 = vsub.s32 %v2189, %v2191
        %v2193 = vrot.slane %v2175, %v2192
        %v2195 = vunpack.c.l.s4 1983009808
        %v2196 = vunpack.c.0.s8 %v2195
        %v2197 = vlaneseq
        %v2198 = vshrl.u32 %v2197, 7
        %v2199 = vsub.s32 %v2196, %v2198
        %v2200 = vrot.slane %v2186, %v2199
        %v2201 = vcombine.high %v2179, 0.0
        %v2203 = vunpack.c.l.s4 1983009808
        %v2204 = vunpack.c.0.s8 %v2203
        %v2205 = vlaneseq
        %v2206 = vshrl.u32 %v2205, 7
        %v2207 = vsub.s32 %v2204, %v2206
        %v2208 = vrot.slane %v2179, %v2207
        %v2210 = vunpack.c.l.s4 1983009808
        %v2211 = vunpack.c.0.s8 %v2210
        %v2212 = vlaneseq
        %v2213 = vshrl.u32 %v2212, 7
        %v2214 = vsub.s32 %v2211, %v2213
        %v2215 = vrot.slane %v2201, %v2214
        %v2216 = vcombine.low %v2193, %v2208
        %v2217 = vcombine.high %v2193, %v2208
        %v2219 = vunpack.c.l.s4 1934713408
        %v2220 = vunpack.c.0.s8 %v2219
        %v2221 = vlaneseq
        %v2222 = vshrl.u32 %v2221, 7
        %v2223 = vsub.s32 %v2220, %v2222
        %v2224 = vrot.slane %v2216, %v2223
        %v2226 = vunpack.c.l.s4 1934713408
        %v2227 = vunpack.c.0.s8 %v2226
        %v2228 = vlaneseq
        %v2229 = vshrl.u32 %v2228, 7
        %v2230 = vsub.s32 %v2227, %v2229
        %v2231 = vrot.slane %v2217, %v2230
        %v2232 = vcombine.low %v2200, %v2215
        %v2233 = vcombine.high %v2200, %v2215
        %v2235 = vunpack.c.l.s4 1934713408
        %v2236 = vunpack.c.0.s8 %v2235
        %v2237 = vlaneseq
        %v2238 = vshrl.u32 %v2237, 7
        %v2239 = vsub.s32 %v2236, %v2238
        %v2240 = vrot.slane %v2232, %v2239
        %v2242 = vunpack.c.l.s4 1934713408
        %v2243 = vunpack.c.0.s8 %v2242
        %v2244 = vlaneseq
        %v2245 = vshrl.u32 %v2244, 7
        %v2246 = vsub.s32 %v2243, %v2245
        %v2247 = vrot.slane %v2233, %v2246
        %v2248 = vcombine.high %v2224, 0.0
        %v2249 = vcombine.high %v2231, 0.0
        %v2250 = vcombine.high %v2240, 0.0
        %v2251 = vcombine.high %v2247, 0.0
        %v2252 = vcombine.high %v2177, 0.0
        %v2254 = vunpack.c.l.s4 1983009808
        %v2255 = vunpack.c.0.s8 %v2254
        %v2256 = vlaneseq
        %v2257 = vshrl.u32 %v2256, 7
        %v2258 = vsub.s32 %v2255, %v2257
        %v2259 = vrot.slane %v2177, %v2258
        %v2261 = vunpack.c.l.s4 1983009808
        %v2262 = vunpack.c.0.s8 %v2261
        %v2263 = vlaneseq
        %v2264 = vshrl.u32 %v2263, 7
        %v2265 = vsub.s32 %v2262, %v2264
        %v2266 = vrot.slane %v2252, %v2265
        %v2267 = vcombine.high %v2181, 0.0
        %v2269 = vunpack.c.l.s4 1983009808
        %v2270 = vunpack.c.0.s8 %v2269
        %v2271 = vlaneseq
        %v2272 = vshrl.u32 %v2271, 7
        %v2273 = vsub.s32 %v2270, %v2272
        %v2274 = vrot.slane %v2181, %v2273
        %v2276 = vunpack.c.l.s4 1983009808
        %v2277 = vunpack.c.0.s8 %v2276
        %v2278 = vlaneseq
        %v2279 = vshrl.u32 %v2278, 7
        %v2280 = vsub.s32 %v2277, %v2279
        %v2281 = vrot.slane %v2267, %v2280
        %v2282 = vcombine.low %v2259, %v2274
        %v2283 = vcombine.high %v2259, %v2274
        %v2285 = vunpack.c.l.s4 1934713408
        %v2286 = vunpack.c.0.s8 %v2285
        %v2287 = vlaneseq
        %v2288 = vshrl.u32 %v2287, 7
        %v2289 = vsub.s32 %v2286, %v2288
        %v2290 = vrot.slane %v2282, %v2289
        %v2292 = vunpack.c.l.s4 1934713408
        %v2293 = vunpack.c.0.s8 %v2292
        %v2294 = vlaneseq
        %v2295 = vshrl.u32 %v2294, 7
        %v2296 = vsub.s32 %v2293, %v2295
        %v2297 = vrot.slane %v2283, %v2296
        %v2298 = vcombine.low %v2266, %v2281
        %v2299 = vcombine.high %v2266, %v2281
        %v2301 = vunpack.c.l.s4 1934713408
        %v2302 = vunpack.c.0.s8 %v2301
        %v2303 = vlaneseq
        %v2304 = vshrl.u32 %v2303, 7
        %v2305 = vsub.s32 %v2302, %v2304
        %v2306 = vrot.slane %v2298, %v2305
        %v2308 = vunpack.c.l.s4 1934713408
        %v2309 = vunpack.c.0.s8 %v2308
        %v2310 = vlaneseq
        %v2311 = vshrl.u32 %v2310, 7
        %v2312 = vsub.s32 %v2309, %v2311
        %v2313 = vrot.slane %v2299, %v2312
        %v2314 = vcombine.high %v2290, 0.0
        %v2315 = vcombine.high %v2297, 0.0
        %v2316 = vcombine.high %v2306, 0.0
        %v2317 = vcombine.high %v2313, 0.0
        %v2318 = vcombine.low %v2224, %v2231
        %v2320 = vunpack.c.l.s4 1983009808
        %v2321 = vunpack.c.0.s8 %v2320
        %v2322 = vlaneseq
        %v2323 = vshrl.u32 %v2322, 7
        %v2324 = vsub.s32 %v2321, %v2323
        %v2325 = vrot.slane %v2318, %v2324
        %v2326 = vcombine.low %v2248, %v2249
        %v2328 = vunpack.c.l.s4 1983009808
        %v2329 = vunpack.c.0.s8 %v2328
        %v2330 = vlaneseq
        %v2331 = vshrl.u32 %v2330, 7
        %v2332 = vsub.s32 %v2329, %v2331
        %v2333 = vrot.slane %v2326, %v2332
        %v2334 = vcombine.low %v2240, %v2247
        %v2336 = vunpack.c.l.s4 1983009808
        %v2337 = vunpack.c.0.s8 %v2336
        %v2338 = vlaneseq
        %v2339 = vshrl.u32 %v2338, 7
        %v2340 = vsub.s32 %v2337, %v2339
        %v2341 = vrot.slane %v2334, %v2340
        %v2342 = vcombine.low %v2250, %v2251
        %v2344 = vunpack.c.l.s4 1983009808
        %v2345 = vunpack.c.0.s8 %v2344
        %v2346 = vlaneseq
        %v2347 = vshrl.u32 %v2346, 7
        %v2348 = vsub.s32 %v2345, %v2347
        %v2349 = vrot.slane %v2342, %v2348
        %v2350 = vcombine.low %v2325, %v2333
        %v2352 = vunpack.c.l.s4 1934713408
        %v2353 = vunpack.c.0.s8 %v2352
        %v2354 = vlaneseq
        %v2355 = vshrl.u32 %v2354, 7
        %v2356 = vsub.s32 %v2353, %v2355
        %v2357 = vrot.slane %v2350, %v2356
        %v2358 = vcombine.low %v2341, %v2349
        %v2360 = vunpack.c.l.s4 1934713408
        %v2361 = vunpack.c.0.s8 %v2360
        %v2362 = vlaneseq
        %v2363 = vshrl.u32 %v2362, 7
        %v2364 = vsub.s32 %v2361, %v2363
        %v2365 = vrot.slane %v2358, %v2364
        %v2366 = vcombine.low %v2357, %v2365
        %v2367 = vcombine.high %v2357, %v2365
        %v2368 = vcombine.low %v2290, %v2297
        %v2370 = vunpack.c.l.s4 1983009808
        %v2371 = vunpack.c.0.s8 %v2370
        %v2372 = vlaneseq
        %v2373 = vshrl.u32 %v2372, 7
        %v2374 = vsub.s32 %v2371, %v2373
        %v2375 = vrot.slane %v2368, %v2374
        %v2376 = vcombine.low %v2314, %v2315
        %v2378 = vunpack.c.l.s4 1983009808
        %v2379 = vunpack.c.0.s8 %v2378
        %v2380 = vlaneseq
        %v2381 = vshrl.u32 %v2380, 7
        %v2382 = vsub.s32 %v2379, %v2381
        %v2383 = vrot.slane %v2376, %v2382
        %v2384 = vcombine.low %v2306, %v2313
        %v2386 = vunpack.c.l.s4 1983009808
        %v2387 = vunpack.c.0.s8 %v2386
        %v2388 = vlaneseq
        %v2389 = vshrl.u32 %v2388, 7
        %v2390 = vsub.s32 %v2387, %v2389
        %v2391 = vrot.slane %v2384, %v2390
        %v2392 = vcombine.low %v2316, %v2317
        %v2394 = vunpack.c.l.s4 1983009808
        %v2395 = vunpack.c.0.s8 %v2394
        %v2396 = vlaneseq
        %v2397 = vshrl.u32 %v2396, 7
        %v2398 = vsub.s32 %v2395, %v2397
        %v2399 = vrot.slane %v2392, %v2398
        %v2400 = vcombine.low %v2375, %v2383
        %v2402 = vunpack.c.l.s4 1934713408
        %v2403 = vunpack.c.0.s8 %v2402
        %v2404 = vlaneseq
        %v2405 = vshrl.u32 %v2404, 7
        %v2406 = vsub.s32 %v2403, %v2405
        %v2407 = vrot.slane %v2400, %v2406
        %v2408 = vcombine.low %v2391, %v2399
        %v2410 = vunpack.c.l.s4 1934713408
        %v2411 = vunpack.c.0.s8 %v2410
        %v2412 = vlaneseq
        %v2413 = vshrl.u32 %v2412, 7
        %v2414 = vsub.s32 %v2411, %v2413
        %v2415 = vrot.slane %v2408, %v2414
        %v2416 = vcombine.low %v2407, %v2415
        %v2417 = vcombine.high %v2407, %v2415
        %v2418 = vpack.c.bf16 %v2416, %v2366
        %v2419 = vpack.c.bf16 %v2417, %v2367
        %v2421 = vsel %vm1243, %v1930, 0
        %v2424 = vsel %vm1243, %v2172, 0
        %2426 = vmatprep.subr.bf16.mxu0 0
        %2427 = vmatpush1.bf16.xpose.msra.mxu0 0
        %2428 = vmatprep.subr.bf16.mxu0 0
        %2429 = vmatpush1.bf16.xpose.msra.mxu0 0
        %2430 = vmatprep.subr.bf16.mxu0 0
        %2431 = vmatpush1.bf16.xpose.msra.mxu0 0
        %2432 = vmatprep.subr.bf16.mxu0 0
        %2433 = vmatpush1.bf16.xpose.msra.mxu0 0
        %2434 = vmatprep.subr.bf16.mxu0 0
        %2435 = vmatpush1.bf16.xpose.msra.mxu0 0
        %2436 = vmatprep.subr.bf16.mxu0 0
        %2437 = vmatpush1.bf16.xpose.msra.mxu0 0
        %2438 = vmatprep.subr.bf16.mxu0 0
        %2439 = vmatpush1.bf16.xpose.msra.mxu0 0
        %2440 = vmatprep.subr.bf16.mxu0 0
        %2441 = vmatpush1.bf16.xpose.msra.mxu0 %v2424
        %2442 = vmatprep.subr.bf16.mxu0 0
        %2443 = vmatpush2.bf16.xpose.msra.mxu0 0
        %2444 = vmatprep.subr.bf16.mxu0 0
        %2445 = vmatpush2.bf16.xpose.msra.mxu0 0
        %2446 = vmatprep.subr.bf16.mxu0 0
        %2447 = vmatpush2.bf16.xpose.msra.mxu0 0
        %2448 = vmatprep.subr.bf16.mxu0 0
        %2449 = vmatpush2.bf16.xpose.msra.mxu0 0
        %2450 = vmatprep.subr.bf16.mxu0 0
        %2451 = vmatpush2.bf16.xpose.msra.mxu0 0
        %2452 = vmatprep.subr.bf16.mxu0 0
        %2453 = vmatpush2.bf16.xpose.msra.mxu0 0
        %2454 = vmatprep.subr.bf16.mxu0 0
        %2455 = vmatpush2.bf16.xpose.msra.mxu0 0
        %2456 = vmatprep.subr.bf16.mxu0 0
        %2457 = vmatpush2.bf16.xpose.msra.mxu0 0
        %2458 = vmatprep.mubr.bf16.mxu0 0
        %2459 = vmatmul.mubr.bf16.gmra.mxu0 %v2421
        %v2460 = vpop.f32.mrf.mxu0
        %v2461 = vadd.f32 0.0, %v2460
        %v2462 = vpop.f32.mrf.mxu0
        %v2463 = vpop.f32.mrf.mxu0
        %v2464 = vpop.f32.mrf.mxu0
        %2465 = vdwg.mxu0
        %v2467 = vsel %vm1243, %v1931, 0
        %v2470 = vsel %vm1243, %v2173, 0
        %2472 = vmatprep.subr.bf16.mxu0 0
        %2473 = vmatpush1.bf16.xpose.msra.mxu0 0
        %2474 = vmatprep.subr.bf16.mxu0 0
        %2475 = vmatpush1.bf16.xpose.msra.mxu0 0
        %2476 = vmatprep.subr.bf16.mxu0 0
        %2477 = vmatpush1.bf16.xpose.msra.mxu0 0
        %2478 = vmatprep.subr.bf16.mxu0 0
        %2479 = vmatpush1.bf16.xpose.msra.mxu0 0
        %2480 = vmatprep.subr.bf16.mxu0 0
        %2481 = vmatpush1.bf16.xpose.msra.mxu0 0
        %2482 = vmatprep.subr.bf16.mxu0 0
        %2483 = vmatpush1.bf16.xpose.msra.mxu0 0
        %2484 = vmatprep.subr.bf16.mxu0 0
        %2485 = vmatpush1.bf16.xpose.msra.mxu0 0
        %2486 = vmatprep.subr.bf16.mxu0 0
        %2487 = vmatpush1.bf16.xpose.msra.mxu0 %v2470
        %2488 = vmatprep.subr.bf16.mxu0 0
        %2489 = vmatpush2.bf16.xpose.msra.mxu0 0
        %2490 = vmatprep.subr.bf16.mxu0 0
        %2491 = vmatpush2.bf16.xpose.msra.mxu0 0
        %2492 = vmatprep.subr.bf16.mxu0 0
        %2493 = vmatpush2.bf16.xpose.msra.mxu0 0
        %2494 = vmatprep.subr.bf16.mxu0 0
        %2495 = vmatpush2.bf16.xpose.msra.mxu0 0
        %2496 = vmatprep.subr.bf16.mxu0 0
        %2497 = vmatpush2.bf16.xpose.msra.mxu0 0
        %2498 = vmatprep.subr.bf16.mxu0 0
        %2499 = vmatpush2.bf16.xpose.msra.mxu0 0
        %2500 = vmatprep.subr.bf16.mxu0 0
        %2501 = vmatpush2.bf16.xpose.msra.mxu0 0
        %2502 = vmatprep.subr.bf16.mxu0 0
        %2503 = vmatpush2.bf16.xpose.msra.mxu0 0
        %2504 = vmatprep.mubr.bf16.mxu0 0
        %2505 = vmatmul.mubr.bf16.gmra.mxu0 %v2467
        %v2506 = vpop.f32.mrf.mxu0
        %v2507 = vadd.f32 0.0, %v2506
        %v2508 = vpop.f32.mrf.mxu0
        %v2509 = vpop.f32.mrf.mxu0
        %v2510 = vpop.f32.mrf.mxu0
        %2511 = vdwg.mxu0
        %v2512 = vmul.f32 %v2461, 0.25
        %v2513 = vmul.f32 %v2507, 0.25
        %v2514 = vsel %vm1243, %v2512, -inf
        %2515 = vmax.xlane.f32.xlu0 %v2514
        %v2516 = vpop.xlane.xlu0 %2515
        %v2517 = vsel %vm1243, %v2513, -inf
        %2518 = vmax.xlane.f32.xlu0 %v2517
        %v2519 = vpop.xlane.xlu0 %2518
        %v2520 = vsub.f32 %v2512, %v2516
        %v2521 = vsub.f32 %v2513, %v2519
        %v2522 = vmul.f32 %v2520, 1.442695
        %v2523 = vpow.pop %v2522
        %v2524 = vmul.f32 %v2521, 1.442695
        %v2525 = vpow.pop %v2524
        %v2526 = vsel %vm1243, %v2523, 0.0
        %2527 = vadd.xlane.f32.xlu0 %v2526
        %v2528 = vpop.xlane.xlu0 %2527
        %v2529 = vsel %vm1243, %v2525, 0.0
        %2530 = vadd.xlane.f32.xlu0 %v2529
        %v2531 = vpop.xlane.xlu0 %2530
        %v2532 = vrcp.pop %v2528
        %v2533 = vrcp.pop %v2531
        %v2534 = vmul.f32 %v2523, %v2532
        %v2535 = vmul.f32 %v2525, %v2533
        %v2536 = vpack.c.bf16 %v2534, %v2534
        %v2537 = vpack.c.bf16 %v2535, %v2535
        %v2539 = vsel %vm1243, %v2536, 0
        %2541 = vmatprep.subr.bf16.mxu0 0
        %2542 = vmatpush1.bf16.msra.mxu0 0
        %2543 = vmatprep.subr.bf16.mxu0 0
        %2544 = vmatpush1.bf16.msra.mxu0 0
        %2545 = vmatprep.subr.bf16.mxu0 0
        %2546 = vmatpush1.bf16.msra.mxu0 0
        %2547 = vmatprep.subr.bf16.mxu0 0
        %2548 = vmatpush1.bf16.msra.mxu0 0
        %2549 = vmatprep.subr.bf16.mxu0 0
        %2550 = vmatpush1.bf16.msra.mxu0 0
        %2551 = vmatprep.subr.bf16.mxu0 0
        %2552 = vmatpush1.bf16.msra.mxu0 0
        %2553 = vmatprep.subr.bf16.mxu0 0
        %2554 = vmatpush1.bf16.msra.mxu0 0
        %2555 = vmatprep.subr.bf16.mxu0 0
        %2556 = vmatpush1.bf16.msra.mxu0 %v2418
        %2557 = vmatprep.subr.bf16.mxu0 0
        %2558 = vmatpush2.bf16.msra.mxu0 0
        %2559 = vmatprep.subr.bf16.mxu0 0
        %2560 = vmatpush2.bf16.msra.mxu0 0
        %2561 = vmatprep.subr.bf16.mxu0 0
        %2562 = vmatpush2.bf16.msra.mxu0 0
        %2563 = vmatprep.subr.bf16.mxu0 0
        %2564 = vmatpush2.bf16.msra.mxu0 0
        %2565 = vmatprep.subr.bf16.mxu0 0
        %2566 = vmatpush2.bf16.msra.mxu0 0
        %2567 = vmatprep.subr.bf16.mxu0 0
        %2568 = vmatpush2.bf16.msra.mxu0 0
        %2569 = vmatprep.subr.bf16.mxu0 0
        %2570 = vmatpush2.bf16.msra.mxu0 0
        %2571 = vmatprep.subr.bf16.mxu0 0
        %2572 = vmatpush2.bf16.msra.mxu0 0
        %2573 = vmatprep.mubr.bf16.mxu0 0
        %2574 = vmatmul.mubr.bf16.gmra.mxu0 %v2539
        %v2575 = vpop.f32.mrf.mxu0
        %v2576 = vadd.f32 0.0, %v2575
        %v2577 = vpop.f32.mrf.mxu0
        %v2578 = vpop.f32.mrf.mxu0
        %v2579 = vpop.f32.mrf.mxu0
        %2580 = vdwg.mxu0
        %v2582 = vsel %vm1243, %v2537, 0
        %2584 = vmatprep.subr.bf16.mxu0 0
        %2585 = vmatpush1.bf16.msra.mxu0 0
        %2586 = vmatprep.subr.bf16.mxu0 0
        %2587 = vmatpush1.bf16.msra.mxu0 0
        %2588 = vmatprep.subr.bf16.mxu0 0
        %2589 = vmatpush1.bf16.msra.mxu0 0
        %2590 = vmatprep.subr.bf16.mxu0 0
        %2591 = vmatpush1.bf16.msra.mxu0 0
        %2592 = vmatprep.subr.bf16.mxu0 0
        %2593 = vmatpush1.bf16.msra.mxu0 0
        %2594 = vmatprep.subr.bf16.mxu0 0
        %2595 = vmatpush1.bf16.msra.mxu0 0
        %2596 = vmatprep.subr.bf16.mxu0 0
        %2597 = vmatpush1.bf16.msra.mxu0 0
        %2598 = vmatprep.subr.bf16.mxu0 0
        %2599 = vmatpush1.bf16.msra.mxu0 %v2419
        %2600 = vmatprep.subr.bf16.mxu0 0
        %2601 = vmatpush2.bf16.msra.mxu0 0
        %2602 = vmatprep.subr.bf16.mxu0 0
        %2603 = vmatpush2.bf16.msra.mxu0 0
        %2604 = vmatprep.subr.bf16.mxu0 0
        %2605 = vmatpush2.bf16.msra.mxu0 0
        %2606 = vmatprep.subr.bf16.mxu0 0
        %2607 = vmatpush2.bf16.msra.mxu0 0
        %2608 = vmatprep.subr.bf16.mxu0 0
        %2609 = vmatpush2.bf16.msra.mxu0 0
        %2610 = vmatprep.subr.bf16.mxu0 0
        %2611 = vmatpush2.bf16.msra.mxu0 0
        %2612 = vmatprep.subr.bf16.mxu0 0
        %2613 = vmatpush2.bf16.msra.mxu0 0
        %2614 = vmatprep.subr.bf16.mxu0 0
        %2615 = vmatpush2.bf16.msra.mxu0 0
        %2616 = vmatprep.mubr.bf16.mxu0 0
        %2617 = vmatmul.mubr.bf16.gmra.mxu0 %v2582
        %v2618 = vpop.f32.mrf.mxu0
        %v2619 = vadd.f32 0.0, %v2618
        %v2620 = vpop.f32.mrf.mxu0
        %v2621 = vpop.f32.mrf.mxu0
        %v2622 = vpop.f32.mrf.mxu0
        %2623 = vdwg.mxu0
        %v2624 = vcombine.high %v2576, 0.0
        %v2626 = vunpack.c.l.s4 1983009808
        %v2627 = vunpack.c.0.s8 %v2626
        %v2628 = vlaneseq
        %v2629 = vshrl.u32 %v2628, 7
        %v2630 = vsub.s32 %v2627, %v2629
        %v2631 = vrot.slane %v2576, %v2630
        %v2633 = vunpack.c.l.s4 1983009808
        %v2634 = vunpack.c.0.s8 %v2633
        %v2635 = vlaneseq
        %v2636 = vshrl.u32 %v2635, 7
        %v2637 = vsub.s32 %v2634, %v2636
        %v2638 = vrot.slane %v2624, %v2637
        %v2639 = vcombine.high %v2619, 0.0
        %v2641 = vunpack.c.l.s4 1983009808
        %v2642 = vunpack.c.0.s8 %v2641
        %v2643 = vlaneseq
        %v2644 = vshrl.u32 %v2643, 7
        %v2645 = vsub.s32 %v2642, %v2644
        %v2646 = vrot.slane %v2619, %v2645
        %v2648 = vunpack.c.l.s4 1983009808
        %v2649 = vunpack.c.0.s8 %v2648
        %v2650 = vlaneseq
        %v2651 = vshrl.u32 %v2650, 7
        %v2652 = vsub.s32 %v2649, %v2651
        %v2653 = vrot.slane %v2639, %v2652
        %v2654 = vcombine.low %v2631, %v2646
        %v2655 = vcombine.high %v2631, %v2646
        %v2657 = vunpack.c.l.s4 1934713408
        %v2658 = vunpack.c.0.s8 %v2657
        %v2659 = vlaneseq
        %v2660 = vshrl.u32 %v2659, 7
        %v2661 = vsub.s32 %v2658, %v2660
        %v2662 = vrot.slane %v2654, %v2661
        %v2664 = vunpack.c.l.s4 1934713408
        %v2665 = vunpack.c.0.s8 %v2664
        %v2666 = vlaneseq
        %v2667 = vshrl.u32 %v2666, 7
        %v2668 = vsub.s32 %v2665, %v2667
        %v2669 = vrot.slane %v2655, %v2668
        %v2670 = vcombine.low %v2638, %v2653
        %v2671 = vcombine.high %v2638, %v2653
        %v2673 = vunpack.c.l.s4 1934713408
        %v2674 = vunpack.c.0.s8 %v2673
        %v2675 = vlaneseq
        %v2676 = vshrl.u32 %v2675, 7
        %v2677 = vsub.s32 %v2674, %v2676
        %v2678 = vrot.slane %v2670, %v2677
        %v2680 = vunpack.c.l.s4 1934713408
        %v2681 = vunpack.c.0.s8 %v2680
        %v2682 = vlaneseq
        %v2683 = vshrl.u32 %v2682, 7
        %v2684 = vsub.s32 %v2681, %v2683
        %v2685 = vrot.slane %v2671, %v2684
        %v2686 = vcombine.high %v2662, 0.0
        %v2687 = vcombine.high %v2669, 0.0
        %v2688 = vcombine.high %v2678, 0.0
        %v2689 = vcombine.high %v2685, 0.0
        %v2690 = vcombine.low %v2662, %v2669
        %v2692 = vunpack.c.l.s4 1983009808
        %v2693 = vunpack.c.0.s8 %v2692
        %v2694 = vlaneseq
        %v2695 = vshrl.u32 %v2694, 7
        %v2696 = vsub.s32 %v2693, %v2695
        %v2697 = vrot.slane %v2690, %v2696
        %v2698 = vcombine.low %v2686, %v2687
        %v2700 = vunpack.c.l.s4 1983009808
        %v2701 = vunpack.c.0.s8 %v2700
        %v2702 = vlaneseq
        %v2703 = vshrl.u32 %v2702, 7
        %v2704 = vsub.s32 %v2701, %v2703
        %v2705 = vrot.slane %v2698, %v2704
        %v2706 = vcombine.low %v2678, %v2685
        %v2708 = vunpack.c.l.s4 1983009808
        %v2709 = vunpack.c.0.s8 %v2708
        %v2710 = vlaneseq
        %v2711 = vshrl.u32 %v2710, 7
        %v2712 = vsub.s32 %v2709, %v2711
        %v2713 = vrot.slane %v2706, %v2712
        %v2714 = vcombine.low %v2688, %v2689
        %v2716 = vunpack.c.l.s4 1983009808
        %v2717 = vunpack.c.0.s8 %v2716
        %v2718 = vlaneseq
        %v2719 = vshrl.u32 %v2718, 7
        %v2720 = vsub.s32 %v2717, %v2719
        %v2721 = vrot.slane %v2714, %v2720
        %v2722 = vcombine.low %v2697, %v2705
        %v2724 = vunpack.c.l.s4 1934713408
        %v2725 = vunpack.c.0.s8 %v2724
        %v2726 = vlaneseq
        %v2727 = vshrl.u32 %v2726, 7
        %v2728 = vsub.s32 %v2725, %v2727
        %v2729 = vrot.slane %v2722, %v2728
        %v2730 = vcombine.low %v2713, %v2721
        %v2732 = vunpack.c.l.s4 1934713408
        %v2733 = vunpack.c.0.s8 %v2732
        %v2734 = vlaneseq
        %v2735 = vshrl.u32 %v2734, 7
        %v2736 = vsub.s32 %v2733, %v2735
        %v2737 = vrot.slane %v2730, %v2736
        %v2738 = vcombine.low %v2729, %v2737
        %v2739 = vcombine.high %v2729, %v2737
        %2741 = vrot.lane.b32.xlu0 %v2739, 16
        %v2742 = vpop.permute.xlu0 %2741
        %v2744 = vsel %vm1243, %v2738, %v2742
        %v2745 = vpack.c.bf16 %v2744, %v2744
        %v2746 = vld [vmem:[#allocation10] sm:$0xf]
        %v2747 = vld [vmem:[#allocation10 + $0x4] sm:$0xf]
        %v2748 = vld [vmem:[#allocation10 + $0x8] sm:$0xf]
        %v2749 = vld [vmem:[#allocation10 + $0xc] sm:$0xf]
        %v2750 = vld [vmem:[%s11] sm:$0x1]
        %v2752 = vlaneseq
        %v2753 = vshrl.u32 %v2752, 7
        %v2754 = vsub.s32 0, %v2753
        %v2755 = vrot.slane %v2750, %v2754
        %v2761 = vunpack.c.l.b16 %v2746
        %v2762 = vunpack.c.l.b16 %v2747
        %v2763 = vunpack.c.l.b16 %v2748
        %v2764 = vunpack.c.l.b16 %v2749
        %v2765 = vpack.c.b16 %v2762, %v2761
        %v2766 = vpack.c.b16 %v2764, %v2763
        %v2770 = vsel %vm829, %v2745, 0
        %2772 = vmatprep.subr.bf16.mxu0 0
        %2773 = vmatpush1.bf16.msra.mxu0 0
        %2774 = vmatprep.subr.bf16.mxu0 0
        %2775 = vmatpush1.bf16.msra.mxu0 0
        %2776 = vmatprep.subr.bf16.mxu0 0
        %2777 = vmatpush1.bf16.msra.mxu0 0
        %2778 = vmatprep.subr.bf16.mxu0 0
        %2779 = vmatpush1.bf16.msra.mxu0 0
        %2780 = vmatprep.subr.bf16.mxu0 0
        %2781 = vmatpush1.bf16.msra.mxu0 0
        %2782 = vmatprep.subr.bf16.mxu0 0
        %2783 = vmatpush1.bf16.msra.mxu0 0
        %2784 = vmatprep.subr.bf16.mxu0 0
        %2785 = vmatpush1.bf16.msra.mxu0 %v2766
        %2786 = vmatprep.subr.bf16.mxu0 0
        %2787 = vmatpush1.bf16.msra.mxu0 %v2765
        %2788 = vmatprep.subr.bf16.mxu0 0
        %2789 = vmatpush2.bf16.msra.mxu0 0
        %2790 = vmatprep.subr.bf16.mxu0 0
        %2791 = vmatpush2.bf16.msra.mxu0 0
        %2792 = vmatprep.subr.bf16.mxu0 0
        %2793 = vmatpush2.bf16.msra.mxu0 0
        %2794 = vmatprep.subr.bf16.mxu0 0
        %2795 = vmatpush2.bf16.msra.mxu0 0
        %2796 = vmatprep.subr.bf16.mxu0 0
        %2797 = vmatpush2.bf16.msra.mxu0 0
        %2798 = vmatprep.subr.bf16.mxu0 0
        %2799 = vmatpush2.bf16.msra.mxu0 0
        %2800 = vmatprep.subr.bf16.mxu0 0
        %2801 = vmatpush2.bf16.msra.mxu0 0
        %2802 = vmatprep.subr.bf16.mxu0 0
        %2803 = vmatpush2.bf16.msra.mxu0 0
        %2804 = vmatprep.mubr.bf16.mxu0 0
        %2805 = vmatmul.mubr.bf16.gmra.mxu0 %v2770
        %v2806 = vpop.f32.mrf.mxu0
        %v2807 = vadd.f32 %v2755, %v2806
        %v2808 = vpop.f32.mrf.mxu0
        %v2809 = vpop.f32.mrf.mxu0
        %v2810 = vpop.f32.mrf.mxu0
        %2811 = vdwg.mxu0
        %v2812 = vadd.f32 %v1674, %v2807
        %v2813 = vld [vmem:[%s18] sm:$0x1]
        %v2814 = vld [vmem:[%s19] sm:$0x1]
        %v2815 = vsel %vm829, %v2812, 0.0
        %2816 = vadd.xlane.f32.xlu0 %v2815
        %v2817 = vpop.xlane.xlu0 %2816
        %v2818 = vmul.f32 %v2817, %v1650
        %v2819 = vsub.f32 %v2812, %v2818
        %v2820 = vmul.f32 %v2819, %v2819
        %v2821 = vsel %vm829, %v2820, 0.0
        %2822 = vadd.xlane.f32.xlu0 %v2821
        %v2823 = vpop.xlane.xlu0 %2822
        %v2824 = vmul.f32 %v2823, %v1650
        %v2825 = vadd.f32 %v2824, 1e-05
        %v2826 = vrsqrt.pop %v2825
        %v2827 = vmul.f32 %v2819, %v2826
        %v2829 = vlaneseq
        %v2830 = vshrl.u32 %v2829, 7
        %v2831 = vsub.s32 0, %v2830
        %v2832 = vrot.slane %v2813, %v2831
        %v2834 = vmul.f32 %v2827, %v2832
        %v2836 = vlaneseq
        %v2837 = vshrl.u32 %v2836, 7
        %v2838 = vsub.s32 0, %v2837
        %v2839 = vrot.slane %v2814, %v2838
        %v2841 = vadd.f32 %v2834, %v2839
        %v2842 = vpack.c.bf16 %v2841, %v2841
        %v2843 = vld [vmem:[#allocation11] sm:$0xf]
        %v2844 = vld [vmem:[#allocation11 + $0x4] sm:$0xf]
        %v2845 = vld [vmem:[#allocation11 + $0x8] sm:$0xf]
        %v2846 = vld [vmem:[#allocation11 + $0xc] sm:$0xf]
        %v2847 = vld [vmem:[%s13] sm:$0x1]
        %v2849 = vlaneseq
        %v2850 = vshrl.u32 %v2849, 7
        %v2851 = vsub.s32 0, %v2850
        %v2852 = vrot.slane %v2847, %v2851
        %v2858 = vunpack.c.l.b16 %v2843
        %v2859 = vunpack.c.l.b16 %v2844
        %v2860 = vunpack.c.l.b16 %v2845
        %v2861 = vunpack.c.l.b16 %v2846
        %v2862 = vpack.c.b16 %v2859, %v2858
        %v2863 = vpack.c.b16 %v2861, %v2860
        %v2867 = vsel %vm829, %v2842, 0
        %2869 = vmatprep.subr.bf16.mxu0 0
        %2870 = vmatpush1.bf16.msra.mxu0 0
        %2871 = vmatprep.subr.bf16.mxu0 0
        %2872 = vmatpush1.bf16.msra.mxu0 0
        %2873 = vmatprep.subr.bf16.mxu0 0
        %2874 = vmatpush1.bf16.msra.mxu0 0
        %2875 = vmatprep.subr.bf16.mxu0 0
        %2876 = vmatpush1.bf16.msra.mxu0 0
        %2877 = vmatprep.subr.bf16.mxu0 0
        %2878 = vmatpush1.bf16.msra.mxu0 0
        %2879 = vmatprep.subr.bf16.mxu0 0
        %2880 = vmatpush1.bf16.msra.mxu0 0
        %2881 = vmatprep.subr.bf16.mxu0 0
        %2882 = vmatpush1.bf16.msra.mxu0 %v2863
        %2883 = vmatprep.subr.bf16.mxu0 0
        %2884 = vmatpush1.bf16.msra.mxu0 %v2862
        %2885 = vmatprep.subr.bf16.mxu0 0
        %2886 = vmatpush2.bf16.msra.mxu0 0
        %2887 = vmatprep.subr.bf16.mxu0 0
        %2888 = vmatpush2.bf16.msra.mxu0 0
        %2889 = vmatprep.subr.bf16.mxu0 0
        %2890 = vmatpush2.bf16.msra.mxu0 0
        %2891 = vmatprep.subr.bf16.mxu0 0
        %2892 = vmatpush2.bf16.msra.mxu0 0
        %2893 = vmatprep.subr.bf16.mxu0 0
        %2894 = vmatpush2.bf16.msra.mxu0 0
        %2895 = vmatprep.subr.bf16.mxu0 0
        %2896 = vmatpush2.bf16.msra.mxu0 0
        %2897 = vmatprep.subr.bf16.mxu0 0
        %2898 = vmatpush2.bf16.msra.mxu0 0
        %2899 = vmatprep.subr.bf16.mxu0 0
        %2900 = vmatpush2.bf16.msra.mxu0 0
        %2901 = vmatprep.mubr.bf16.mxu0 0
        %2902 = vmatmul.mubr.bf16.gmra.mxu0 %v2867
        %v2903 = vpop.f32.mrf.mxu0
        %v2904 = vadd.f32 %v2852, %v2903
        %v2905 = vpop.f32.mrf.mxu0
        %v2906 = vpop.f32.mrf.mxu0
        %v2907 = vpop.f32.mrf.mxu0
        %2908 = vdwg.mxu0
        %v2909 = vmax.f32 %v2904, 0.0
        %v2910 = vpack.c.bf16 %v2909, %v2909
        %v2911 = vld [vmem:[%s14] sm:$0xf]
        %v2912 = vld [vmem:[%s14 + $0x4] sm:$0xf]
        %v2913 = vld [vmem:[%s14 + $0x8] sm:$0xf]
        %v2914 = vld [vmem:[%s14 + $0xc] sm:$0xf]
        %v2915 = vld [vmem:[%s14 + $0x10] sm:$0xf]
        %v2916 = vld [vmem:[%s14 + $0x14] sm:$0xf]
        %v2917 = vld [vmem:[%s14 + $0x18] sm:$0xf]
        %v2918 = vld [vmem:[%s14 + $0x1c] sm:$0xf]
        %v2919 = vld [vmem:[%s15] sm:$0x1]
        %v2921 = vlaneseq
        %v2922 = vshrl.u32 %v2921, 7
        %v2923 = vsub.s32 0, %v2922
        %v2924 = vrot.slane %v2919, %v2923
        %v2934 = vunpack.c.l.b16 %v2911
        %v2935 = vunpack.c.l.b16 %v2912
        %v2936 = vunpack.c.l.b16 %v2913
        %v2937 = vunpack.c.l.b16 %v2914
        %v2938 = vunpack.c.l.b16 %v2915
        %v2939 = vunpack.c.l.b16 %v2916
        %v2940 = vunpack.c.l.b16 %v2917
        %v2941 = vunpack.c.l.b16 %v2918
        %v2942 = vpack.c.b16 %v2935, %v2934
        %v2943 = vpack.c.b16 %v2937, %v2936
        %v2944 = vpack.c.b16 %v2939, %v2938
        %v2945 = vpack.c.b16 %v2941, %v2940
        %vm2950 = vcmask 523264
        %v2952 = vsel %vm2950, %v2910, 0
        %2954 = vmatprep.subr.bf16.mxu0 0
        %2955 = vmatpush1.bf16.msra.mxu0 0
        %2956 = vmatprep.subr.bf16.mxu0 0
        %2957 = vmatpush1.bf16.msra.mxu0 0
        %2958 = vmatprep.subr.bf16.mxu0 0
        %2959 = vmatpush1.bf16.msra.mxu0 0
        %2960 = vmatprep.subr.bf16.mxu0 0
        %2961 = vmatpush1.bf16.msra.mxu0 0
        %2962 = vmatprep.subr.bf16.mxu0 0
        %2963 = vmatpush1.bf16.msra.mxu0 %v2945
        %2964 = vmatprep.subr.bf16.mxu0 0
        %2965 = vmatpush1.bf16.msra.mxu0 %v2944
        %2966 = vmatprep.subr.bf16.mxu0 0
        %2967 = vmatpush1.bf16.msra.mxu0 %v2943
        %2968 = vmatprep.subr.bf16.mxu0 0
        %2969 = vmatpush1.bf16.msra.mxu0 %v2942
        %2970 = vmatprep.subr.bf16.mxu0 0
        %2971 = vmatpush2.bf16.msra.mxu0 0
        %2972 = vmatprep.subr.bf16.mxu0 0
        %2973 = vmatpush2.bf16.msra.mxu0 0
        %2974 = vmatprep.subr.bf16.mxu0 0
        %2975 = vmatpush2.bf16.msra.mxu0 0
        %2976 = vmatprep.subr.bf16.mxu0 0
        %2977 = vmatpush2.bf16.msra.mxu0 0
        %2978 = vmatprep.subr.bf16.mxu0 0
        %2979 = vmatpush2.bf16.msra.mxu0 0
        %2980 = vmatprep.subr.bf16.mxu0 0
        %2981 = vmatpush2.bf16.msra.mxu0 0
        %2982 = vmatprep.subr.bf16.mxu0 0
        %2983 = vmatpush2.bf16.msra.mxu0 0
        %2984 = vmatprep.subr.bf16.mxu0 0
        %2985 = vmatpush2.bf16.msra.mxu0 0
        %2986 = vmatprep.mubr.bf16.mxu0 0
        %2987 = vmatmul.mubr.bf16.gmra.mxu0 %v2952
        %v2988 = vpop.f32.mrf.mxu0
        %v2989 = vadd.f32 %v2924, %v2988
        %v2990 = vpop.f32.mrf.mxu0
        %v2991 = vpop.f32.mrf.mxu0
        %v2992 = vpop.f32.mrf.mxu0
        %2993 = vdwg.mxu0
        %v2994 = vadd.f32 %v2841, %v2989
        %v2995 = vld [vmem:[%s20] sm:$0x1]
        %v2996 = vld [vmem:[%s21] sm:$0x1]
        %v2997 = vsel %vm829, %v2994, 0.0
        %2998 = vadd.xlane.f32.xlu0 %v2997
        %v2999 = vpop.xlane.xlu0 %2998
        %v3000 = vmul.f32 %v2999, %v1650
        %v3001 = vsub.f32 %v2994, %v3000
        %v3002 = vmul.f32 %v3001, %v3001
        %v3003 = vsel %vm829, %v3002, 0.0
        %3004 = vadd.xlane.f32.xlu0 %v3003
        %v3005 = vpop.xlane.xlu0 %3004
        %v3006 = vmul.f32 %v3005, %v1650
        %v3007 = vadd.f32 %v3006, 1e-05
        %v3008 = vrsqrt.pop %v3007
        %v3009 = vmul.f32 %v3001, %v3008
        %v3011 = vlaneseq
        %v3012 = vshrl.u32 %v3011, 7
        %v3013 = vsub.s32 0, %v3012
        %v3014 = vrot.slane %v2995, %v3013
        %v3016 = vmul.f32 %v3009, %v3014
        %v3018 = vlaneseq
        %v3019 = vshrl.u32 %v3018, 7
        %v3020 = vsub.s32 0, %v3019
        %v3021 = vrot.slane %v2996, %v3020
        %v3023 = vadd.f32 %v3016, %v3021
        %3024 = vst.msk [vmem:[%s791] sm:$0xff] %vm829, %v3023
        %s3025 = sand.u32 %s534, 1
        %s3026 = scalar_lea.sflag [#allocation4], %s3025
        %s3027 = sand.u32 %s534, 1
        %s3028 = smul.addr %s3027, 8
        %s3029 = scalar_lea.vmem [#allocation13], %s3028
        // Predicated region
        $region133: #{tpu_custom_call.1} parent=107 // pred_check
          %p3030 = pneg %p544
        $region134: #{tpu_custom_call.1} parent=107 // pred_check_branch
          %3032 = sbr.rel (%p3030) target = $region136
        $region135: #{tpu_custom_call.1} parent=107 // pred_region
          %s3034 = ssub.s32 128, 128
          %3035 = vsyncadd %s3026, %s3034
          %s3036 = sadd.s32 %s45, %s44
          %s3037 = smul.addr %s3036, 128
          %s3038 = scalar_lea.hbm %s22, %s3037
          %s3040 = sshll.u32 %s3029, 4
          %s3041 = int_to_ptr.vmem [resolvable:$true] %s3040
          %3043 = dma.vmem_to_hbm [thread:$0]  %s3041, 128, %s3038, %s3026
        $region136: #{tpu_custom_call.1} parent=107 // pred_fallthru
          _
      $region108: #{tpu_custom_call.1} parent=5 // pred_fallthru
        _
      %p3044 = scmp.le.s32.totalorder 2, %s35
      // Predicated region
      $region137: #{tpu_custom_call.1} parent=5 // pred_check
        %p3045 = pneg %p3044
      $region138: #{tpu_custom_call.1} parent=5 // pred_check_branch
        %3047 = sbr.rel (%p3045) target = $region140
      $region139: #{tpu_custom_call.1} parent=5 // pred_region
        %s3048 = ssub.s32 %s35, 2
        // Predicated region
        $region141: #{tpu_custom_call.1} parent=139 // pred_check
          %p3049 = pneg %p550
        $region142: #{tpu_custom_call.1} parent=139 // pred_check_branch
          %3051 = sbr.rel (%p3049) target = $region144
        $region143: #{tpu_custom_call.1} parent=139 // pred_region
          %s3052 = sand.u32 %s535, 1
          %s3053 = scalar_lea.sflag [#allocation4], %s3052
          %s3054 = sand.u32 %s535, 1
          %s3055 = smul.addr %s3054, 8
          %s3056 = scalar_lea.vmem [#allocation13], %s3055
          %3057 = dma.done %s3053, 128
        $region144: #{tpu_custom_call.1} parent=139 // pred_fallthru
          _
      $region140: #{tpu_custom_call.1} parent=5 // pred_fallthru
        _
    $region6: #{tpu_custom_call.1} parent=1 // loop_footer
      %s39 = sadd.s32 1, %s35
    $region7: #{tpu_custom_call.1} parent=1 // loop_footer_branch
      %34 = sbr.rel target = $region3
    $region8: #{tpu_custom_call.1} parent=1 // loop_exit
      _
    %3058 = vsyncpa [#allocation3], 1
    %s3059 = scalar_lea.sflag [#allocation3], 1
    %3060 = vsyncpa %s3059, 1
    %3061 = vsyncpa [#allocation6], 1
    %3062 = vsyncpa [#allocation9], 1
    %3063 = vsyncpa [#allocation12], 1
    %3064 = vsyncpa [#allocation4], 1
    %s3065 = scalar_lea.sflag [#allocation4], 1
    %3066 = vsyncpa %s3065, 1

</llo_original>
